<compile_context>
chip_gen: v5e
topology: v5e:2x2
jax: 0.10.0
libtpu: 0.0.40
codegen_flags: <defaults>
</compile_context>

<pallas_src>
import functools
from math import sqrt

import jax
import jax.numpy as jnp
from jax import lax
from jax.experimental import pallas as pl
from jax.experimental.pallas import tpu as pltpu

_BN_EPS = 1e-5
_LANE = 128
# Explicit scoped-VMEM limit; per-step tiles are <= a few MiB, so 32 MiB is
# plenty and safe on v5e/v6e (128 MiB) and v7x (64 MiB physical).
_VMEM_LIMIT = 32 * 1024 * 1024


def _round_up(x, q):
    return ((x + q - 1) // q) * q


def _pick_tile(dim, target, quantum):
    """Largest multiple of `quantum` that evenly divides `dim` and is <= target.

    Falls back to the full dim, which is always legal under the (8,128) block
    rule (block dim equal to full array dim)."""
    best = None
    cand = quantum
    limit = min(target, dim)
    while cand <= limit:
        if dim % cand == 0:
            best = cand
        cand += quantum
    return best if best is not None else dim


def _pad_axis(a, axis, target):
    if a.shape[axis] == target:
        return a
    pads = [(0, 0)] * a.ndim
    pads[axis] = (0, target - a.shape[axis])
    return jnp.pad(a, pads)


# ----------------------------------------------------------------------------
# 1) expand: fused 1x1 conv (matmul) + folded BN + SiLU
# ----------------------------------------------------------------------------
def _expand_kernel(x_ref, w_ref, sc_ref, bi_ref, o_ref):
    # x: (Tm, Cin) bf16, w: (Cin, Tn) bf16 -> native-rate MXU matmul, f32 acc.
    y = jnp.dot(x_ref[...], w_ref[...], preferred_element_type=jnp.float32)
    y = y * sc_ref[...] + bi_ref[...]                       # folded BatchNorm (f32)
    o_ref[...] = (y * jax.nn.sigmoid(y)).astype(o_ref.dtype)  # SiLU


def _expand_1x1(x2d, w, scale, bias, out_dtype):
    m, cin = x2d.shape
    n = w.shape[1]
    tm = _pick_tile(m, 512, 8)
    tn = _pick_tile(n, 512, 128)
    grid = (m // tm, n // tn)
    return pl.pallas_call(
        _expand_kernel,
        out_shape=jax.ShapeDtypeStruct((m, n), out_dtype),
        grid=grid,
        in_specs=[
            pl.BlockSpec((tm, cin), lambda i, j: (i, 0)),
            pl.BlockSpec((cin, tn), lambda i, j: (0, j)),   # grid-invariant in i
            pl.BlockSpec((1, tn), lambda i, j: (0, j)),
            pl.BlockSpec((1, tn), lambda i, j: (0, j)),
        ],
        out_specs=pl.BlockSpec((tm, tn), lambda i, j: (i, j)),
        compiler_params=pltpu.CompilerParams(
            dimension_semantics=("parallel", "parallel"),
            vmem_limit_bytes=_VMEM_LIMIT),
        cost_estimate=pl.CostEstimate(
            flops=2 * m * cin * n,
            transcendentals=m * n,
            bytes_accessed=2 * (m * cin + cin * n + m * n)),
    )(x2d, w, scale, bias)


# ----------------------------------------------------------------------------
# 2) depthwise kxk 'same' conv (stride 1) + folded BN + SiLU,
#    with per-(batch, row-tile) SE partial sums as a second output.
# ----------------------------------------------------------------------------
def _dw_kernel(k, p, tr, wdim, top_ref, mid_ref, bot_ref, w_ref, sc_ref, bi_ref,
               y_ref, pool_ref):
    # top/bot: (1, p, W, Ch) halo rows (clamped at the image border -> masked)
    # mid    : (1, tr, W, Ch) row tile; w: (k, k, Ch); sc/bi: (1, Ch)
    # y      : (1, tr, W, Ch) output row tile; pool: (1, 1, Ch) partial SE sum.
    j = pl.program_id(1)
    nj = pl.num_programs(1)
    ch = w_ref.shape[-1]

    mid = mid_ref[0].astype(jnp.float32)
    top = jnp.where(j > 0, top_ref[0].astype(jnp.float32), 0.0)       # zero-pad top
    bot = jnp.where(j < nj - 1, bot_ref[0].astype(jnp.float32), 0.0)  # zero-pad bottom
    win = jnp.concatenate([top, mid, bot], axis=0)           # (tr + 2p, W, Ch)

    # 'same' W padding done in-register once per step: p zero columns each side.
    zcol = jnp.zeros((tr + 2 * p, p, ch), jnp.float32)
    win = jnp.concatenate([zcol, win, zcol], axis=1)         # (tr + 2p, W + 2p, Ch)

    # Hoist the sublane (W-axis) shifts out of the dh loop: k shifted views
    # instead of k*k misaligned slices; the inner loop indexes only rows.
    w = w_ref[...].astype(jnp.float32)
    shifted = [win[:, dwi:dwi + wdim, :] for dwi in range(k)]
    acc = jnp.zeros((tr, wdim, ch), jnp.float32)
    for dh in range(k):                                      # k*k taps, trace-unrolled
        for dwi in range(k):
            acc = acc + shifted[dwi][dh:dh + tr] * w[dh, dwi].reshape(1, 1, ch)

    y = acc * sc_ref[...].reshape(1, 1, ch) + bi_ref[...].reshape(1, 1, ch)
    y = y * jax.nn.sigmoid(y)                                # SiLU
    y_ref[0] = y.astype(y_ref.dtype)
    # Per-(batch, row-tile) partial sum -> both grid axes stay "parallel"
    # (megacore-shardable); the tiny reduction over row tiles happens in JAX.
    pool_ref[...] = jnp.sum(y, axis=(0, 1)).reshape(1, 1, ch)


def _depthwise(h, w_dw, scale, bias, k, p, out_dtype):
    b, hh, ww, ch = h.shape
    tr = _pick_tile(hh, 32, p)          # row tile: divisor of H, multiple of p
    rpb = tr // p                       # p-row halo blocks per row tile
    nj = hh // tr
    kernel = functools.partial(_dw_kernel, k, p, tr, ww)
    y, pool = pl.pallas_call(
        kernel,
        out_shape=(jax.ShapeDtypeStruct((b, hh, ww, ch), out_dtype),
                   jax.ShapeDtypeStruct((b, nj, ch), jnp.float32)),
        grid=(b, nj),
        in_specs=[
            # Halo above / the row tile itself / halo below.  The halo index_maps
            # clamp at the border; the kernel masks those rows to zero, which
            # implements the conv's zero padding without a jnp.pad HBM copy.
            pl.BlockSpec((1, p, ww, ch),
                         lambda i, j: (i, jnp.maximum(j * rpb - 1, 0), 0, 0)),
            pl.BlockSpec((1, tr, ww, ch), lambda i, j: (i, j, 0, 0)),
            pl.BlockSpec((1, p, ww, ch),
                         lambda i, j: (i, jnp.minimum((j + 1) * rpb, hh // p - 1), 0, 0)),
            pl.BlockSpec((k, k, ch), lambda i, j: (0, 0, 0)),
            pl.BlockSpec((1, ch), lambda i, j: (0, 0)),
            pl.BlockSpec((1, ch), lambda i, j: (0, 0)),
        ],
        out_specs=(
            pl.BlockSpec((1, tr, ww, ch), lambda i, j: (i, j, 0, 0)),
            pl.BlockSpec((1, 1, ch), lambda i, j: (i, j, 0)),   # partial sums, no revisits
        ),
        compiler_params=pltpu.CompilerParams(
            dimension_semantics=("parallel", "parallel"),
            vmem_limit_bytes=_VMEM_LIMIT),
        cost_estimate=pl.CostEstimate(
            flops=2 * b * hh * ww * ch * k * k,
            transcendentals=b * hh * ww * ch,
            bytes_accessed=2 * (2 * b * hh * ww * ch) + 4 * b * nj * ch),
    )(h, h, h, w_dw, scale, bias)
    return y, pool


# ----------------------------------------------------------------------------
# 3) project: SE-gate apply + 1x1 conv (matmul) + folded BN (+ residual)
# ----------------------------------------------------------------------------
def _project_kernel(use_residual, y_ref, g_ref, w_ref, sc_ref, bi_ref, *rest):
    if use_residual:
        res_ref, o_ref = rest
    else:
        (o_ref,) = rest
    y = y_ref[0] * g_ref[0]                        # SE gate applied on load (bf16*bf16)
    z = jnp.dot(y, w_ref[...], preferred_element_type=jnp.float32)
    z = z * sc_ref[...] + bi_ref[...]              # folded BatchNorm, no activation
    if use_residual:
        z = z + res_ref[0].astype(jnp.float32)
    o_ref[0] = z.astype(o_ref.dtype)


def _project(y3d, gate3d, w, scale, bias, residual3d, out_dtype):
    b, m, ch = y3d.shape
    n = w.shape[1]
    tm = _pick_tile(m, 512, 8)
    tn = _pick_tile(n, 512, 128)
    grid = (b, m // tm, n // tn)
    use_residual = residual3d is not None
    in_specs = [
        pl.BlockSpec((1, tm, ch), lambda i, j, l: (i, j, 0)),
        pl.BlockSpec((1, 1, ch), lambda i, j, l: (i, 0, 0)),
        pl.BlockSpec((ch, tn), lambda i, j, l: (0, l)),        # grid-invariant weights
        pl.BlockSpec((1, tn), lambda i, j, l: (0, l)),
        pl.BlockSpec((1, tn), lambda i, j, l: (0, l)),
    ]
    args = [y3d, gate3d, w, scale, bias]
    if use_residual:
        in_specs.append(pl.BlockSpec((1, tm, tn), lambda i, j, l: (i, j, l)))
        args.append(residual3d)
    return pl.pallas_call(
        functools.partial(_project_kernel, use_residual),
        out_shape=jax.ShapeDtypeStruct((b, m, n), out_dtype),
        grid=grid,
        in_specs=in_specs,
        out_specs=pl.BlockSpec((1, tm, tn), lambda i, j, l: (i, j, l)),
        compiler_params=pltpu.CompilerParams(
            dimension_semantics=("parallel", "parallel", "parallel"),
            vmem_limit_bytes=_VMEM_LIMIT),
        cost_estimate=pl.CostEstimate(
            flops=2 * b * m * ch * n,
            transcendentals=0,
            bytes_accessed=2 * (b * m * ch + ch * n) + 4 * b * m * n),
    )(*args)


# ----------------------------------------------------------------------------
# Full block wrapper (NCHW in / NCHW out, like the PyTorch module)
# ----------------------------------------------------------------------------
def inverted_residual_block(x, params, *, kernel_size, stride, padding,
                            io_dtype=jnp.bfloat16):
    """Inference forward of InvertedResidualBlock. x: (B, Cin, H, W) float32."""
    b, c_in, hh, ww = x.shape
    k, s, p = kernel_size, stride, padding
    hidden = params["w_dw"].shape[-1]
    c_out = params["w_project"].shape[1]
    expand = "w_expand" in params

    hidden_pad = _round_up(hidden, _LANE)
    c_out_pad = _round_up(c_out, _LANE)

    h_out = (hh + 2 * p - k) // s + 1
    w_out = (ww + 2 * p - k) // s + 1
    use_residual = (c_in == c_out) and (s == 1) and (h_out, w_out) == (hh, ww)

    x_nhwc = jnp.transpose(x, (0, 2, 3, 1)).astype(jnp.float32)   # (B, H, W, Cin)

    # 1) expand 1x1 conv + BN + SiLU (bf16 operands on the MXU, f32 accumulate)
    if expand:
        w_e = _pad_axis(params["w_expand"], 1, hidden_pad).astype(io_dtype)
        sc_e = _pad_axis(params["sc_expand"], 1, hidden_pad)
        bi_e = _pad_axis(params["bi_expand"], 1, hidden_pad)
        h = _expand_1x1(x_nhwc.reshape(b * hh * ww, c_in).astype(io_dtype),
                        w_e, sc_e, bi_e, io_dtype)
        h = h.reshape(b, hh, ww, hidden_pad)
    else:
        h = _pad_axis(x_nhwc, 3, hidden_pad).astype(io_dtype)

    # 2) depthwise kxk conv + BN + SiLU (+ per-row-tile SE partial sums)
    w_d = _pad_axis(params["w_dw"], 2, hidden_pad)
    sc_d = _pad_axis(params["sc_dw"], 1, hidden_pad)
    bi_d = _pad_axis(params["bi_dw"], 1, hidden_pad)
    if s == 1 and p >= 1 and 2 * p == k - 1 and hh % p == 0:
        y_dw, pool_parts = _depthwise(h, w_d, sc_d, bi_d, k, p, io_dtype)
        pooled_sum = jnp.sum(pool_parts, axis=1)                   # (B, hidden_pad)
    else:
        # TODO(synk): stride>1 / non-'same'-padding depthwise conv is not a Pallas
        # kernel yet; it falls back to XLA (non-residual path in EfficientNet).
        hf = h.astype(jnp.float32)
        yc = lax.conv_general_dilated(
            hf, w_d.reshape(k, k, 1, hidden_pad),
            window_strides=(s, s), padding=[(p, p), (p, p)],
            dimension_numbers=("NHWC", "HWIO", "NHWC"),
            feature_group_count=hidden_pad)
        yc = yc * sc_d[0] + bi_d[0]
        yc = yc * jax.nn.sigmoid(yc)
        y_dw = yc.astype(io_dtype)
        pooled_sum = jnp.sum(yc, axis=(1, 2))

    # 3) SE squeeze path in plain JAX (a few kFLOPs; a dedicated pallas_call costs
    #    more in launch + DMA overhead than the work itself).
    pooled = pooled_sum[:, :hidden] * (1.0 / float(h_out * w_out))
    g = pooled @ params["w_se1"] + params["b_se1"]
    g = g * jax.nn.sigmoid(g)                                      # SiLU
    g = g @ params["w_se2"] + params["b_se2"]
    gate = jax.nn.sigmoid(g)                                       # (B, hidden) f32
    gate = _pad_axis(gate, 1, hidden_pad).astype(io_dtype)         # padded lanes hit zero acts

    # 4) gate-apply + project 1x1 conv + BN (+ residual)
    w_p = _pad_axis(_pad_axis(params["w_project"], 0, hidden_pad),
                    1, c_out_pad).astype(io_dtype)
    sc_p = _pad_axis(params["sc_project"], 1, c_out_pad)
    bi_p = _pad_axis(params["bi_project"], 1, c_out_pad)
    residual = None
    if use_residual:
        residual = _pad_axis(x_nhwc, 3, c_out_pad).reshape(
            b, hh * ww, c_out_pad).astype(io_dtype)
    out = _project(y_dw.reshape(b, h_out * w_out, hidden_pad),
                   gate.reshape(b, 1, hidden_pad),
                   w_p, sc_p, bi_p, residual, jnp.float32)
    # TODO(synk): training-mode stochastic depth (per-sample survival mask and
    # 1/survival_prob rescale) is not implemented; inference behaviour (identity).
    out = out.reshape(b, h_out, w_out, c_out_pad)[..., :c_out]
    return jnp.transpose(out, (0, 3, 1, 2))


# ----------------------------------------------------------------------------
# Parameter init (PyTorch: kaiming_normal_(fan_out, relu) convs, default BN)
# ----------------------------------------------------------------------------
def _fold_bn(gamma, beta, mean, var, eps=_BN_EPS):
    scale = gamma / jnp.sqrt(var + eps)
    return scale.reshape(1, -1), (beta - mean * scale).reshape(1, -1)


def init_params(key, in_ch, out_ch, kernel_size, expand_ratio, reduction):
    hidden = in_ch * expand_ratio
    reduced = max(1, int(in_ch / reduction))
    k = kernel_size
    keys = jax.random.split(key, 5)
    params = {}

    def bn(ch):  # gamma=1, beta=0, running_mean=0, running_var=1 (inference fold)
        return _fold_bn(jnp.ones((ch,), jnp.float32), jnp.zeros((ch,), jnp.float32),
                        jnp.zeros((ch,), jnp.float32), jnp.ones((ch,), jnp.float32))

    if expand_ratio != 1:
        params["w_expand"] = jax.random.normal(
            keys[0], (in_ch, hidden), jnp.float32) * sqrt(2.0 / hidden)
        params["sc_expand"], params["bi_expand"] = bn(hidden)
    params["w_dw"] = jax.random.normal(
        keys[1], (k, k, hidden), jnp.float32) * sqrt(2.0 / (hidden * k * k))
    params["sc_dw"], params["bi_dw"] = bn(hidden)
    params["w_se1"] = jax.random.normal(
        keys[2], (hidden, reduced), jnp.float32) * sqrt(2.0 / reduced)
    params["b_se1"] = jnp.zeros((1, reduced), jnp.float32)
    params["w_se2"] = jax.random.normal(
        keys[3], (reduced, hidden), jnp.float32) * sqrt(2.0 / hidden)
    params["b_se2"] = jnp.zeros((1, hidden), jnp.float32)
    params["w_project"] = jax.random.normal(
        keys[4], (hidden, out_ch), jnp.float32) * sqrt(2.0 / out_ch)
    params["sc_project"], params["bi_project"] = bn(out_ch)
    return params


# ----------------------------------------------------------------------------
# Pure-JAX f32 reference
# ----------------------------------------------------------------------------
def _reference(x, params, *, kernel_size, stride, padding):
    b, c_in, hh, ww = x.shape
    k, s, p = kernel_size, stride, padding
    hidden = params["w_dw"].shape[-1]
    c_out = params["w_project"].shape[1]
    use_residual = (c_in == c_out) and (s == 1)

    h = jnp.transpose(x, (0, 2, 3, 1))
    x_nhwc = h
    if "w_expand" in params:
        h = jnp.einsum("bhwc,cd->bhwd", h, params["w_expand"])
        h = h * params["sc_expand"][0] + params["bi_expand"][0]
        h = h * jax.nn.sigmoid(h)
    h = lax.conv_general_dilated(
        h, params["w_dw"].reshape(k, k, 1, hidden),
        window_strides=(s, s), padding=[(p, p), (p, p)],
        dimension_numbers=("NHWC", "HWIO", "NHWC"),
        feature_group_count=hidden)
    h = h * params["sc_dw"][0] + params["bi_dw"][0]
    h = h * jax.nn.sigmoid(h)
    pooled = jnp.mean(h, axis=(1, 2))
    g = pooled @ params["w_se1"] + params["b_se1"]
    g = g * jax.nn.sigmoid(g)
    g = g @ params["w_se2"] + params["b_se2"]
    g = jax.nn.sigmoid(g)
    h = h * g[:, None, None, :]
    z = jnp.einsum("bhwc,cd->bhwd", h, params["w_project"])
    z = z * params["sc_project"][0] + params["bi_project"][0]
    if use_residual:
        z = z + x_nhwc
    return jnp.transpose(z, (0, 3, 1, 2))


if __name__ == "__main__":
    key = jax.random.PRNGKey(0)
    kx, kp = jax.random.split(key)

    # Small InvertedResidualBlock: in=out=4, k=3, s=1, p=1, expand_ratio=4,
    # reduction=2 -> hidden=16 (lane-padded to 128), residual path active.
    B, C, H, W = 2, 4, 16, 16
    kernel_size, stride, padding = 3, 1, 1
    expand_ratio, reduction = 4, 2

    x = jax.random.normal(kx, (B, C, H, W), jnp.float32)
    params = init_params(kp, C, C, kernel_size, expand_ratio, reduction)

    fwd = jax.jit(functools.partial(inverted_residual_block,
                                    kernel_size=kernel_size, stride=stride,
                                    padding=padding))
    y = jax.block_until_ready(fwd(x, params))

    y_ref = _reference(x, params, kernel_size=kernel_size, stride=stride,
                       padding=padding)
    assert y.shape == y_ref.shape
    # Tolerance reflects bf16 activations / bf16 MXU operands (f32 accumulation)
    # vs the f32 XLA reference; not a kernel bug.
    err = float(jnp.max(jnp.abs(y - y_ref)))
    assert jnp.allclose(y, y_ref, atol=5e-2, rtol=5e-2), f"max abs diff = {err}"

    print("KERNEL_OK")
</pallas_src>

<mosaic_0001>
module attributes {stable_mosaic.version = 11 : i64} {
  func.func @_expand_kernel(%arg0: i32, %arg1: i32, %arg2: memref<512x4xbf16, #tpu.memory_space<vmem>>, %arg3: memref<4x128xbf16, #tpu.memory_space<vmem>>, %arg4: memref<1x128xf32, #tpu.memory_space<vmem>>, %arg5: memref<1x128xf32, #tpu.memory_space<vmem>>, %arg6: memref<512x128xbf16, #tpu.memory_space<vmem>>) attributes {dimension_semantics = [#tpu.dimension_semantics<parallel>, #tpu.dimension_semantics<parallel>], iteration_bounds = array<i64: 1, 1>, scalar_prefetch = 0 : i64, scratch_operands = 0 : i64, tpu.core_type = #tpu.core_type<tc>, window_params = [{transform_indices = @transform_0, window_bounds = array<i64: 512, 4>}, {transform_indices = @transform_1, window_bounds = array<i64: 4, 128>}, {transform_indices = @transform_2, window_bounds = array<i64: 1, 128>}, {transform_indices = @transform_3, window_bounds = array<i64: 1, 128>}, {transform_indices = @transform_4, window_bounds = array<i64: 512, 128>}]} {
    %c0 = arith.constant 0 : index
    %c0_0 = arith.constant 0 : index
    %0 = vector.load %arg2[%c0, %c0_0] : memref<512x4xbf16, #tpu.memory_space<vmem>>, vector<512x4xbf16>
    %c0_1 = arith.constant 0 : index
    %c0_2 = arith.constant 0 : index
    %1 = vector.load %arg3[%c0_1, %c0_2] : memref<4x128xbf16, #tpu.memory_space<vmem>>, vector<4x128xbf16>
    %cst = arith.constant dense<0.000000e+00> : vector<512x128xf32>
    %2 = tpu.matmul %0, %1, %cst {dimension_numbers = #tpu.dot_dimension_numbers<[1], [0], [0], [1], [0, 0, 1, 1], [], []>} : vector<512x4xbf16>, vector<4x128xbf16>, vector<512x128xf32> -> vector<512x128xf32>
    %c0_3 = arith.constant 0 : index
    %c0_4 = arith.constant 0 : index
    %3 = vector.load %arg4[%c0_3, %c0_4] : memref<1x128xf32, #tpu.memory_space<vmem>>, vector<1x128xf32>
    %4 = vector.broadcast %3 : vector<1x128xf32> to vector<512x128xf32>
    %5 = arith.mulf %2, %4 : vector<512x128xf32>
    %c0_5 = arith.constant 0 : index
    %c0_6 = arith.constant 0 : index
    %6 = vector.load %arg5[%c0_5, %c0_6] : memref<1x128xf32, #tpu.memory_space<vmem>>, vector<1x128xf32>
    %7 = vector.broadcast %6 : vector<1x128xf32> to vector<512x128xf32>
    %8 = arith.addf %5, %7 : vector<512x128xf32>
    %9 = arith.negf %8 : vector<512x128xf32>
    %10 = math.exp %9 : vector<512x128xf32>
    %cst_7 = arith.constant 1.000000e+00 : f32
    %11 = vector.broadcast %cst_7 : f32 to vector<512x128xf32>
    %12 = arith.addf %11, %10 : vector<512x128xf32>
    %13 = arith.divf %11, %12 : vector<512x128xf32>
    %14 = arith.mulf %8, %13 : vector<512x128xf32>
    %15 = arith.truncf %14 : vector<512x128xf32> to vector<512x128xbf16>
    %c0_8 = arith.constant 0 : index
    %c0_9 = arith.constant 0 : index
    %16 = vector.load %arg6[%c0_8, %c0_9] : memref<512x128xbf16, #tpu.memory_space<vmem>>, vector<512x128xbf16>
    tpu.vector_store %arg6[%c0_8, %c0_9], %15 {strides = array<i32>} : memref<512x128xbf16, #tpu.memory_space<vmem>>, vector<512x128xbf16>,
    return
  }
  func.func @transform_0(%arg0: i32, %arg1: i32) -> (i32, i32) {
    %c0_i32 = arith.constant 0 : i32
    %c0_i32_0 = arith.constant 0 : i32
    return %arg0, %c0_i32 : i32, i32
  }
  func.func @transform_1(%arg0: i32, %arg1: i32) -> (i32, i32) {
    %c0_i32 = arith.constant 0 : i32
    %c0_i32_0 = arith.constant 0 : i32
    return %c0_i32, %arg1 : i32, i32
  }
  func.func @transform_2(%arg0: i32, %arg1: i32) -> (i32, i32) {
    %c0_i32 = arith.constant 0 : i32
    %c0_i32_0 = arith.constant 0 : i32
    return %c0_i32, %arg1 : i32, i32
  }
  func.func @transform_3(%arg0: i32, %arg1: i32) -> (i32, i32) {
    %c0_i32 = arith.constant 0 : i32
    %c0_i32_0 = arith.constant 0 : i32
    return %c0_i32, %arg1 : i32, i32
  }
  func.func @transform_4(%arg0: i32, %arg1: i32) -> (i32, i32) {
    %c0_i32 = arith.constant 0 : i32
    return %arg0, %arg1 : i32, i32
  }
}

module attributes {stable_mosaic.version = 11 : i64} {
  func.func @_dw_kernel(%arg0: i32, %arg1: i32, %arg2: memref<1x1x16x128xbf16, #tpu.memory_space<vmem>>, %arg3: memref<1x16x16x128xbf16, #tpu.memory_space<vmem>>, %arg4: memref<1x1x16x128xbf16, #tpu.memory_space<vmem>>, %arg5: memref<3x3x128xf32, #tpu.memory_space<vmem>>, %arg6: memref<1x128xf32, #tpu.memory_space<vmem>>, %arg7: memref<1x128xf32, #tpu.memory_space<vmem>>, %arg8: memref<1x16x16x128xbf16, #tpu.memory_space<vmem>>, %arg9: memref<1x1x128xf32, #tpu.memory_space<vmem>>) attributes {dimension_semantics = [#tpu.dimension_semantics<parallel>, #tpu.dimension_semantics<parallel>], iteration_bounds = array<i64: 2, 1>, scalar_prefetch = 0 : i64, scratch_operands = 0 : i64, tpu.core_type = #tpu.core_type<tc>, window_params = [{transform_indices = @transform_0, window_bounds = array<i64: 1, 1, 16, 128>}, {transform_indices = @transform_1, window_bounds = array<i64: 1, 16, 16, 128>}, {transform_indices = @transform_2, window_bounds = array<i64: 1, 1, 16, 128>}, {pipeline_mode = #tpu.pipeline_mode<synchronous>, transform_indices = @transform_3, window_bounds = array<i64: 3, 3, 128>}, {pipeline_mode = #tpu.pipeline_mode<synchronous>, transform_indices = @transform_4, window_bounds = array<i64: 1, 128>}, {pipeline_mode = #tpu.pipeline_mode<synchronous>, transform_indices = @transform_5, window_bounds = array<i64: 1, 128>}, {transform_indices = @transform_6, window_bounds = array<i64: 1, 16, 16, 128>}, {transform_indices = @transform_7, window_bounds = array<i64: 1, 1, 128>}]} {
    %c0 = arith.constant 0 : index
    %c0_0 = arith.constant 0 : index
    %c0_1 = arith.constant 0 : index
    %c0_2 = arith.constant 0 : index
    %0 = vector.load %arg3[%c0, %c0_0, %c0_1, %c0_2] : memref<1x16x16x128xbf16, #tpu.memory_space<vmem>>, vector<1x16x16x128xbf16>
    %1 = vector.shape_cast %0 : vector<1x16x16x128xbf16> to vector<16x16x128xbf16>
    %2 = arith.extf %1 : vector<16x16x128xbf16> to vector<16x16x128xf32>
    %c0_i32 = arith.constant 0 : i32
    %3 = arith.cmpi sgt, %arg1, %c0_i32 : i32
    %c0_3 = arith.constant 0 : index
    %c0_4 = arith.constant 0 : index
    %c0_5 = arith.constant 0 : index
    %c0_6 = arith.constant 0 : index
    %4 = vector.load %arg2[%c0_3, %c0_4, %c0_5, %c0_6] : memref<1x1x16x128xbf16, #tpu.memory_space<vmem>>, vector<1x1x16x128xbf16>
    %5 = vector.shape_cast %4 : vector<1x1x16x128xbf16> to vector<1x16x128xbf16>
    %6 = arith.extf %5 : vector<1x16x128xbf16> to vector<1x16x128xf32>
    %cst = arith.constant 0.000000e+00 : f32
    %7 = vector.broadcast %cst : f32 to vector<1x16x128xf32>
    %8 = arith.select %3, %6, %7 : vector<1x16x128xf32>
    %c0_i32_7 = arith.constant 0 : i32
    %9 = arith.cmpi slt, %arg1, %c0_i32_7 : i32
    %c0_8 = arith.constant 0 : index
    %c0_9 = arith.constant 0 : index
    %c0_10 = arith.constant 0 : index
    %c0_11 = arith.constant 0 : index
    %10 = vector.load %arg4[%c0_8, %c0_9, %c0_10, %c0_11] : memref<1x1x16x128xbf16, #tpu.memory_space<vmem>>, vector<1x1x16x128xbf16>
    %11 = vector.shape_cast %10 : vector<1x1x16x128xbf16> to vector<1x16x128xbf16>
    %12 = arith.extf %11 : vector<1x16x128xbf16> to vector<1x16x128xf32>
    %cst_12 = arith.constant 0.000000e+00 : f32
    %13 = vector.broadcast %cst_12 : f32 to vector<1x16x128xf32>
    %14 = arith.select %9, %12, %13 : vector<1x16x128xf32>
    %15 = tpu.concatenate %8, %2, %14 in 0 : vector<1x16x128xf32>, vector<16x16x128xf32>, vector<1x16x128xf32> -> vector<18x16x128xf32>
    %cst_13 = arith.constant 0.000000e+00 : f32
    %16 = vector.broadcast %cst_13 : f32 to vector<18x1x128xf32>
    %17 = tpu.concatenate %16, %15, %16 in 1 : vector<18x1x128xf32>, vector<18x16x128xf32>, vector<18x1x128xf32> -> vector<18x18x128xf32>
    %c0_14 = arith.constant 0 : index
    %c0_15 = arith.constant 0 : index
    %c0_16 = arith.constant 0 : index
    %18 = vector.load %arg5[%c0_14, %c0_15, %c0_16] : memref<3x3x128xf32, #tpu.memory_space<vmem>>, vector<3x3x128xf32>
    %19 = vector.extract_strided_slice %17 {offsets = [0, 0, 0], sizes = [18, 16, 128], strides = [1, 1, 1]} : vector<18x18x128xf32> to vector<18x16x128xf32>
    %20 = vector.extract_strided_slice %17 {offsets = [0, 1, 0], sizes = [18, 16, 128], strides = [1, 1, 1]} : vector<18x18x128xf32> to vector<18x16x128xf32>
    %21 = vector.extract_strided_slice %17 {offsets = [0, 2, 0], sizes = [18, 16, 128], strides = [1, 1, 1]} : vector<18x18x128xf32> to vector<18x16x128xf32>
    %cst_17 = arith.constant 0.000000e+00 : f32
    %22 = vector.broadcast %cst_17 : f32 to vector<16x16x128xf32>
    %23 = vector.extract_strided_slice %19 {offsets = [0, 0, 0], sizes = [16, 16, 128], strides = [1, 1, 1]} : vector<18x16x128xf32> to vector<16x16x128xf32>
    %24 = vector.extract_strided_slice %18 {offsets = [0, 0, 0], sizes = [1, 1, 128], strides = [1, 1, 1]} : vector<3x3x128xf32> to vector<1x1x128xf32>
    %25 = vector.shape_cast %24 : vector<1x1x128xf32> to vector<128xf32>
    %26 = vector.shape_cast %25 : vector<128xf32> to vector<1x1x128xf32>
    %27 = vector.broadcast %26 : vector<1x1x128xf32> to vector<16x16x128xf32>
    %28 = arith.mulf %23, %27 : vector<16x16x128xf32>
    %29 = arith.addf %22, %28 : vector<16x16x128xf32>
    %30 = vector.extract_strided_slice %20 {offsets = [0, 0, 0], sizes = [16, 16, 128], strides = [1, 1, 1]} : vector<18x16x128xf32> to vector<16x16x128xf32>
    %31 = vector.extract_strided_slice %18 {offsets = [0, 1, 0], sizes = [1, 1, 128], strides = [1, 1, 1]} : vector<3x3x128xf32> to vector<1x1x128xf32>
    %32 = vector.shape_cast %31 : vector<1x1x128xf32> to vector<128xf32>
    %33 = vector.shape_cast %32 : vector<128xf32> to vector<1x1x128xf32>
    %34 = vector.broadcast %33 : vector<1x1x128xf32> to vector<16x16x128xf32>
    %35 = arith.mulf %30, %34 : vector<16x16x128xf32>
    %36 = arith.addf %29, %35 : vector<16x16x128xf32>
    %37 = vector.extract_strided_slice %21 {offsets = [0, 0, 0], sizes = [16, 16, 128], strides = [1, 1, 1]} : vector<18x16x128xf32> to vector<16x16x128xf32>
    %38 = vector.extract_strided_slice %18 {offsets = [0, 2, 0], sizes = [1, 1, 128], strides = [1, 1, 1]} : vector<3x3x128xf32> to vector<1x1x128xf32>
    %39 = vector.shape_cast %38 : vector<1x1x128xf32> to vector<128xf32>
    %40 = vector.shape_cast %39 : vector<128xf32> to vector<1x1x128xf32>
    %41 = vector.broadcast %40 : vector<1x1x128xf32> to vector<16x16x128xf32>
    %42 = arith.mulf %37, %41 : vector<16x16x128xf32>
    %43 = arith.addf %36, %42 : vector<16x16x128xf32>
    %44 = vector.extract_strided_slice %19 {offsets = [1, 0, 0], sizes = [16, 16, 128], strides = [1, 1, 1]} : vector<18x16x128xf32> to vector<16x16x128xf32>
    %45 = vector.extract_strided_slice %18 {offsets = [1, 0, 0], sizes = [1, 1, 128], strides = [1, 1, 1]} : vector<3x3x128xf32> to vector<1x1x128xf32>
    %46 = vector.shape_cast %45 : vector<1x1x128xf32> to vector<128xf32>
    %47 = vector.shape_cast %46 : vector<128xf32> to vector<1x1x128xf32>
    %48 = vector.broadcast %47 : vector<1x1x128xf32> to vector<16x16x128xf32>
    %49 = arith.mulf %44, %48 : vector<16x16x128xf32>
    %50 = arith.addf %43, %49 : vector<16x16x128xf32>
    %51 = vector.extract_strided_slice %20 {offsets = [1, 0, 0], sizes = [16, 16, 128], strides = [1, 1, 1]} : vector<18x16x128xf32> to vector<16x16x128xf32>
    %52 = vector.extract_strided_slice %18 {offsets = [1, 1, 0], sizes = [1, 1, 128], strides = [1, 1, 1]} : vector<3x3x128xf32> to vector<1x1x128xf32>
    %53 = vector.shape_cast %52 : vector<1x1x128xf32> to vector<128xf32>
    %54 = vector.shape_cast %53 : vector<128xf32> to vector<1x1x128xf32>
    %55 = vector.broadcast %54 : vector<1x1x128xf32> to vector<16x16x128xf32>
    %56 = arith.mulf %51, %55 : vector<16x16x128xf32>
    %57 = arith.addf %50, %56 : vector<16x16x128xf32>
    %58 = vector.extract_strided_slice %21 {offsets = [1, 0, 0], sizes = [16, 16, 128], strides = [1, 1, 1]} : vector<18x16x128xf32> to vector<16x16x128xf32>
    %59 = vector.extract_strided_slice %18 {offsets = [1, 2, 0], sizes = [1, 1, 128], strides = [1, 1, 1]} : vector<3x3x128xf32> to vector<1x1x128xf32>
    %60 = vector.shape_cast %59 : vector<1x1x128xf32> to vector<128xf32>
    %61 = vector.shape_cast %60 : vector<128xf32> to vector<1x1x128xf32>
    %62 = vector.broadcast %61 : vector<1x1x128xf32> to vector<16x16x128xf32>
    %63 = arith.mulf %58, %62 : vector<16x16x128xf32>
    %64 = arith.addf %57, %63 : vector<16x16x128xf32>
    %65 = vector.extract_strided_slice %19 {offsets = [2, 0, 0], sizes = [16, 16, 128], strides = [1, 1, 1]} : vector<18x16x128xf32> to vector<16x16x128xf32>
    %66 = vector.extract_strided_slice %18 {offsets = [2, 0, 0], sizes = [1, 1, 128], strides = [1, 1, 1]} : vector<3x3x128xf32> to vector<1x1x128xf32>
    %67 = vector.shape_cast %66 : vector<1x1x128xf32> to vector<128xf32>
    %68 = vector.shape_cast %67 : vector<128xf32> to vector<1x1x128xf32>
    %69 = vector.broadcast %68 : vector<1x1x128xf32> to vector<16x16x128xf32>
    %70 = arith.mulf %65, %69 : vector<16x16x128xf32>
    %71 = arith.addf %64, %70 : vector<16x16x128xf32>
    %72 = vector.extract_strided_slice %20 {offsets = [2, 0, 0], sizes = [16, 16, 128], strides = [1, 1, 1]} : vector<18x16x128xf32> to vector<16x16x128xf32>
    %73 = vector.extract_strided_slice %18 {offsets = [2, 1, 0], sizes = [1, 1, 128], strides = [1, 1, 1]} : vector<3x3x128xf32> to vector<1x1x128xf32>
    %74 = vector.shape_cast %73 : vector<1x1x128xf32> to vector<128xf32>
    %75 = vector.shape_cast %74 : vector<128xf32> to vector<1x1x128xf32>
    %76 = vector.broadcast %75 : vector<1x1x128xf32> to vector<16x16x128xf32>
    %77 = arith.mulf %72, %76 : vector<16x16x128xf32>
    %78 = arith.addf %71, %77 : vector<16x16x128xf32>
    %79 = vector.extract_strided_slice %21 {offsets = [2, 0, 0], sizes = [16, 16, 128], strides = [1, 1, 1]} : vector<18x16x128xf32> to vector<16x16x128xf32>
    %80 = vector.extract_strided_slice %18 {offsets = [2, 2, 0], sizes = [1, 1, 128], strides = [1, 1, 1]} : vector<3x3x128xf32> to vector<1x1x128xf32>
    %81 = vector.shape_cast %80 : vector<1x1x128xf32> to vector<128xf32>
    %82 = vector.shape_cast %81 : vector<128xf32> to vector<1x1x128xf32>
    %83 = vector.broadcast %82 : vector<1x1x128xf32> to vector<16x16x128xf32>
    %84 = arith.mulf %79, %83 : vector<16x16x128xf32>
    %85 = arith.addf %78, %84 : vector<16x16x128xf32>
    %c0_18 = arith.constant 0 : index
    %c0_19 = arith.constant 0 : index
    %86 = vector.load %arg6[%c0_18, %c0_19] : memref<1x128xf32, #tpu.memory_space<vmem>>, vector<1x128xf32>
    %87 = vector.shape_cast %86 : vector<1x128xf32> to vector<1x1x128xf32>
    %88 = vector.broadcast %87 : vector<1x1x128xf32> to vector<16x16x128xf32>
    %89 = arith.mulf %85, %88 : vector<16x16x128xf32>
    %c0_20 = arith.constant 0 : index
    %c0_21 = arith.constant 0 : index
    %90 = vector.load %arg7[%c0_20, %c0_21] : memref<1x128xf32, #tpu.memory_space<vmem>>, vector<1x128xf32>
    %91 = vector.shape_cast %90 : vector<1x128xf32> to vector<1x1x128xf32>
    %92 = vector.broadcast %91 : vector<1x1x128xf32> to vector<16x16x128xf32>
    %93 = arith.addf %89, %92 : vector<16x16x128xf32>
    %94 = arith.negf %93 : vector<16x16x128xf32>
    %95 = math.exp %94 : vector<16x16x128xf32>
    %cst_22 = arith.constant 1.000000e+00 : f32
    %96 = vector.broadcast %cst_22 : f32 to vector<16x16x128xf32>
    %97 = arith.addf %96, %95 : vector<16x16x128xf32>
    %98 = arith.divf %96, %97 : vector<16x16x128xf32>
    %99 = arith.mulf %93, %98 : vector<16x16x128xf32>
    %100 = arith.truncf %99 : vector<16x16x128xf32> to vector<16x16x128xbf16>
    %c0_23 = arith.constant 0 : index
    %c0_24 = arith.constant 0 : index
    %c0_25 = arith.constant 0 : index
    %c0_26 = arith.constant 0 : index
    %101 = vector.load %arg8[%c0_23, %c0_24, %c0_25, %c0_26] : memref<1x16x16x128xbf16, #tpu.memory_space<vmem>>, vector<1x16x16x128xbf16>
    %102 = vector.shape_cast %101 : vector<1x16x16x128xbf16> to vector<16x16x128xbf16>
    %103 = vector.shape_cast %100 : vector<16x16x128xbf16> to vector<1x16x16x128xbf16>
    tpu.vector_store %arg8[%c0_23, %c0_24, %c0_25, %c0_26], %103 {strides = array<i32>} : memref<1x16x16x128xbf16, #tpu.memory_space<vmem>>, vector<1x16x16x128xbf16>,
    %cst_27 = arith.constant dense<0.000000e+00> : vector<128xf32>
    %104 = vector.multi_reduction <add>, %99, %cst_27 [0, 1] : vector<16x16x128xf32> to vector<128xf32>
    %105 = vector.shape_cast %104 : vector<128xf32> to vector<1x1x128xf32>
    %c0_28 = arith.constant 0 : index
    %c0_29 = arith.constant 0 : index
    %c0_30 = arith.constant 0 : index
    %106 = vector.load %arg9[%c0_28, %c0_29, %c0_30] : memref<1x1x128xf32, #tpu.memory_space<vmem>>, vector<1x1x128xf32>
    tpu.vector_store %arg9[%c0_28, %c0_29, %c0_30], %105 {strides = array<i32>} : memref<1x1x128xf32, #tpu.memory_space<vmem>>, vector<1x1x128xf32>,
    return
  }
  func.func @transform_0(%arg0: i32, %arg1: i32) -> (i32, i32, i32, i32) {
    %c16_i32 = arith.constant 16 : i32
    %0 = arith.muli %arg1, %c16_i32 : i32
    %c1_i32 = arith.constant 1 : i32
    %1 = arith.subi %0, %c1_i32 : i32
    %c0_i32 = arith.constant 0 : i32
    %2 = arith.maxsi %1, %c0_i32 : i32
    %c0_i32_0 = arith.constant 0 : i32
    %c0_i32_1 = arith.constant 0 : i32
    %c0_i32_2 = arith.constant 0 : i32
    return %arg0, %2, %c0_i32_0, %c0_i32_1 : i32, i32, i32, i32
  }
  func.func @transform_1(%arg0: i32, %arg1: i32) -> (i32, i32, i32, i32) {
    %c0_i32 = arith.constant 0 : i32
    %c0_i32_0 = arith.constant 0 : i32
    %c0_i32_1 = arith.constant 0 : i32
    return %arg0, %arg1, %c0_i32, %c0_i32_0 : i32, i32, i32, i32
  }
  func.func @transform_2(%arg0: i32, %arg1: i32) -> (i32, i32, i32, i32) {
    %c1_i32 = arith.constant 1 : i32
    %0 = arith.addi %arg1, %c1_i32 : i32
    %c16_i32 = arith.constant 16 : i32
    %1 = arith.muli %0, %c16_i32 : i32
    %c15_i32 = arith.constant 15 : i32
    %2 = arith.minsi %1, %c15_i32 : i32
    %c0_i32 = arith.constant 0 : i32
    %c0_i32_0 = arith.constant 0 : i32
    %c0_i32_1 = arith.constant 0 : i32
    return %arg0, %2, %c0_i32, %c0_i32_0 : i32, i32, i32, i32
  }
  func.func @transform_3(%arg0: i32, %arg1: i32) -> (i32, i32, i32) {
    %c0_i32 = arith.constant 0 : i32
    %c0_i32_0 = arith.constant 0 : i32
    %c0_i32_1 = arith.constant 0 : i32
    %c0_i32_2 = arith.constant 0 : i32
    return %c0_i32, %c0_i32_0, %c0_i32_1 : i32, i32, i32
  }
  func.func @transform_4(%arg0: i32, %arg1: i32) -> (i32, i32) {
    %c0_i32 = arith.constant 0 : i32
    %c0_i32_0 = arith.constant 0 : i32
    %c0_i32_1 = arith.constant 0 : i32
    return %c0_i32, %c0_i32_0 : i32, i32
  }
  func.func @transform_5(%arg0: i32, %arg1: i32) -> (i32, i32) {
    %c0_i32 = arith.constant 0 : i32
    %c0_i32_0 = arith.constant 0 : i32
    %c0_i32_1 = arith.constant 0 : i32
    return %c0_i32, %c0_i32_0 : i32, i32
  }
  func.func @transform_6(%arg0: i32, %arg1: i32) -> (i32, i32, i32, i32) {
    %c0_i32 = arith.constant 0 : i32
    %c0_i32_0 = arith.constant 0 : i32
    %c0_i32_1 = arith.constant 0 : i32
    return %arg0, %arg1, %c0_i32, %c0_i32_0 : i32, i32, i32, i32
  }
  func.func @transform_7(%arg0: i32, %arg1: i32) -> (i32, i32, i32) {
    %c0_i32 = arith.constant 0 : i32
    %c0_i32_0 = arith.constant 0 : i32
    return %arg0, %arg1, %c0_i32 : i32, i32, i32
  }
}

module attributes {stable_mosaic.version = 11 : i64} {
  func.func @_project_kernel(%arg0: i32, %arg1: i32, %arg2: i32, %arg3: memref<1x256x128xbf16, #tpu.memory_space<vmem>>, %arg4: memref<1x1x128xbf16, #tpu.memory_space<vmem>>, %arg5: memref<128x128xbf16, #tpu.memory_space<vmem>>, %arg6: memref<1x128xf32, #tpu.memory_space<vmem>>, %arg7: memref<1x128xf32, #tpu.memory_space<vmem>>, %arg8: memref<1x256x128xbf16, #tpu.memory_space<vmem>>, %arg9: memref<1x256x128xf32, #tpu.memory_space<vmem>>) attributes {dimension_semantics = [#tpu.dimension_semantics<parallel>, #tpu.dimension_semantics<parallel>, #tpu.dimension_semantics<parallel>], iteration_bounds = array<i64: 2, 1, 1>, scalar_prefetch = 0 : i64, scratch_operands = 0 : i64, tpu.core_type = #tpu.core_type<tc>, window_params = [{transform_indices = @transform_0, window_bounds = array<i64: 1, 256, 128>}, {transform_indices = @transform_1, window_bounds = array<i64: 1, 1, 128>}, {transform_indices = @transform_2, window_bounds = array<i64: 128, 128>}, {transform_indices = @transform_3, window_bounds = array<i64: 1, 128>}, {transform_indices = @transform_4, window_bounds = array<i64: 1, 128>}, {transform_indices = @transform_5, window_bounds = array<i64: 1, 256, 128>}, {transform_indices = @transform_6, window_bounds = array<i64: 1, 256, 128>}]} {
    %c0 = arith.constant 0 : index
    %c0_0 = arith.constant 0 : index
    %c0_1 = arith.constant 0 : index
    %0 = vector.load %arg3[%c0, %c0_0, %c0_1] : memref<1x256x128xbf16, #tpu.memory_space<vmem>>, vector<1x256x128xbf16>
    %1 = vector.shape_cast %0 : vector<1x256x128xbf16> to vector<256x128xbf16>
    %c0_2 = arith.constant 0 : index
    %c0_3 = arith.constant 0 : index
    %c0_4 = arith.constant 0 : index
    %2 = vector.load %arg4[%c0_2, %c0_3, %c0_4] : memref<1x1x128xbf16, #tpu.memory_space<vmem>>, vector<1x1x128xbf16>
    %3 = vector.shape_cast %2 : vector<1x1x128xbf16> to vector<1x128xbf16>
    %4 = vector.broadcast %3 : vector<1x128xbf16> to vector<256x128xbf16>
    %5 = arith.mulf %1, %4 : vector<256x128xbf16>
    %c0_5 = arith.constant 0 : index
    %c0_6 = arith.constant 0 : index
    %6 = vector.load %arg5[%c0_5, %c0_6] : memref<128x128xbf16, #tpu.memory_space<vmem>>, vector<128x128xbf16>
    %cst = arith.constant dense<0.000000e+00> : vector<256x128xf32>
    %7 = tpu.matmul %5, %6, %cst {dimension_numbers = #tpu.dot_dimension_numbers<[1], [0], [0], [1], [0, 0, 1, 1], [], []>} : vector<256x128xbf16>, vector<128x128xbf16>, vector<256x128xf32> -> vector<256x128xf32>
    %c0_7 = arith.constant 0 : index
    %c0_8 = arith.constant 0 : index
    %8 = vector.load %arg6[%c0_7, %c0_8] : memref<1x128xf32, #tpu.memory_space<vmem>>, vector<1x128xf32>
    %9 = vector.broadcast %8 : vector<1x128xf32> to vector<256x128xf32>
    %10 = arith.mulf %7, %9 : vector<256x128xf32>
    %c0_9 = arith.constant 0 : index
    %c0_10 = arith.constant 0 : index
    %11 = vector.load %arg7[%c0_9, %c0_10] : memref<1x128xf32, #tpu.memory_space<vmem>>, vector<1x128xf32>
    %12 = vector.broadcast %11 : vector<1x128xf32> to vector<256x128xf32>
    %13 = arith.addf %10, %12 : vector<256x128xf32>
    %c0_11 = arith.constant 0 : index
    %c0_12 = arith.constant 0 : index
    %c0_13 = arith.constant 0 : index
    %14 = vector.load %arg8[%c0_11, %c0_12, %c0_13] : memref<1x256x128xbf16, #tpu.memory_space<vmem>>, vector<1x256x128xbf16>
    %15 = vector.shape_cast %14 : vector<1x256x128xbf16> to vector<256x128xbf16>
    %16 = arith.extf %15 : vector<256x128xbf16> to vector<256x128xf32>
    %17 = arith.addf %13, %16 : vector<256x128xf32>
    %c0_14 = arith.constant 0 : index
    %c0_15 = arith.constant 0 : index
    %c0_16 = arith.constant 0 : index
    %18 = vector.load %arg9[%c0_14, %c0_15, %c0_16] : memref<1x256x128xf32, #tpu.memory_space<vmem>>, vector<1x256x128xf32>
    %19 = vector.shape_cast %18 : vector<1x256x128xf32> to vector<256x128xf32>
    %20 = vector.shape_cast %17 : vector<256x128xf32> to vector<1x256x128xf32>
    tpu.vector_store %arg9[%c0_14, %c0_15, %c0_16], %20 {strides = array<i32>} : memref<1x256x128xf32, #tpu.memory_space<vmem>>, vector<1x256x128xf32>,
    return
  }
  func.func @transform_0(%arg0: i32, %arg1: i32, %arg2: i32) -> (i32, i32, i32) {
    %c0_i32 = arith.constant 0 : i32
    %c0_i32_0 = arith.constant 0 : i32
    return %arg0, %arg1, %c0_i32 : i32, i32, i32
  }
  func.func @transform_1(%arg0: i32, %arg1: i32, %arg2: i32) -> (i32, i32, i32) {
    %c0_i32 = arith.constant 0 : i32
    %c0_i32_0 = arith.constant 0 : i32
    %c0_i32_1 = arith.constant 0 : i32
    return %arg0, %c0_i32, %c0_i32_0 : i32, i32, i32
  }
  func.func @transform_2(%arg0: i32, %arg1: i32, %arg2: i32) -> (i32, i32) {
    %c0_i32 = arith.constant 0 : i32
    %c0_i32_0 = arith.constant 0 : i32
    return %c0_i32, %arg2 : i32, i32
  }
  func.func @transform_3(%arg0: i32, %arg1: i32, %arg2: i32) -> (i32, i32) {
    %c0_i32 = arith.constant 0 : i32
    %c0_i32_0 = arith.constant 0 : i32
    return %c0_i32, %arg2 : i32, i32
  }
  func.func @transform_4(%arg0: i32, %arg1: i32, %arg2: i32) -> (i32, i32) {
    %c0_i32 = arith.constant 0 : i32
    %c0_i32_0 = arith.constant 0 : i32
    return %c0_i32, %arg2 : i32, i32
  }
  func.func @transform_5(%arg0: i32, %arg1: i32, %arg2: i32) -> (i32, i32, i32) {
    %c0_i32 = arith.constant 0 : i32
    return %arg0, %arg1, %arg2 : i32, i32, i32
  }
  func.func @transform_6(%arg0: i32, %arg1: i32, %arg2: i32) -> (i32, i32, i32) {
    %c0_i32 = arith.constant 0 : i32
    return %arg0, %arg1, %arg2 : i32, i32, i32
  }
}

</mosaic_0001>

<llo_original>
// kernel: inverted_residual_block.5
$region0: #{inverted_residual_block.5}
  #allocation0 [shape = 'u32[]', space=smem, size = 0x4, offset = 0x4, fixed_abs, tag = 'smem constant byte address 0x4 - core index']
  #allocation1 [shape = 'u32[72,128]{1,0:T(1,128)}', space=vmem, size = 0x9000, scoped, tag = 'internal scratch']
  %s0 = inlined_call_operand.vmem [shape: bf16[2,256,128], index: 0, kind: input, shape index: {}]
  %s1 = inlined_call_operand.vmem [shape: bf16[2,1,128], index: 1, kind: input, shape index: {}]
  %s2 = inlined_call_operand.vmem [shape: bf16[128,128], index: 2, kind: input, shape index: {}]
  %s3 = inlined_call_operand.vmem [shape: f32[1,128], index: 3, kind: input, shape index: {}]
  %s4 = inlined_call_operand.vmem [shape: f32[1,128], index: 4, kind: input, shape index: {}]
  %s5 = inlined_call_operand.vmem [shape: bf16[2,256,128], index: 5, kind: input, shape index: {}]
  %s6 = inlined_call_operand.vmem [shape: f32[2,256,128], index: 6, kind: output, shape index: {}]
  %s7 = sld [smem:[#allocation0]]
  $region57: #{inverted_residual_block.5} parent=0
    _
  %s9 = ssub.s32 1, %s7
  %s10 = scalar_select 0, %s9, %s7
  loop: start=0, step=1, limit=4
  $region2: #{inverted_residual_block.5} parent=0 // loop_pre_header
    _
  $region3: #{inverted_residual_block.5} parent=0 // loop_header
    %s12 = sphi 0, %s16
    %p13 = scmp.ge.s32.totalorder %s12, 4
    %s19 = sphi 0, %s38
    %s20 = sphi 0, %s34
    %s21 = sphi 0, %s30
    %s22 = sphi 0, %s19
    %s23 = sphi 0, %s20
    %s24 = sphi 0, %s21
    %s25 = sphi 0, %s22
    %s26 = sphi 0, %s23
    %s27 = sphi 0, %s24
    %s43 = sphi 0, %s45
    %s46 = sphi 0, %s43
    %s47 = sphi 0, %s46
    %s63 = sphi 0, %s47
    %s69 = sphi 0, %s71
    %s72 = sphi 0, %s69
    %s73 = sphi 0, %s72
    %s89 = sphi 0, %s73
    %s95 = sphi 0, %s97
    %s98 = sphi 0, %s95
    %s99 = sphi 0, %s98
    %s115 = sphi 0, %s99
    %s121 = sphi 0, %s123
    %s124 = sphi 0, %s121
    %s125 = sphi 0, %s124
    %s141 = sphi 0, %s125
    %s147 = sphi 0, %s149
    %s150 = sphi 0, %s147
    %s151 = sphi 0, %s150
    %s167 = sphi 0, %s151
    %s177 = sphi 0, %s179
    %s180 = sphi 0, %s177
    %s181 = sphi 0, %s180
    %s197 = sphi 0, %s181
    %s207 = sphi 0, %s209
    %s210 = sphi 0, %s207
    %s211 = sphi 0, %s210
    %s227 = sphi 0, %s211
  $region4: #{inverted_residual_block.5} parent=0 // loop_header_branch
    %15 = sbr.rel (%p13) target = $region8
  $region5: #{inverted_residual_block.5} parent=0 // loop_body
    %s17 = ssub.s32 %s12, 1
    %s18 = ssub.s32 %s12, 2
    %s28 = sadd.s32 1, %s21
    %p29 = scmp.ge.s32.totalorder %s28, 1
    %s30 = scalar_select %p29, 0, %s28
    %s31 = sadd.s32 1, %s20
    %s32 = scalar_select %p29, %s31, %s20
    %p33 = scmp.ge.s32.totalorder %s32, 1
    %s34 = scalar_select %p33, 0, %s32
    %s35 = sadd.s32 1, %s19
    %s36 = scalar_select %p33, %s35, %s19
    %p37 = scmp.ge.s32.totalorder %s36, 2
    %s38 = scalar_select %p37, 0, %s36
    %s39 = ssub.s32 %s19, %s38
    %s40 = ssub.s32 %s20, %s34
    %s41 = sor.u32 %s39, %s40
    %p42 = scmp.eq.s32.totalorder %s41, 0
    %s44 = sadd.s32 %s43, 1
    %s45 = scalar_select %p42, %s43, %s44
    %p48 = pneg %p42
    %p49 = scmp.eq.s32.totalorder %s12, 1
    %p50 = por %p48, %p49
    %p51 = scmp.ne.s32.totalorder %s43, %s46
    %p52 = scmp.eq.s32.totalorder %s12, 0
    %p53 = por %p51, %p52
    %p54 = scmp.ne.s32.totalorder %s43, %s46
    %p55 = scmp.eq.s32.totalorder %s17, 1
    %p56 = por %p54, %p55
    %p57 = scmp.ne.s32.totalorder %s46, %s47
    %p58 = scmp.eq.s32.totalorder %s17, 0
    %p59 = por %p57, %p58
    %p60 = scmp.ne.s32.totalorder %s46, %s47
    %p61 = scmp.eq.s32.totalorder %s18, 1
    %p62 = por %p60, %p61
    %p64 = scmp.ne.s32.totalorder %s47, %s63
    %p65 = scmp.eq.s32.totalorder %s18, 0
    %p66 = por %p64, %p65
    %s67 = ssub.s32 %s19, %s38
    %p68 = scmp.eq.s32.totalorder %s67, 0
    %s70 = sadd.s32 %s69, 1
    %s71 = scalar_select %p68, %s69, %s70
    %p74 = pneg %p68
    %p75 = scmp.eq.s32.totalorder %s12, 1
    %p76 = por %p74, %p75
    %p77 = scmp.ne.s32.totalorder %s69, %s72
    %p78 = scmp.eq.s32.totalorder %s12, 0
    %p79 = por %p77, %p78
    %p80 = scmp.ne.s32.totalorder %s69, %s72
    %p81 = scmp.eq.s32.totalorder %s17, 1
    %p82 = por %p80, %p81
    %p83 = scmp.ne.s32.totalorder %s72, %s73
    %p84 = scmp.eq.s32.totalorder %s17, 0
    %p85 = por %p83, %p84
    %p86 = scmp.ne.s32.totalorder %s72, %s73
    %p87 = scmp.eq.s32.totalorder %s18, 1
    %p88 = por %p86, %p87
    %p90 = scmp.ne.s32.totalorder %s73, %s89
    %p91 = scmp.eq.s32.totalorder %s18, 0
    %p92 = por %p90, %p91
    %s93 = ssub.s32 %s21, %s30
    %p94 = scmp.eq.s32.totalorder %s93, 0
    %s96 = sadd.s32 %s95, 1
    %s97 = scalar_select %p94, %s95, %s96
    %p100 = pneg %p94
    %p101 = scmp.eq.s32.totalorder %s12, 1
    %p102 = por %p100, %p101
    %p103 = scmp.ne.s32.totalorder %s95, %s98
    %p104 = scmp.eq.s32.totalorder %s12, 0
    %p105 = por %p103, %p104
    %p106 = scmp.ne.s32.totalorder %s95, %s98
    %p107 = scmp.eq.s32.totalorder %s17, 1
    %p108 = por %p106, %p107
    %p109 = scmp.ne.s32.totalorder %s98, %s99
    %p110 = scmp.eq.s32.totalorder %s17, 0
    %p111 = por %p109, %p110
    %p112 = scmp.ne.s32.totalorder %s98, %s99
    %p113 = scmp.eq.s32.totalorder %s18, 1
    %p114 = por %p112, %p113
    %p116 = scmp.ne.s32.totalorder %s99, %s115
    %p117 = scmp.eq.s32.totalorder %s18, 0
    %p118 = por %p116, %p117
    %s119 = ssub.s32 %s21, %s30
    %p120 = scmp.eq.s32.totalorder %s119, 0
    %s122 = sadd.s32 %s121, 1
    %s123 = scalar_select %p120, %s121, %s122
    %p126 = pneg %p120
    %p127 = scmp.eq.s32.totalorder %s12, 1
    %p128 = por %p126, %p127
    %p129 = scmp.ne.s32.totalorder %s121, %s124
    %p130 = scmp.eq.s32.totalorder %s12, 0
    %p131 = por %p129, %p130
    %p132 = scmp.ne.s32.totalorder %s121, %s124
    %p133 = scmp.eq.s32.totalorder %s17, 1
    %p134 = por %p132, %p133
    %p135 = scmp.ne.s32.totalorder %s124, %s125
    %p136 = scmp.eq.s32.totalorder %s17, 0
    %p137 = por %p135, %p136
    %p138 = scmp.ne.s32.totalorder %s124, %s125
    %p139 = scmp.eq.s32.totalorder %s18, 1
    %p140 = por %p138, %p139
    %p142 = scmp.ne.s32.totalorder %s125, %s141
    %p143 = scmp.eq.s32.totalorder %s18, 0
    %p144 = por %p142, %p143
    %s145 = ssub.s32 %s21, %s30
    %p146 = scmp.eq.s32.totalorder %s145, 0
    %s148 = sadd.s32 %s147, 1
    %s149 = scalar_select %p146, %s147, %s148
    %p152 = pneg %p146
    %p153 = scmp.eq.s32.totalorder %s12, 1
    %p154 = por %p152, %p153
    %p155 = scmp.ne.s32.totalorder %s147, %s150
    %p156 = scmp.eq.s32.totalorder %s12, 0
    %p157 = por %p155, %p156
    %p158 = scmp.ne.s32.totalorder %s147, %s150
    %p159 = scmp.eq.s32.totalorder %s17, 1
    %p160 = por %p158, %p159
    %p161 = scmp.ne.s32.totalorder %s150, %s151
    %p162 = scmp.eq.s32.totalorder %s17, 0
    %p163 = por %p161, %p162
    %p164 = scmp.ne.s32.totalorder %s150, %s151
    %p165 = scmp.eq.s32.totalorder %s18, 1
    %p166 = por %p164, %p165
    %p168 = scmp.ne.s32.totalorder %s151, %s167
    %p169 = scmp.eq.s32.totalorder %s18, 0
    %p170 = por %p168, %p169
    %s171 = ssub.s32 %s19, %s38
    %s172 = ssub.s32 %s20, %s34
    %s173 = sor.u32 %s171, %s172
    %s174 = ssub.s32 %s21, %s30
    %s175 = sor.u32 %s173, %s174
    %p176 = scmp.eq.s32.totalorder %s175, 0
    %s178 = sadd.s32 %s177, 1
    %s179 = scalar_select %p176, %s177, %s178
    %p182 = pneg %p176
    %p183 = scmp.eq.s32.totalorder %s12, 1
    %p184 = por %p182, %p183
    %p185 = scmp.ne.s32.totalorder %s177, %s180
    %p186 = scmp.eq.s32.totalorder %s12, 0
    %p187 = por %p185, %p186
    %p188 = scmp.ne.s32.totalorder %s177, %s180
    %p189 = scmp.eq.s32.totalorder %s17, 1
    %p190 = por %p188, %p189
    %p191 = scmp.ne.s32.totalorder %s180, %s181
    %p192 = scmp.eq.s32.totalorder %s17, 0
    %p193 = por %p191, %p192
    %p194 = scmp.ne.s32.totalorder %s180, %s181
    %p195 = scmp.eq.s32.totalorder %s18, 1
    %p196 = por %p194, %p195
    %p198 = scmp.ne.s32.totalorder %s181, %s197
    %p199 = scmp.eq.s32.totalorder %s18, 0
    %p200 = por %p198, %p199
    %s201 = ssub.s32 %s19, %s38
    %s202 = ssub.s32 %s20, %s34
    %s203 = sor.u32 %s201, %s202
    %s204 = ssub.s32 %s21, %s30
    %s205 = sor.u32 %s203, %s204
    %p206 = scmp.eq.s32.totalorder %s205, 0
    %s208 = sadd.s32 %s207, 1
    %s209 = scalar_select %p206, %s207, %s208
    %p212 = pneg %p206
    %p213 = scmp.eq.s32.totalorder %s12, 1
    %p214 = por %p212, %p213
    %p215 = scmp.ne.s32.totalorder %s207, %s210
    %p216 = scmp.eq.s32.totalorder %s12, 0
    %p217 = por %p215, %p216
    %p218 = scmp.ne.s32.totalorder %s207, %s210
    %p219 = scmp.eq.s32.totalorder %s17, 1
    %p220 = por %p218, %p219
    %p221 = scmp.ne.s32.totalorder %s210, %s211
    %p222 = scmp.eq.s32.totalorder %s17, 0
    %p223 = por %p221, %p222
    %p224 = scmp.ne.s32.totalorder %s210, %s211
    %p225 = scmp.eq.s32.totalorder %s18, 1
    %p226 = por %p224, %p225
    %p228 = scmp.ne.s32.totalorder %s211, %s227
    %p229 = scmp.eq.s32.totalorder %s18, 0
    %p230 = por %p228, %p229
    %p231 = scmp.le.s32.totalorder 1, %s12
    %p232 = scmp.lt.s32.totalorder %s12, 3
    %p233 = pnand %p231, %p232
    %p234 = pneg %p233
    // Predicated region
    $region9: #{inverted_residual_block.5} parent=5 // pred_check
      _
    $region10: #{inverted_residual_block.5} parent=5 // pred_check_branch
      %236 = sbr.rel (%p233) target = $region12
    $region11: #{inverted_residual_block.5} parent=5 // pred_region
      %s237 = ssub.s32 %s12, 1
      // Predicated region
      $region13: #{inverted_residual_block.5} parent=11 // pred_check
        %p238 = pneg %p111
      $region14: #{inverted_residual_block.5} parent=11 // pred_check_branch
        %240 = sbr.rel (%p238) target = $region16
      $region15: #{inverted_residual_block.5} parent=11 // pred_region
        %p241 = scmp.lt.s32.totalorder %s24, 0
        %s242 = scalar_select %p241, %s24, 0
        %s243 = smul.addr %s242, 4
        %s244 = scalar_lea.vmem %s2, %s243
      $region16: #{inverted_residual_block.5} parent=11 // pred_fallthru
        _
      // Predicated region
      $region17: #{inverted_residual_block.5} parent=11 // pred_check
        %p245 = pneg %p137
      $region18: #{inverted_residual_block.5} parent=11 // pred_check_branch
        %247 = sbr.rel (%p245) target = $region20
      $region19: #{inverted_residual_block.5} parent=11 // pred_region
        %p248 = scmp.lt.s32.totalorder %s24, 0
        %s249 = scalar_select %p248, %s24, 0
        %s250 = scalar_lea.vmem %s3, %s249
      $region20: #{inverted_residual_block.5} parent=11 // pred_fallthru
        _
      // Predicated region
      $region21: #{inverted_residual_block.5} parent=11 // pred_check
        %p251 = pneg %p163
      $region22: #{inverted_residual_block.5} parent=11 // pred_check_branch
        %253 = sbr.rel (%p251) target = $region24
      $region23: #{inverted_residual_block.5} parent=11 // pred_region
        %p254 = scmp.lt.s32.totalorder %s24, 0
        %s255 = scalar_select %p254, %s24, 0
        %s256 = scalar_lea.vmem %s4, %s255
      $region24: #{inverted_residual_block.5} parent=11 // pred_fallthru
        _
    $region12: #{inverted_residual_block.5} parent=5 // pred_fallthru
      _
    %p257 = scmp.lt.s32.totalorder %s12, 2
    // Predicated region
    $region25: #{inverted_residual_block.5} parent=5 // pred_check
      %p258 = pneg %p257
    $region26: #{inverted_residual_block.5} parent=5 // pred_check_branch
      %260 = sbr.rel (%p258) target = $region28
    $region27: #{inverted_residual_block.5} parent=5 // pred_region
      // Predicated region
      $region29: #{inverted_residual_block.5} parent=27 // pred_check
        %p261 = pneg %p53
      $region30: #{inverted_residual_block.5} parent=27 // pred_check_branch
        %263 = sbr.rel (%p261) target = $region32
      $region31: #{inverted_residual_block.5} parent=27 // pred_region
        %s264 = smul.u32 32, %s20
        %p265 = scmp.lt.s32.totalorder %s19, 1
        %s266 = scalar_select %p265, %s19, 1
        %p267 = scmp.lt.s32.totalorder %s264, 31
        %s268 = scalar_select %p267, %s264, 31
        %s269 = smul.addr %s266, 32
        %s270 = sadd.s32 %s268, %s269
        %s271 = smul.addr %s270, 4
        %s272 = scalar_lea.vmem %s0, %s271
        %s273 = smul.u32 32, %s20
      $region32: #{inverted_residual_block.5} parent=27 // pred_fallthru
        _
      // Predicated region
      $region33: #{inverted_residual_block.5} parent=27 // pred_check
        %p274 = pneg %p79
      $region34: #{inverted_residual_block.5} parent=27 // pred_check_branch
        %276 = sbr.rel (%p274) target = $region36
      $region35: #{inverted_residual_block.5} parent=27 // pred_region
        %p277 = scmp.lt.s32.totalorder %s19, 1
        %s278 = scalar_select %p277, %s19, 1
        %s279 = scalar_lea.vmem %s1, %s278
      $region36: #{inverted_residual_block.5} parent=27 // pred_fallthru
        _
      // Predicated region
      $region37: #{inverted_residual_block.5} parent=27 // pred_check
        %p280 = pneg %p187
      $region38: #{inverted_residual_block.5} parent=27 // pred_check_branch
        %282 = sbr.rel (%p280) target = $region40
      $region39: #{inverted_residual_block.5} parent=27 // pred_region
        %s283 = smul.u32 32, %s20
        %p284 = scmp.lt.s32.totalorder %s19, 1
        %s285 = scalar_select %p284, %s19, 1
        %p286 = scmp.lt.s32.totalorder %s283, 31
        %s287 = scalar_select %p286, %s283, 31
        %p288 = scmp.lt.s32.totalorder %s21, 0
        %s289 = scalar_select %p288, %s21, 0
        %s290 = sadd.s32 %s289, %s287
        %s291 = smul.addr %s285, 32
        %s292 = sadd.s32 %s290, %s291
        %s293 = smul.addr %s292, 4
        %s294 = scalar_lea.vmem %s5, %s293
        %s295 = smul.u32 32, %s20
      $region40: #{inverted_residual_block.5} parent=27 // pred_fallthru
        _
    $region28: #{inverted_residual_block.5} parent=5 // pred_fallthru
      _
    %p296 = scmp.le.s32.totalorder 1, %s12
    %p297 = scmp.lt.s32.totalorder %s12, 3
    %p298 = pnand %p296, %p297
    %p299 = pneg %p298
    // Predicated region
    $region41: #{inverted_residual_block.5} parent=5 // pred_check
      _
    $region42: #{inverted_residual_block.5} parent=5 // pred_check_branch
      %301 = sbr.rel (%p298) target = $region44
    $region43: #{inverted_residual_block.5} parent=5 // pred_region
      %s302 = ssub.s32 %s12, 1
      %s303 = smul.u32 32, %s23
      %p304 = scmp.lt.s32.totalorder %s22, 1
      %s305 = scalar_select %p304, %s22, 1
      %p306 = scmp.lt.s32.totalorder %s303, 31
      %s307 = scalar_select %p306, %s303, 31
      %s308 = smul.addr %s305, 32
      %s309 = sadd.s32 %s307, %s308
      %s310 = smul.addr %s309, 4
      %s311 = scalar_lea.vmem %s0, %s310
      %p312 = pneg %p59
      %p313 = pneg %p56
      %p314 = scmp.lt.s32.totalorder %s22, 1
      %s315 = scalar_select %p314, %s22, 1
      %s316 = scalar_lea.vmem %s1, %s315
      %p317 = pneg %p85
      %p318 = pneg %p82
      %p319 = scmp.lt.s32.totalorder %s24, 0
      %s320 = scalar_select %p319, %s24, 0
      %s321 = smul.addr %s320, 4
      %s322 = scalar_lea.vmem %s2, %s321
      %p323 = pneg %p111
      %p324 = pneg %p108
      %p325 = scmp.lt.s32.totalorder %s24, 0
      %s326 = scalar_select %p325, %s24, 0
      %s327 = scalar_lea.vmem %s3, %s326
      %p328 = pneg %p137
      %p329 = pneg %p134
      %p330 = scmp.lt.s32.totalorder %s24, 0
      %s331 = scalar_select %p330, %s24, 0
      %s332 = scalar_lea.vmem %s4, %s331
      %p333 = pneg %p163
      %p334 = pneg %p160
      %s335 = smul.u32 32, %s23
      %p336 = scmp.lt.s32.totalorder %s22, 1
      %s337 = scalar_select %p336, %s22, 1
      %p338 = scmp.lt.s32.totalorder %s335, 31
      %s339 = scalar_select %p338, %s335, 31
      %p340 = scmp.lt.s32.totalorder %s24, 0
      %s341 = scalar_select %p340, %s24, 0
      %s342 = sadd.s32 %s341, %s339
      %s343 = smul.addr %s337, 32
      %s344 = sadd.s32 %s342, %s343
      %s345 = smul.addr %s344, 4
      %s346 = scalar_lea.vmem %s5, %s345
      %p347 = pneg %p193
      %p348 = pneg %p190
      %p349 = pneg %p223
      %p350 = pneg %p220
      %s351 = smul.u32 32, %s23
      %p352 = scmp.lt.s32.totalorder %s22, 1
      %s353 = scalar_select %p352, %s22, 1
      %p354 = scmp.lt.s32.totalorder %s351, 31
      %s355 = scalar_select %p354, %s351, 31
      %p356 = scmp.lt.s32.totalorder %s24, 0
      %s357 = scalar_select %p356, %s24, 0
      %s358 = sadd.s32 %s357, %s355
      %s359 = smul.addr %s353, 32
      %s360 = sadd.s32 %s358, %s359
      %s361 = smul.addr %s360, 8
      %s362 = scalar_lea.vmem %s6, %s361
      %s363 = smul.u32 32, %s23
      %p364 = scmp.lt.s32.totalorder %s22, 1
      %s365 = scalar_select %p364, %s22, 1
      %p366 = scmp.lt.s32.totalorder %s363, 31
      %s367 = scalar_select %p366, %s363, 31
      %s368 = smul.addr %s365, 32
      %s369 = sadd.s32 %s367, %s368
      %s370 = smul.addr %s369, 4
      %s371 = scalar_lea.vmem %s0, %s370
      %s372 = smul.u32 32, %s23
      %p373 = scmp.lt.s32.totalorder %s22, 1
      %s374 = scalar_select %p373, %s22, 1
      %s375 = scalar_lea.vmem %s1, %s374
      %p376 = scmp.lt.s32.totalorder %s24, 0
      %s377 = scalar_select %p376, %s24, 0
      %s378 = smul.addr %s377, 4
      %s379 = scalar_lea.vmem %s2, %s378
      %p380 = scmp.lt.s32.totalorder %s24, 0
      %s381 = scalar_select %p380, %s24, 0
      %s382 = scalar_lea.vmem %s3, %s381
      %p383 = scmp.lt.s32.totalorder %s24, 0
      %s384 = scalar_select %p383, %s24, 0
      %s385 = scalar_lea.vmem %s4, %s384
      %s386 = smul.u32 32, %s23
      %p387 = scmp.lt.s32.totalorder %s22, 1
      %s388 = scalar_select %p387, %s22, 1
      %p389 = scmp.lt.s32.totalorder %s386, 31
      %s390 = scalar_select %p389, %s386, 31
      %p391 = scmp.lt.s32.totalorder %s24, 0
      %s392 = scalar_select %p391, %s24, 0
      %s393 = sadd.s32 %s392, %s390
      %s394 = smul.addr %s388, 32
      %s395 = sadd.s32 %s393, %s394
      %s396 = smul.addr %s395, 4
      %s397 = scalar_lea.vmem %s5, %s396
      %s398 = smul.u32 32, %s23
      %s399 = smul.u32 32, %s23
      %p400 = scmp.lt.s32.totalorder %s22, 1
      %s401 = scalar_select %p400, %s22, 1
      %p402 = scmp.lt.s32.totalorder %s399, 31
      %s403 = scalar_select %p402, %s399, 31
      %p404 = scmp.lt.s32.totalorder %s24, 0
      %s405 = scalar_select %p404, %s24, 0
      %s406 = sadd.s32 %s405, %s403
      %s407 = smul.addr %s401, 32
      %s408 = sadd.s32 %s406, %s407
      %s409 = smul.addr %s408, 8
      %s410 = scalar_lea.vmem %s6, %s409
      %s411 = smul.u32 32, %s23
      %v412 = vld [vmem:[%s371] sm:$0xf]
      %v413 = vld [vmem:[%s371 + $0x4] sm:$0xf]
      %v414 = vld [vmem:[%s371 + $0x8] sm:$0xf]
      %v415 = vld [vmem:[%s371 + $0xc] sm:$0xf]
      %v416 = vld [vmem:[%s371 + $0x10] sm:$0xf]
      %v417 = vld [vmem:[%s371 + $0x14] sm:$0xf]
      %v418 = vld [vmem:[%s371 + $0x18] sm:$0xf]
      %v419 = vld [vmem:[%s371 + $0x1c] sm:$0xf]
      %v420 = vld [vmem:[%s371 + $0x20] sm:$0xf]
      %v421 = vld [vmem:[%s371 + $0x24] sm:$0xf]
      %v422 = vld [vmem:[%s371 + $0x28] sm:$0xf]
      %v423 = vld [vmem:[%s371 + $0x2c] sm:$0xf]
      %v424 = vld [vmem:[%s371 + $0x30] sm:$0xf]
      %v425 = vld [vmem:[%s371 + $0x34] sm:$0xf]
      %v426 = vld [vmem:[%s371 + $0x38] sm:$0xf]
      %v427 = vld [vmem:[%s371 + $0x3c] sm:$0xf]
      %v428 = vld [vmem:[%s371 + $0x40] sm:$0xf]
      %v429 = vld [vmem:[%s371 + $0x44] sm:$0xf]
      %v430 = vld [vmem:[%s371 + $0x48] sm:$0xf]
      %v431 = vld [vmem:[%s371 + $0x4c] sm:$0xf]
      %v432 = vld [vmem:[%s371 + $0x50] sm:$0xf]
      %v433 = vld [vmem:[%s371 + $0x54] sm:$0xf]
      %v434 = vld [vmem:[%s371 + $0x58] sm:$0xf]
      %v435 = vld [vmem:[%s371 + $0x5c] sm:$0xf]
      %v436 = vld [vmem:[%s371 + $0x60] sm:$0xf]
      %v437 = vld [vmem:[%s371 + $0x64] sm:$0xf]
      %v438 = vld [vmem:[%s371 + $0x68] sm:$0xf]
      %v439 = vld [vmem:[%s371 + $0x6c] sm:$0xf]
      %v440 = vld [vmem:[%s371 + $0x70] sm:$0xf]
      %v441 = vld [vmem:[%s371 + $0x74] sm:$0xf]
      %v442 = vld [vmem:[%s371 + $0x78] sm:$0xf]
      %v443 = vld [vmem:[%s371 + $0x7c] sm:$0xf]
      %v444 = vld [vmem:[%s375] sm:$0x1]
      %v446 = vpack.i.b16 %v444, %v444
      %v448 = vperm.slane %v446, 0
      %v449 = vunpack.c.l.bf16 %v412
      %v450 = vunpack.c.l.bf16 %v413
      %v451 = vunpack.c.l.bf16 %v414
      %v452 = vunpack.c.l.bf16 %v415
      %v453 = vunpack.c.l.bf16 %v416
      %v454 = vunpack.c.l.bf16 %v417
      %v455 = vunpack.c.l.bf16 %v418
      %v456 = vunpack.c.l.bf16 %v419
      %v457 = vunpack.c.l.bf16 %v420
      %v458 = vunpack.c.l.bf16 %v421
      %v459 = vunpack.c.l.bf16 %v422
      %v460 = vunpack.c.l.bf16 %v423
      %v461 = vunpack.c.l.bf16 %v424
      %v462 = vunpack.c.l.bf16 %v425
      %v463 = vunpack.c.l.bf16 %v426
      %v464 = vunpack.c.l.bf16 %v427
      %v465 = vunpack.c.l.bf16 %v428
      %v466 = vunpack.c.l.bf16 %v429
      %v467 = vunpack.c.l.bf16 %v430
      %v468 = vunpack.c.l.bf16 %v431
      %v469 = vunpack.c.l.bf16 %v432
      %v470 = vunpack.c.l.bf16 %v433
      %v471 = vunpack.c.l.bf16 %v434
      %v472 = vunpack.c.l.bf16 %v435
      %v473 = vunpack.c.l.bf16 %v436
      %v474 = vunpack.c.l.bf16 %v437
      %v475 = vunpack.c.l.bf16 %v438
      %v476 = vunpack.c.l.bf16 %v439
      %v477 = vunpack.c.l.bf16 %v440
      %v478 = vunpack.c.l.bf16 %v441
      %v479 = vunpack.c.l.bf16 %v442
      %v480 = vunpack.c.l.bf16 %v443
      %v481 = vunpack.c.l.bf16 %v448
      %v482 = vmul.f32 %v449, %v481
      %v483 = vmul.f32 %v450, %v481
      %v484 = vmul.f32 %v451, %v481
      %v485 = vmul.f32 %v452, %v481
      %v486 = vmul.f32 %v453, %v481
      %v487 = vmul.f32 %v454, %v481
      %v488 = vmul.f32 %v455, %v481
      %v489 = vmul.f32 %v456, %v481
      %v490 = vmul.f32 %v457, %v481
      %v491 = vmul.f32 %v458, %v481
      %v492 = vmul.f32 %v459, %v481
      %v493 = vmul.f32 %v460, %v481
      %v494 = vmul.f32 %v461, %v481
      %v495 = vmul.f32 %v462, %v481
      %v496 = vmul.f32 %v463, %v481
      %v497 = vmul.f32 %v464, %v481
      %v498 = vmul.f32 %v465, %v481
      %v499 = vmul.f32 %v466, %v481
      %v500 = vmul.f32 %v467, %v481
      %v501 = vmul.f32 %v468, %v481
      %v502 = vmul.f32 %v469, %v481
      %v503 = vmul.f32 %v470, %v481
      %v504 = vmul.f32 %v471, %v481
      %v505 = vmul.f32 %v472, %v481
      %v506 = vmul.f32 %v473, %v481
      %v507 = vmul.f32 %v474, %v481
      %v508 = vmul.f32 %v475, %v481
      %v509 = vmul.f32 %v476, %v481
      %v510 = vmul.f32 %v477, %v481
      %v511 = vmul.f32 %v478, %v481
      %v512 = vmul.f32 %v479, %v481
      %v513 = vmul.f32 %v480, %v481
      %v514 = vpack.c.bf16 %v483, %v482
      %v515 = vpack.c.bf16 %v485, %v484
      %v516 = vpack.c.bf16 %v487, %v486
      %v517 = vpack.c.bf16 %v489, %v488
      %v518 = vpack.c.bf16 %v491, %v490
      %v519 = vpack.c.bf16 %v493, %v492
      %v520 = vpack.c.bf16 %v495, %v494
      %v521 = vpack.c.bf16 %v497, %v496
      %v522 = vpack.c.bf16 %v499, %v498
      %v523 = vpack.c.bf16 %v501, %v500
      %v524 = vpack.c.bf16 %v503, %v502
      %v525 = vpack.c.bf16 %v505, %v504
      %v526 = vpack.c.bf16 %v507, %v506
      %v527 = vpack.c.bf16 %v509, %v508
      %v528 = vpack.c.bf16 %v511, %v510
      %v529 = vpack.c.bf16 %v513, %v512
      %v530 = vld [vmem:[%s379] sm:$0xf]
      %v531 = vld [vmem:[%s379 + $0x4] sm:$0xf]
      %v532 = vld [vmem:[%s379 + $0x8] sm:$0xf]
      %v533 = vld [vmem:[%s379 + $0xc] sm:$0xf]
      %v534 = vld [vmem:[%s379 + $0x10] sm:$0xf]
      %v535 = vld [vmem:[%s379 + $0x14] sm:$0xf]
      %v536 = vld [vmem:[%s379 + $0x18] sm:$0xf]
      %v537 = vld [vmem:[%s379 + $0x1c] sm:$0xf]
      %v538 = vld [vmem:[%s379 + $0x20] sm:$0xf]
      %v539 = vld [vmem:[%s379 + $0x24] sm:$0xf]
      %v540 = vld [vmem:[%s379 + $0x28] sm:$0xf]
      %v541 = vld [vmem:[%s379 + $0x2c] sm:$0xf]
      %v542 = vld [vmem:[%s379 + $0x30] sm:$0xf]
      %v543 = vld [vmem:[%s379 + $0x34] sm:$0xf]
      %v544 = vld [vmem:[%s379 + $0x38] sm:$0xf]
      %v545 = vld [vmem:[%s379 + $0x3c] sm:$0xf]
      %v562 = vunpack.c.l.b16 %v530
      %v563 = vunpack.c.l.b16 %v531
      %v564 = vunpack.c.l.b16 %v532
      %v565 = vunpack.c.l.b16 %v533
      %v566 = vunpack.c.l.b16 %v534
      %v567 = vunpack.c.l.b16 %v535
      %v568 = vunpack.c.l.b16 %v536
      %v569 = vunpack.c.l.b16 %v537
      %v570 = vunpack.c.l.b16 %v538
      %v571 = vunpack.c.l.b16 %v539
      %v572 = vunpack.c.l.b16 %v540
      %v573 = vunpack.c.l.b16 %v541
      %v574 = vunpack.c.l.b16 %v542
      %v575 = vunpack.c.l.b16 %v543
      %v576 = vunpack.c.l.b16 %v544
      %v577 = vunpack.c.l.b16 %v545
      %v578 = vpack.c.b16 %v563, %v562
      %v579 = vpack.c.b16 %v565, %v564
      %v580 = vpack.c.b16 %v567, %v566
      %v581 = vpack.c.b16 %v569, %v568
      %v582 = vpack.c.b16 %v571, %v570
      %v583 = vpack.c.b16 %v573, %v572
      %v584 = vpack.c.b16 %v575, %v574
      %v585 = vpack.c.b16 %v577, %v576
      %594 = vmatpush.bf16.msra.mxu0 %v585
      %595 = vmatpush.bf16.msra.mxu0 %v584
      %596 = vmatpush.bf16.msra.mxu0 %v583
      %597 = vmatpush.bf16.msra.mxu0 %v582
      %598 = vmatpush.bf16.msra.mxu0 %v581
      %599 = vmatpush.bf16.msra.mxu0 %v580
      %600 = vmatpush.bf16.msra.mxu0 %v579
      %601 = vmatpush.bf16.msra.mxu0 %v578
      %602 = vmatmul.bf16.gmra.mxu0 %v514
      %v603 = vpop.f32.mrf.mxu0
      %v604 = vadd.f32 0.0, %v603
      %v605 = vpop.f32.mrf.mxu0
      %v606 = vadd.f32 0.0, %v605
      %607 = vmatmul.bf16.gmra.mxu0 %v515
      %v608 = vpop.f32.mrf.mxu0
      %v609 = vadd.f32 0.0, %v608
      %v610 = vpop.f32.mrf.mxu0
      %v611 = vadd.f32 0.0, %v610
      %612 = vmatmul.bf16.gmra.mxu0 %v516
      %v613 = vpop.f32.mrf.mxu0
      %v614 = vadd.f32 0.0, %v613
      %v615 = vpop.f32.mrf.mxu0
      %v616 = vadd.f32 0.0, %v615
      %617 = vmatmul.bf16.gmra.mxu0 %v517
      %v618 = vpop.f32.mrf.mxu0
      %v619 = vadd.f32 0.0, %v618
      %v620 = vpop.f32.mrf.mxu0
      %v621 = vadd.f32 0.0, %v620
      %622 = vmatmul.bf16.gmra.mxu0 %v518
      %v623 = vpop.f32.mrf.mxu0
      %v624 = vadd.f32 0.0, %v623
      %v625 = vpop.f32.mrf.mxu0
      %v626 = vadd.f32 0.0, %v625
      %627 = vmatmul.bf16.gmra.mxu0 %v519
      %v628 = vpop.f32.mrf.mxu0
      %v629 = vadd.f32 0.0, %v628
      %v630 = vpop.f32.mrf.mxu0
      %v631 = vadd.f32 0.0, %v630
      %632 = vmatmul.bf16.gmra.mxu0 %v520
      %v633 = vpop.f32.mrf.mxu0
      %v634 = vadd.f32 0.0, %v633
      %v635 = vpop.f32.mrf.mxu0
      %v636 = vadd.f32 0.0, %v635
      %637 = vmatmul.bf16.gmra.mxu0 %v521
      %v638 = vpop.f32.mrf.mxu0
      %v639 = vadd.f32 0.0, %v638
      %v640 = vpop.f32.mrf.mxu0
      %v641 = vadd.f32 0.0, %v640
      %642 = vmatmul.bf16.gmra.mxu0 %v522
      %v643 = vpop.f32.mrf.mxu0
      %v644 = vadd.f32 0.0, %v643
      %v645 = vpop.f32.mrf.mxu0
      %v646 = vadd.f32 0.0, %v645
      %647 = vmatmul.bf16.gmra.mxu0 %v523
      %v648 = vpop.f32.mrf.mxu0
      %v649 = vadd.f32 0.0, %v648
      %v650 = vpop.f32.mrf.mxu0
      %v651 = vadd.f32 0.0, %v650
      %652 = vmatmul.bf16.gmra.mxu0 %v524
      %v653 = vpop.f32.mrf.mxu0
      %v654 = vadd.f32 0.0, %v653
      %v655 = vpop.f32.mrf.mxu0
      %v656 = vadd.f32 0.0, %v655
      %657 = vmatmul.bf16.gmra.mxu0 %v525
      %v658 = vpop.f32.mrf.mxu0
      %v659 = vadd.f32 0.0, %v658
      %v660 = vpop.f32.mrf.mxu0
      %v661 = vadd.f32 0.0, %v660
      %662 = vmatmul.bf16.gmra.mxu0 %v526
      %v663 = vpop.f32.mrf.mxu0
      %v664 = vadd.f32 0.0, %v663
      %v665 = vpop.f32.mrf.mxu0
      %v666 = vadd.f32 0.0, %v665
      %667 = vmatmul.bf16.gmra.mxu0 %v527
      %v668 = vpop.f32.mrf.mxu0
      %v669 = vadd.f32 0.0, %v668
      %v670 = vpop.f32.mrf.mxu0
      %v671 = vadd.f32 0.0, %v670
      %672 = vmatmul.bf16.gmra.mxu0 %v528
      %v673 = vpop.f32.mrf.mxu0
      %v674 = vadd.f32 0.0, %v673
      %v675 = vpop.f32.mrf.mxu0
      %v676 = vadd.f32 0.0, %v675
      %677 = vmatmul.bf16.gmra.mxu0 %v529
      %v678 = vpop.f32.mrf.mxu0
      %v679 = vadd.f32 0.0, %v678
      %v680 = vpop.f32.mrf.mxu0
      %v681 = vadd.f32 0.0, %v680
      %682 = vdwg.mxu0
      %v683 = vld [vmem:[%s382] sm:$0x1]
      %v685 = vperm.slane %v683, 0
      %v687 = vmul.f32 %v604, %v685
      %v688 = vmul.f32 %v606, %v685
      %v689 = vmul.f32 %v609, %v685
      %v690 = vmul.f32 %v611, %v685
      %v691 = vmul.f32 %v614, %v685
      %v692 = vmul.f32 %v616, %v685
      %v693 = vmul.f32 %v619, %v685
      %v694 = vmul.f32 %v621, %v685
      %v695 = vmul.f32 %v624, %v685
      %v696 = vmul.f32 %v626, %v685
      %v697 = vmul.f32 %v629, %v685
      %v698 = vmul.f32 %v631, %v685
      %v699 = vmul.f32 %v634, %v685
      %v700 = vmul.f32 %v636, %v685
      %v701 = vmul.f32 %v639, %v685
      %v702 = vmul.f32 %v641, %v685
      %v703 = vmul.f32 %v644, %v685
      %v704 = vmul.f32 %v646, %v685
      %v705 = vmul.f32 %v649, %v685
      %v706 = vmul.f32 %v651, %v685
      %v707 = vmul.f32 %v654, %v685
      %v708 = vmul.f32 %v656, %v685
      %v709 = vmul.f32 %v659, %v685
      %v710 = vmul.f32 %v661, %v685
      %v711 = vmul.f32 %v664, %v685
      %v712 = vmul.f32 %v666, %v685
      %v713 = vmul.f32 %v669, %v685
      %v714 = vmul.f32 %v671, %v685
      %v715 = vmul.f32 %v674, %v685
      %v716 = vmul.f32 %v676, %v685
      %v717 = vmul.f32 %v679, %v685
      %v718 = vmul.f32 %v681, %v685
      %v719 = vld [vmem:[%s385] sm:$0x1]
      %v721 = vperm.slane %v719, 0
      %v723 = vadd.f32 %v687, %v721
      %v724 = vadd.f32 %v688, %v721
      %v725 = vadd.f32 %v689, %v721
      %v726 = vadd.f32 %v690, %v721
      %v727 = vadd.f32 %v691, %v721
      %v728 = vadd.f32 %v692, %v721
      %v729 = vadd.f32 %v693, %v721
      %v730 = vadd.f32 %v694, %v721
      %v731 = vadd.f32 %v695, %v721
      %v732 = vadd.f32 %v696, %v721
      %v733 = vadd.f32 %v697, %v721
      %v734 = vadd.f32 %v698, %v721
      %v735 = vadd.f32 %v699, %v721
      %v736 = vadd.f32 %v700, %v721
      %v737 = vadd.f32 %v701, %v721
      %v738 = vadd.f32 %v702, %v721
      %v739 = vadd.f32 %v703, %v721
      %v740 = vadd.f32 %v704, %v721
      %v741 = vadd.f32 %v705, %v721
      %v742 = vadd.f32 %v706, %v721
      %v743 = vadd.f32 %v707, %v721
      %v744 = vadd.f32 %v708, %v721
      %v745 = vadd.f32 %v709, %v721
      %v746 = vadd.f32 %v710, %v721
      %v747 = vadd.f32 %v711, %v721
      %v748 = vadd.f32 %v712, %v721
      %v749 = vadd.f32 %v713, %v721
      %v750 = vadd.f32 %v714, %v721
      %v751 = vadd.f32 %v715, %v721
      %v752 = vadd.f32 %v716, %v721
      %v753 = vadd.f32 %v717, %v721
      %v754 = vadd.f32 %v718, %v721
      %v755 = vld [vmem:[%s397] sm:$0xf]
      %v756 = vld [vmem:[%s397 + $0x4] sm:$0xf]
      %v757 = vld [vmem:[%s397 + $0x8] sm:$0xf]
      %v758 = vld [vmem:[%s397 + $0xc] sm:$0xf]
      %v759 = vld [vmem:[%s397 + $0x10] sm:$0xf]
      %v760 = vld [vmem:[%s397 + $0x14] sm:$0xf]
      %v761 = vld [vmem:[%s397 + $0x18] sm:$0xf]
      %v762 = vld [vmem:[%s397 + $0x1c] sm:$0xf]
      %v763 = vld [vmem:[%s397 + $0x20] sm:$0xf]
      %v764 = vld [vmem:[%s397 + $0x24] sm:$0xf]
      %v765 = vld [vmem:[%s397 + $0x28] sm:$0xf]
      %v766 = vld [vmem:[%s397 + $0x2c] sm:$0xf]
      %v767 = vld [vmem:[%s397 + $0x30] sm:$0xf]
      %v768 = vld [vmem:[%s397 + $0x34] sm:$0xf]
      %v769 = vld [vmem:[%s397 + $0x38] sm:$0xf]
      %v770 = vld [vmem:[%s397 + $0x3c] sm:$0xf]
      %v771 = vld [vmem:[%s397 + $0x40] sm:$0xf]
      %v772 = vld [vmem:[%s397 + $0x44] sm:$0xf]
      %v773 = vld [vmem:[%s397 + $0x48] sm:$0xf]
      %v774 = vld [vmem:[%s397 + $0x4c] sm:$0xf]
      %v775 = vld [vmem:[%s397 + $0x50] sm:$0xf]
      %v776 = vld [vmem:[%s397 + $0x54] sm:$0xf]
      %v777 = vld [vmem:[%s397 + $0x58] sm:$0xf]
      %v778 = vld [vmem:[%s397 + $0x5c] sm:$0xf]
      %v779 = vld [vmem:[%s397 + $0x60] sm:$0xf]
      %v780 = vld [vmem:[%s397 + $0x64] sm:$0xf]
      %v781 = vld [vmem:[%s397 + $0x68] sm:$0xf]
      %v782 = vld [vmem:[%s397 + $0x6c] sm:$0xf]
      %v783 = vld [vmem:[%s397 + $0x70] sm:$0xf]
      %v784 = vld [vmem:[%s397 + $0x74] sm:$0xf]
      %v785 = vld [vmem:[%s397 + $0x78] sm:$0xf]
      %v786 = vld [vmem:[%s397 + $0x7c] sm:$0xf]
      %v787 = vunpack.c.l.bf16 %v755
      %v788 = vunpack.c.l.bf16 %v756
      %v789 = vunpack.c.l.bf16 %v757
      %v790 = vunpack.c.l.bf16 %v758
      %v791 = vunpack.c.l.bf16 %v759
      %v792 = vunpack.c.l.bf16 %v760
      %v793 = vunpack.c.l.bf16 %v761
      %v794 = vunpack.c.l.bf16 %v762
      %v795 = vunpack.c.l.bf16 %v763
      %v796 = vunpack.c.l.bf16 %v764
      %v797 = vunpack.c.l.bf16 %v765
      %v798 = vunpack.c.l.bf16 %v766
      %v799 = vunpack.c.l.bf16 %v767
      %v800 = vunpack.c.l.bf16 %v768
      %v801 = vunpack.c.l.bf16 %v769
      %v802 = vunpack.c.l.bf16 %v770
      %v803 = vunpack.c.l.bf16 %v771
      %v804 = vunpack.c.l.bf16 %v772
      %v805 = vunpack.c.l.bf16 %v773
      %v806 = vunpack.c.l.bf16 %v774
      %v807 = vunpack.c.l.bf16 %v775
      %v808 = vunpack.c.l.bf16 %v776
      %v809 = vunpack.c.l.bf16 %v777
      %v810 = vunpack.c.l.bf16 %v778
      %v811 = vunpack.c.l.bf16 %v779
      %v812 = vunpack.c.l.bf16 %v780
      %v813 = vunpack.c.l.bf16 %v781
      %v814 = vunpack.c.l.bf16 %v782
      %v815 = vunpack.c.l.bf16 %v783
      %v816 = vunpack.c.l.bf16 %v784
      %v817 = vunpack.c.l.bf16 %v785
      %v818 = vunpack.c.l.bf16 %v786
      %v819 = vadd.f32 %v723, %v787
      %v820 = vadd.f32 %v724, %v788
      %v821 = vadd.f32 %v725, %v789
      %v822 = vadd.f32 %v726, %v790
      %v823 = vadd.f32 %v727, %v791
      %v824 = vadd.f32 %v728, %v792
      %v825 = vadd.f32 %v729, %v793
      %v826 = vadd.f32 %v730, %v794
      %v827 = vadd.f32 %v731, %v795
      %v828 = vadd.f32 %v732, %v796
      %v829 = vadd.f32 %v733, %v797
      %v830 = vadd.f32 %v734, %v798
      %v831 = vadd.f32 %v735, %v799
      %v832 = vadd.f32 %v736, %v800
      %v833 = vadd.f32 %v737, %v801
      %v834 = vadd.f32 %v738, %v802
      %v835 = vadd.f32 %v739, %v803
      %v836 = vadd.f32 %v740, %v804
      %v837 = vadd.f32 %v741, %v805
      %v838 = vadd.f32 %v742, %v806
      %v839 = vadd.f32 %v743, %v807
      %v840 = vadd.f32 %v744, %v808
      %v841 = vadd.f32 %v745, %v809
      %v842 = vadd.f32 %v746, %v810
      %v843 = vadd.f32 %v747, %v811
      %v844 = vadd.f32 %v748, %v812
      %v845 = vadd.f32 %v749, %v813
      %v846 = vadd.f32 %v750, %v814
      %v847 = vadd.f32 %v751, %v815
      %v848 = vadd.f32 %v752, %v816
      %v849 = vadd.f32 %v753, %v817
      %v850 = vadd.f32 %v754, %v818
      %851 = vst [vmem:[%s410] sm:$0xff] %v819
      %852 = vst [vmem:[%s410 + $0x8] sm:$0xff] %v820
      %853 = vst [vmem:[%s410 + $0x10] sm:$0xff] %v821
      %854 = vst [vmem:[%s410 + $0x18] sm:$0xff] %v822
      %855 = vst [vmem:[%s410 + $0x20] sm:$0xff] %v823
      %856 = vst [vmem:[%s410 + $0x28] sm:$0xff] %v824
      %857 = vst [vmem:[%s410 + $0x30] sm:$0xff] %v825
      %858 = vst [vmem:[%s410 + $0x38] sm:$0xff] %v826
      %859 = vst [vmem:[%s410 + $0x40] sm:$0xff] %v827
      %860 = vst [vmem:[%s410 + $0x48] sm:$0xff] %v828
      %861 = vst [vmem:[%s410 + $0x50] sm:$0xff] %v829
      %862 = vst [vmem:[%s410 + $0x58] sm:$0xff] %v830
      %863 = vst [vmem:[%s410 + $0x60] sm:$0xff] %v831
      %864 = vst [vmem:[%s410 + $0x68] sm:$0xff] %v832
      %865 = vst [vmem:[%s410 + $0x70] sm:$0xff] %v833
      %866 = vst [vmem:[%s410 + $0x78] sm:$0xff] %v834
      %867 = vst [vmem:[%s410 + $0x80] sm:$0xff] %v835
      %868 = vst [vmem:[%s410 + $0x88] sm:$0xff] %v836
      %869 = vst [vmem:[%s410 + $0x90] sm:$0xff] %v837
      %870 = vst [vmem:[%s410 + $0x98] sm:$0xff] %v838
      %871 = vst [vmem:[%s410 + $0xa0] sm:$0xff] %v839
      %872 = vst [vmem:[%s410 + $0xa8] sm:$0xff] %v840
      %873 = vst [vmem:[%s410 + $0xb0] sm:$0xff] %v841
      %874 = vst [vmem:[%s410 + $0xb8] sm:$0xff] %v842
      %875 = vst [vmem:[%s410 + $0xc0] sm:$0xff] %v843
      %876 = vst [vmem:[%s410 + $0xc8] sm:$0xff] %v844
      %877 = vst [vmem:[%s410 + $0xd0] sm:$0xff] %v845
      %878 = vst [vmem:[%s410 + $0xd8] sm:$0xff] %v846
      %879 = vst [vmem:[%s410 + $0xe0] sm:$0xff] %v847
      %880 = vst [vmem:[%s410 + $0xe8] sm:$0xff] %v848
      %881 = vst [vmem:[%s410 + $0xf0] sm:$0xff] %v849
      %882 = vst [vmem:[%s410 + $0xf8] sm:$0xff] %v850
      %s883 = smul.u32 32, %s23
      %p884 = scmp.lt.s32.totalorder %s22, 1
      %s885 = scalar_select %p884, %s22, 1
      %p886 = scmp.lt.s32.totalorder %s883, 31
      %s887 = scalar_select %p886, %s883, 31
      %p888 = scmp.lt.s32.totalorder %s24, 0
      %s889 = scalar_select %p888, %s24, 0
      %s890 = sadd.s32 %s889, %s887
      %s891 = smul.addr %s885, 32
      %s892 = sadd.s32 %s890, %s891
      %s893 = smul.addr %s892, 8
      %s894 = scalar_lea.vmem %s6, %s893
      // Predicated region
      $region45: #{inverted_residual_block.5} parent=43 // pred_check
        %p895 = pneg %p220
      $region46: #{inverted_residual_block.5} parent=43 // pred_check_branch
        %897 = sbr.rel (%p895) target = $region48
      $region47: #{inverted_residual_block.5} parent=43 // pred_region
        %s898 = smul.u32 32, %s23
      $region48: #{inverted_residual_block.5} parent=43 // pred_fallthru
        _
    $region44: #{inverted_residual_block.5} parent=5 // pred_fallthru
      _
    %p899 = scmp.le.s32.totalorder 2, %s12
    // Predicated region
    $region49: #{inverted_residual_block.5} parent=5 // pred_check
      %p900 = pneg %p899
    $region50: #{inverted_residual_block.5} parent=5 // pred_check_branch
      %902 = sbr.rel (%p900) target = $region52
    $region51: #{inverted_residual_block.5} parent=5 // pred_region
      %s903 = ssub.s32 %s12, 2
      // Predicated region
      $region53: #{inverted_residual_block.5} parent=51 // pred_check
        %p904 = pneg %p226
      $region54: #{inverted_residual_block.5} parent=51 // pred_check_branch
        %906 = sbr.rel (%p904) target = $region56
      $region55: #{inverted_residual_block.5} parent=51 // pred_region
        %s907 = smul.u32 32, %s26
        %p908 = scmp.lt.s32.totalorder %s25, 1
        %s909 = scalar_select %p908, %s25, 1
        %p910 = scmp.lt.s32.totalorder %s907, 31
        %s911 = scalar_select %p910, %s907, 31
        %p912 = scmp.lt.s32.totalorder %s27, 0
        %s913 = scalar_select %p912, %s27, 0
        %s914 = sadd.s32 %s913, %s911
        %s915 = smul.addr %s909, 32
        %s916 = sadd.s32 %s914, %s915
        %s917 = smul.addr %s916, 8
        %s918 = scalar_lea.vmem %s6, %s917
      $region56: #{inverted_residual_block.5} parent=51 // pred_fallthru
        _
    $region52: #{inverted_residual_block.5} parent=5 // pred_fallthru
      _
  $region6: #{inverted_residual_block.5} parent=0 // loop_footer
    %s16 = sadd.s32 1, %s12
  $region7: #{inverted_residual_block.5} parent=0 // loop_footer_branch
    %11 = sbr.rel target = $region3
  $region8: #{inverted_residual_block.5} parent=0 // loop_exit
    _

// kernel: inverted_residual_block.3
$region0: #{inverted_residual_block.3}
  #allocation0 [shape = 'u32[]', space=smem, size = 0x4, offset = 0x4, fixed_abs, tag = 'smem constant byte address 0x4 - core index']
  #allocation1 [shape = 'u32[72,128]{1,0:T(1,128)}', space=vmem, size = 0x9000, scoped, tag = 'internal scratch']
  %s0 = inlined_call_operand.vmem [shape: bf16[512,4], index: 0, kind: input, shape index: {}]
  %s1 = inlined_call_operand.vmem [shape: bf16[4,128], index: 1, kind: input, shape index: {}]
  %s2 = inlined_call_operand.vmem [shape: f32[1,128], index: 2, kind: input, shape index: {}]
  %s3 = inlined_call_operand.vmem [shape: f32[1,128], index: 3, kind: input, shape index: {}]
  %s4 = inlined_call_operand.vmem [shape: bf16[512,128], index: 4, kind: output, shape index: {}]
  %s5 = sld [smem:[#allocation0]]
  $region26: #{inverted_residual_block.3} parent=0
    _
  %s7 = ssub.s32 1, %s5
  %s8 = scalar_select 0, %s7, %s5
  // Predicated region
  $region2: #{inverted_residual_block.3} parent=0 // pred_check
    _
  $region3: #{inverted_residual_block.3} parent=0 // pred_check_branch
    %10 = sbr.rel (0) target = $region5
  $region4: #{inverted_residual_block.3} parent=0 // pred_region
    _
  $region5: #{inverted_residual_block.3} parent=0 // pred_fallthru
    _
  // Predicated region
  $region6: #{inverted_residual_block.3} parent=0 // pred_check
    _
  $region7: #{inverted_residual_block.3} parent=0 // pred_check_branch
    %12 = sbr.rel (0) target = $region9
  $region8: #{inverted_residual_block.3} parent=0 // pred_region
    _
  $region9: #{inverted_residual_block.3} parent=0 // pred_fallthru
    _
  // Predicated region
  $region10: #{inverted_residual_block.3} parent=0 // pred_check
    _
  $region11: #{inverted_residual_block.3} parent=0 // pred_check_branch
    %14 = sbr.rel (0) target = $region13
  $region12: #{inverted_residual_block.3} parent=0 // pred_region
    _
  $region13: #{inverted_residual_block.3} parent=0 // pred_fallthru
    _
  // Predicated region
  $region14: #{inverted_residual_block.3} parent=0 // pred_check
    _
  $region15: #{inverted_residual_block.3} parent=0 // pred_check_branch
    %16 = sbr.rel (0) target = $region17
  $region16: #{inverted_residual_block.3} parent=0 // pred_region
    _
  $region17: #{inverted_residual_block.3} parent=0 // pred_fallthru
    _
  %v18 = vld [vmem:[%s0] sm:$0xf]
  %v19 = vld [vmem:[%s0 + $0x4] sm:$0xf]
  %v20 = vld [vmem:[%s0 + $0x8] sm:$0xf]
  %v21 = vld [vmem:[%s0 + $0xc] sm:$0xf]
  %v22 = vld [vmem:[%s0 + $0x10] sm:$0xf]
  %v23 = vld [vmem:[%s0 + $0x14] sm:$0xf]
  %v24 = vld [vmem:[%s0 + $0x18] sm:$0xf]
  %v25 = vld [vmem:[%s0 + $0x1c] sm:$0xf]
  %v26 = vld [vmem:[%s0 + $0x20] sm:$0xf]
  %v27 = vld [vmem:[%s0 + $0x24] sm:$0xf]
  %v28 = vld [vmem:[%s0 + $0x28] sm:$0xf]
  %v29 = vld [vmem:[%s0 + $0x2c] sm:$0xf]
  %v30 = vld [vmem:[%s0 + $0x30] sm:$0xf]
  %v31 = vld [vmem:[%s0 + $0x34] sm:$0xf]
  %v32 = vld [vmem:[%s0 + $0x38] sm:$0xf]
  %v33 = vld [vmem:[%s0 + $0x3c] sm:$0xf]
  %v34 = vld [vmem:[%s0 + $0x40] sm:$0xf]
  %v35 = vld [vmem:[%s0 + $0x44] sm:$0xf]
  %v36 = vld [vmem:[%s0 + $0x48] sm:$0xf]
  %v37 = vld [vmem:[%s0 + $0x4c] sm:$0xf]
  %v38 = vld [vmem:[%s0 + $0x50] sm:$0xf]
  %v39 = vld [vmem:[%s0 + $0x54] sm:$0xf]
  %v40 = vld [vmem:[%s0 + $0x58] sm:$0xf]
  %v41 = vld [vmem:[%s0 + $0x5c] sm:$0xf]
  %v42 = vld [vmem:[%s0 + $0x60] sm:$0xf]
  %v43 = vld [vmem:[%s0 + $0x64] sm:$0xf]
  %v44 = vld [vmem:[%s0 + $0x68] sm:$0xf]
  %v45 = vld [vmem:[%s0 + $0x6c] sm:$0xf]
  %v46 = vld [vmem:[%s0 + $0x70] sm:$0xf]
  %v47 = vld [vmem:[%s0 + $0x74] sm:$0xf]
  %v48 = vld [vmem:[%s0 + $0x78] sm:$0xf]
  %v49 = vld [vmem:[%s0 + $0x7c] sm:$0xf]
  %v50 = vld [vmem:[%s0 + $0x80] sm:$0xf]
  %v51 = vld [vmem:[%s0 + $0x84] sm:$0xf]
  %v52 = vld [vmem:[%s0 + $0x88] sm:$0xf]
  %v53 = vld [vmem:[%s0 + $0x8c] sm:$0xf]
  %v54 = vld [vmem:[%s0 + $0x90] sm:$0xf]
  %v55 = vld [vmem:[%s0 + $0x94] sm:$0xf]
  %v56 = vld [vmem:[%s0 + $0x98] sm:$0xf]
  %v57 = vld [vmem:[%s0 + $0x9c] sm:$0xf]
  %v58 = vld [vmem:[%s0 + $0xa0] sm:$0xf]
  %v59 = vld [vmem:[%s0 + $0xa4] sm:$0xf]
  %v60 = vld [vmem:[%s0 + $0xa8] sm:$0xf]
  %v61 = vld [vmem:[%s0 + $0xac] sm:$0xf]
  %v62 = vld [vmem:[%s0 + $0xb0] sm:$0xf]
  %v63 = vld [vmem:[%s0 + $0xb4] sm:$0xf]
  %v64 = vld [vmem:[%s0 + $0xb8] sm:$0xf]
  %v65 = vld [vmem:[%s0 + $0xbc] sm:$0xf]
  %v66 = vld [vmem:[%s0 + $0xc0] sm:$0xf]
  %v67 = vld [vmem:[%s0 + $0xc4] sm:$0xf]
  %v68 = vld [vmem:[%s0 + $0xc8] sm:$0xf]
  %v69 = vld [vmem:[%s0 + $0xcc] sm:$0xf]
  %v70 = vld [vmem:[%s0 + $0xd0] sm:$0xf]
  %v71 = vld [vmem:[%s0 + $0xd4] sm:$0xf]
  %v72 = vld [vmem:[%s0 + $0xd8] sm:$0xf]
  %v73 = vld [vmem:[%s0 + $0xdc] sm:$0xf]
  %v74 = vld [vmem:[%s0 + $0xe0] sm:$0xf]
  %v75 = vld [vmem:[%s0 + $0xe4] sm:$0xf]
  %v76 = vld [vmem:[%s0 + $0xe8] sm:$0xf]
  %v77 = vld [vmem:[%s0 + $0xec] sm:$0xf]
  %v78 = vld [vmem:[%s0 + $0xf0] sm:$0xf]
  %v79 = vld [vmem:[%s0 + $0xf4] sm:$0xf]
  %v80 = vld [vmem:[%s0 + $0xf8] sm:$0xf]
  %v81 = vld [vmem:[%s0 + $0xfc] sm:$0xf]
  %v82 = vld [vmem:[%s1] sm:$0x3]
  %v147 = vunpack.c.l.b16 %v18
  %v148 = vunpack.c.l.b16 %v19
  %v149 = vunpack.c.l.b16 %v20
  %v150 = vunpack.c.l.b16 %v21
  %v151 = vunpack.c.l.b16 %v22
  %v152 = vunpack.c.l.b16 %v23
  %v153 = vunpack.c.l.b16 %v24
  %v154 = vunpack.c.l.b16 %v25
  %v155 = vunpack.c.l.b16 %v26
  %v156 = vunpack.c.l.b16 %v27
  %v157 = vunpack.c.l.b16 %v28
  %v158 = vunpack.c.l.b16 %v29
  %v159 = vunpack.c.l.b16 %v30
  %v160 = vunpack.c.l.b16 %v31
  %v161 = vunpack.c.l.b16 %v32
  %v162 = vunpack.c.l.b16 %v33
  %v163 = vunpack.c.l.b16 %v34
  %v164 = vunpack.c.l.b16 %v35
  %v165 = vunpack.c.l.b16 %v36
  %v166 = vunpack.c.l.b16 %v37
  %v167 = vunpack.c.l.b16 %v38
  %v168 = vunpack.c.l.b16 %v39
  %v169 = vunpack.c.l.b16 %v40
  %v170 = vunpack.c.l.b16 %v41
  %v171 = vunpack.c.l.b16 %v42
  %v172 = vunpack.c.l.b16 %v43
  %v173 = vunpack.c.l.b16 %v44
  %v174 = vunpack.c.l.b16 %v45
  %v175 = vunpack.c.l.b16 %v46
  %v176 = vunpack.c.l.b16 %v47
  %v177 = vunpack.c.l.b16 %v48
  %v178 = vunpack.c.l.b16 %v49
  %v179 = vunpack.c.l.b16 %v50
  %v180 = vunpack.c.l.b16 %v51
  %v181 = vunpack.c.l.b16 %v52
  %v182 = vunpack.c.l.b16 %v53
  %v183 = vunpack.c.l.b16 %v54
  %v184 = vunpack.c.l.b16 %v55
  %v185 = vunpack.c.l.b16 %v56
  %v186 = vunpack.c.l.b16 %v57
  %v187 = vunpack.c.l.b16 %v58
  %v188 = vunpack.c.l.b16 %v59
  %v189 = vunpack.c.l.b16 %v60
  %v190 = vunpack.c.l.b16 %v61
  %v191 = vunpack.c.l.b16 %v62
  %v192 = vunpack.c.l.b16 %v63
  %v193 = vunpack.c.l.b16 %v64
  %v194 = vunpack.c.l.b16 %v65
  %v195 = vunpack.c.l.b16 %v66
  %v196 = vunpack.c.l.b16 %v67
  %v197 = vunpack.c.l.b16 %v68
  %v198 = vunpack.c.l.b16 %v69
  %v199 = vunpack.c.l.b16 %v70
  %v200 = vunpack.c.l.b16 %v71
  %v201 = vunpack.c.l.b16 %v72
  %v202 = vunpack.c.l.b16 %v73
  %v203 = vunpack.c.l.b16 %v74
  %v204 = vunpack.c.l.b16 %v75
  %v205 = vunpack.c.l.b16 %v76
  %v206 = vunpack.c.l.b16 %v77
  %v207 = vunpack.c.l.b16 %v78
  %v208 = vunpack.c.l.b16 %v79
  %v209 = vunpack.c.l.b16 %v80
  %v210 = vunpack.c.l.b16 %v81
  %v211 = vpack.c.b16 %v148, %v147
  %v212 = vpack.c.b16 %v150, %v149
  %v213 = vpack.c.b16 %v152, %v151
  %v214 = vpack.c.b16 %v154, %v153
  %v215 = vpack.c.b16 %v156, %v155
  %v216 = vpack.c.b16 %v158, %v157
  %v217 = vpack.c.b16 %v160, %v159
  %v218 = vpack.c.b16 %v162, %v161
  %v219 = vpack.c.b16 %v164, %v163
  %v220 = vpack.c.b16 %v166, %v165
  %v221 = vpack.c.b16 %v168, %v167
  %v222 = vpack.c.b16 %v170, %v169
  %v223 = vpack.c.b16 %v172, %v171
  %v224 = vpack.c.b16 %v174, %v173
  %v225 = vpack.c.b16 %v176, %v175
  %v226 = vpack.c.b16 %v178, %v177
  %v227 = vpack.c.b16 %v180, %v179
  %v228 = vpack.c.b16 %v182, %v181
  %v229 = vpack.c.b16 %v184, %v183
  %v230 = vpack.c.b16 %v186, %v185
  %v231 = vpack.c.b16 %v188, %v187
  %v232 = vpack.c.b16 %v190, %v189
  %v233 = vpack.c.b16 %v192, %v191
  %v234 = vpack.c.b16 %v194, %v193
  %v235 = vpack.c.b16 %v196, %v195
  %v236 = vpack.c.b16 %v198, %v197
  %v237 = vpack.c.b16 %v200, %v199
  %v238 = vpack.c.b16 %v202, %v201
  %v239 = vpack.c.b16 %v204, %v203
  %v240 = vpack.c.b16 %v206, %v205
  %v241 = vpack.c.b16 %v208, %v207
  %v242 = vpack.c.b16 %v210, %v209
  %vm243 = vcmask 31744
  %v245 = vsel %vm243, %v211, 0
  %v248 = vsel %vm243, %v212, 0
  %v251 = vsel %vm243, %v213, 0
  %v254 = vsel %vm243, %v214, 0
  %v257 = vsel %vm243, %v215, 0
  %v260 = vsel %vm243, %v216, 0
  %v263 = vsel %vm243, %v217, 0
  %v266 = vsel %vm243, %v218, 0
  %v269 = vsel %vm243, %v219, 0
  %v272 = vsel %vm243, %v220, 0
  %v275 = vsel %vm243, %v221, 0
  %v278 = vsel %vm243, %v222, 0
  %v281 = vsel %vm243, %v223, 0
  %v284 = vsel %vm243, %v224, 0
  %v287 = vsel %vm243, %v225, 0
  %v290 = vsel %vm243, %v226, 0
  %v293 = vsel %vm243, %v227, 0
  %v296 = vsel %vm243, %v228, 0
  %v299 = vsel %vm243, %v229, 0
  %v302 = vsel %vm243, %v230, 0
  %v305 = vsel %vm243, %v231, 0
  %v308 = vsel %vm243, %v232, 0
  %v311 = vsel %vm243, %v233, 0
  %v314 = vsel %vm243, %v234, 0
  %v317 = vsel %vm243, %v235, 0
  %v320 = vsel %vm243, %v236, 0
  %v323 = vsel %vm243, %v237, 0
  %v326 = vsel %vm243, %v238, 0
  %v329 = vsel %vm243, %v239, 0
  %v332 = vsel %vm243, %v240, 0
  %v335 = vsel %vm243, %v241, 0
  %v338 = vsel %vm243, %v242, 0
  %vm340 = vcmask 1041408
  %v342 = vsel %vm340, %v82, 0
  %344 = vmatpush.bf16.msra.mxu0 0
  %345 = vmatpush.bf16.msra.mxu0 0
  %346 = vmatpush.bf16.msra.mxu0 0
  %347 = vmatpush.bf16.msra.mxu0 0
  %348 = vmatpush.bf16.msra.mxu0 0
  %349 = vmatpush.bf16.msra.mxu0 0
  %350 = vmatpush.bf16.msra.mxu0 0
  %351 = vmatpush.bf16.msra.mxu0 %v342
  %352 = vmatmul.bf16.gmra.mxu0 %v245
  %v353 = vpop.f32.mrf.mxu0
  %v354 = vadd.f32 0.0, %v353
  %v355 = vpop.f32.mrf.mxu0
  %v356 = vadd.f32 0.0, %v355
  %357 = vmatmul.bf16.gmra.mxu0 %v248
  %v358 = vpop.f32.mrf.mxu0
  %v359 = vadd.f32 0.0, %v358
  %v360 = vpop.f32.mrf.mxu0
  %v361 = vadd.f32 0.0, %v360
  %362 = vmatmul.bf16.gmra.mxu0 %v251
  %v363 = vpop.f32.mrf.mxu0
  %v364 = vadd.f32 0.0, %v363
  %v365 = vpop.f32.mrf.mxu0
  %v366 = vadd.f32 0.0, %v365
  %367 = vmatmul.bf16.gmra.mxu0 %v254
  %v368 = vpop.f32.mrf.mxu0
  %v369 = vadd.f32 0.0, %v368
  %v370 = vpop.f32.mrf.mxu0
  %v371 = vadd.f32 0.0, %v370
  %372 = vmatmul.bf16.gmra.mxu0 %v257
  %v373 = vpop.f32.mrf.mxu0
  %v374 = vadd.f32 0.0, %v373
  %v375 = vpop.f32.mrf.mxu0
  %v376 = vadd.f32 0.0, %v375
  %377 = vmatmul.bf16.gmra.mxu0 %v260
  %v378 = vpop.f32.mrf.mxu0
  %v379 = vadd.f32 0.0, %v378
  %v380 = vpop.f32.mrf.mxu0
  %v381 = vadd.f32 0.0, %v380
  %382 = vmatmul.bf16.gmra.mxu0 %v263
  %v383 = vpop.f32.mrf.mxu0
  %v384 = vadd.f32 0.0, %v383
  %v385 = vpop.f32.mrf.mxu0
  %v386 = vadd.f32 0.0, %v385
  %387 = vmatmul.bf16.gmra.mxu0 %v266
  %v388 = vpop.f32.mrf.mxu0
  %v389 = vadd.f32 0.0, %v388
  %v390 = vpop.f32.mrf.mxu0
  %v391 = vadd.f32 0.0, %v390
  %392 = vmatmul.bf16.gmra.mxu0 %v269
  %v393 = vpop.f32.mrf.mxu0
  %v394 = vadd.f32 0.0, %v393
  %v395 = vpop.f32.mrf.mxu0
  %v396 = vadd.f32 0.0, %v395
  %397 = vmatmul.bf16.gmra.mxu0 %v272
  %v398 = vpop.f32.mrf.mxu0
  %v399 = vadd.f32 0.0, %v398
  %v400 = vpop.f32.mrf.mxu0
  %v401 = vadd.f32 0.0, %v400
  %402 = vmatmul.bf16.gmra.mxu0 %v275
  %v403 = vpop.f32.mrf.mxu0
  %v404 = vadd.f32 0.0, %v403
  %v405 = vpop.f32.mrf.mxu0
  %v406 = vadd.f32 0.0, %v405
  %407 = vmatmul.bf16.gmra.mxu0 %v278
  %v408 = vpop.f32.mrf.mxu0
  %v409 = vadd.f32 0.0, %v408
  %v410 = vpop.f32.mrf.mxu0
  %v411 = vadd.f32 0.0, %v410
  %412 = vmatmul.bf16.gmra.mxu0 %v281
  %v413 = vpop.f32.mrf.mxu0
  %v414 = vadd.f32 0.0, %v413
  %v415 = vpop.f32.mrf.mxu0
  %v416 = vadd.f32 0.0, %v415
  %417 = vmatmul.bf16.gmra.mxu0 %v284
  %v418 = vpop.f32.mrf.mxu0
  %v419 = vadd.f32 0.0, %v418
  %v420 = vpop.f32.mrf.mxu0
  %v421 = vadd.f32 0.0, %v420
  %422 = vmatmul.bf16.gmra.mxu0 %v287
  %v423 = vpop.f32.mrf.mxu0
  %v424 = vadd.f32 0.0, %v423
  %v425 = vpop.f32.mrf.mxu0
  %v426 = vadd.f32 0.0, %v425
  %427 = vmatmul.bf16.gmra.mxu0 %v290
  %v428 = vpop.f32.mrf.mxu0
  %v429 = vadd.f32 0.0, %v428
  %v430 = vpop.f32.mrf.mxu0
  %v431 = vadd.f32 0.0, %v430
  %432 = vmatmul.bf16.gmra.mxu0 %v293
  %v433 = vpop.f32.mrf.mxu0
  %v434 = vadd.f32 0.0, %v433
  %v435 = vpop.f32.mrf.mxu0
  %v436 = vadd.f32 0.0, %v435
  %437 = vmatmul.bf16.gmra.mxu0 %v296
  %v438 = vpop.f32.mrf.mxu0
  %v439 = vadd.f32 0.0, %v438
  %v440 = vpop.f32.mrf.mxu0
  %v441 = vadd.f32 0.0, %v440
  %442 = vmatmul.bf16.gmra.mxu0 %v299
  %v443 = vpop.f32.mrf.mxu0
  %v444 = vadd.f32 0.0, %v443
  %v445 = vpop.f32.mrf.mxu0
  %v446 = vadd.f32 0.0, %v445
  %447 = vmatmul.bf16.gmra.mxu0 %v302
  %v448 = vpop.f32.mrf.mxu0
  %v449 = vadd.f32 0.0, %v448
  %v450 = vpop.f32.mrf.mxu0
  %v451 = vadd.f32 0.0, %v450
  %452 = vmatmul.bf16.gmra.mxu0 %v305
  %v453 = vpop.f32.mrf.mxu0
  %v454 = vadd.f32 0.0, %v453
  %v455 = vpop.f32.mrf.mxu0
  %v456 = vadd.f32 0.0, %v455
  %457 = vmatmul.bf16.gmra.mxu0 %v308
  %v458 = vpop.f32.mrf.mxu0
  %v459 = vadd.f32 0.0, %v458
  %v460 = vpop.f32.mrf.mxu0
  %v461 = vadd.f32 0.0, %v460
  %462 = vmatmul.bf16.gmra.mxu0 %v311
  %v463 = vpop.f32.mrf.mxu0
  %v464 = vadd.f32 0.0, %v463
  %v465 = vpop.f32.mrf.mxu0
  %v466 = vadd.f32 0.0, %v465
  %467 = vmatmul.bf16.gmra.mxu0 %v314
  %v468 = vpop.f32.mrf.mxu0
  %v469 = vadd.f32 0.0, %v468
  %v470 = vpop.f32.mrf.mxu0
  %v471 = vadd.f32 0.0, %v470
  %472 = vmatmul.bf16.gmra.mxu0 %v317
  %v473 = vpop.f32.mrf.mxu0
  %v474 = vadd.f32 0.0, %v473
  %v475 = vpop.f32.mrf.mxu0
  %v476 = vadd.f32 0.0, %v475
  %477 = vmatmul.bf16.gmra.mxu0 %v320
  %v478 = vpop.f32.mrf.mxu0
  %v479 = vadd.f32 0.0, %v478
  %v480 = vpop.f32.mrf.mxu0
  %v481 = vadd.f32 0.0, %v480
  %482 = vmatmul.bf16.gmra.mxu0 %v323
  %v483 = vpop.f32.mrf.mxu0
  %v484 = vadd.f32 0.0, %v483
  %v485 = vpop.f32.mrf.mxu0
  %v486 = vadd.f32 0.0, %v485
  %487 = vmatmul.bf16.gmra.mxu0 %v326
  %v488 = vpop.f32.mrf.mxu0
  %v489 = vadd.f32 0.0, %v488
  %v490 = vpop.f32.mrf.mxu0
  %v491 = vadd.f32 0.0, %v490
  %492 = vmatmul.bf16.gmra.mxu0 %v329
  %v493 = vpop.f32.mrf.mxu0
  %v494 = vadd.f32 0.0, %v493
  %v495 = vpop.f32.mrf.mxu0
  %v496 = vadd.f32 0.0, %v495
  %497 = vmatmul.bf16.gmra.mxu0 %v332
  %v498 = vpop.f32.mrf.mxu0
  %v499 = vadd.f32 0.0, %v498
  %v500 = vpop.f32.mrf.mxu0
  %v501 = vadd.f32 0.0, %v500
  %502 = vmatmul.bf16.gmra.mxu0 %v335
  %v503 = vpop.f32.mrf.mxu0
  %v504 = vadd.f32 0.0, %v503
  %v505 = vpop.f32.mrf.mxu0
  %v506 = vadd.f32 0.0, %v505
  %507 = vmatmul.bf16.gmra.mxu0 %v338
  %v508 = vpop.f32.mrf.mxu0
  %v509 = vadd.f32 0.0, %v508
  %v510 = vpop.f32.mrf.mxu0
  %v511 = vadd.f32 0.0, %v510
  %512 = vdwg.mxu0
  %v513 = vld [vmem:[%s2] sm:$0x1]
  %v515 = vperm.slane %v513, 0
  %v517 = vmul.f32 %v354, %v515
  %v518 = vmul.f32 %v356, %v515
  %v519 = vmul.f32 %v359, %v515
  %v520 = vmul.f32 %v361, %v515
  %v521 = vmul.f32 %v364, %v515
  %v522 = vmul.f32 %v366, %v515
  %v523 = vmul.f32 %v369, %v515
  %v524 = vmul.f32 %v371, %v515
  %v525 = vmul.f32 %v374, %v515
  %v526 = vmul.f32 %v376, %v515
  %v527 = vmul.f32 %v379, %v515
  %v528 = vmul.f32 %v381, %v515
  %v529 = vmul.f32 %v384, %v515
  %v530 = vmul.f32 %v386, %v515
  %v531 = vmul.f32 %v389, %v515
  %v532 = vmul.f32 %v391, %v515
  %v533 = vmul.f32 %v394, %v515
  %v534 = vmul.f32 %v396, %v515
  %v535 = vmul.f32 %v399, %v515
  %v536 = vmul.f32 %v401, %v515
  %v537 = vmul.f32 %v404, %v515
  %v538 = vmul.f32 %v406, %v515
  %v539 = vmul.f32 %v409, %v515
  %v540 = vmul.f32 %v411, %v515
  %v541 = vmul.f32 %v414, %v515
  %v542 = vmul.f32 %v416, %v515
  %v543 = vmul.f32 %v419, %v515
  %v544 = vmul.f32 %v421, %v515
  %v545 = vmul.f32 %v424, %v515
  %v546 = vmul.f32 %v426, %v515
  %v547 = vmul.f32 %v429, %v515
  %v548 = vmul.f32 %v431, %v515
  %v549 = vmul.f32 %v434, %v515
  %v550 = vmul.f32 %v436, %v515
  %v551 = vmul.f32 %v439, %v515
  %v552 = vmul.f32 %v441, %v515
  %v553 = vmul.f32 %v444, %v515
  %v554 = vmul.f32 %v446, %v515
  %v555 = vmul.f32 %v449, %v515
  %v556 = vmul.f32 %v451, %v515
  %v557 = vmul.f32 %v454, %v515
  %v558 = vmul.f32 %v456, %v515
  %v559 = vmul.f32 %v459, %v515
  %v560 = vmul.f32 %v461, %v515
  %v561 = vmul.f32 %v464, %v515
  %v562 = vmul.f32 %v466, %v515
  %v563 = vmul.f32 %v469, %v515
  %v564 = vmul.f32 %v471, %v515
  %v565 = vmul.f32 %v474, %v515
  %v566 = vmul.f32 %v476, %v515
  %v567 = vmul.f32 %v479, %v515
  %v568 = vmul.f32 %v481, %v515
  %v569 = vmul.f32 %v484, %v515
  %v570 = vmul.f32 %v486, %v515
  %v571 = vmul.f32 %v489, %v515
  %v572 = vmul.f32 %v491, %v515
  %v573 = vmul.f32 %v494, %v515
  %v574 = vmul.f32 %v496, %v515
  %v575 = vmul.f32 %v499, %v515
  %v576 = vmul.f32 %v501, %v515
  %v577 = vmul.f32 %v504, %v515
  %v578 = vmul.f32 %v506, %v515
  %v579 = vmul.f32 %v509, %v515
  %v580 = vmul.f32 %v511, %v515
  %v581 = vld [vmem:[%s3] sm:$0x1]
  %v583 = vperm.slane %v581, 0
  %v585 = vadd.f32 %v517, %v583
  %v586 = vadd.f32 %v518, %v583
  %v587 = vadd.f32 %v519, %v583
  %v588 = vadd.f32 %v520, %v583
  %v589 = vadd.f32 %v521, %v583
  %v590 = vadd.f32 %v522, %v583
  %v591 = vadd.f32 %v523, %v583
  %v592 = vadd.f32 %v524, %v583
  %v593 = vadd.f32 %v525, %v583
  %v594 = vadd.f32 %v526, %v583
  %v595 = vadd.f32 %v527, %v583
  %v596 = vadd.f32 %v528, %v583
  %v597 = vadd.f32 %v529, %v583
  %v598 = vadd.f32 %v530, %v583
  %v599 = vadd.f32 %v531, %v583
  %v600 = vadd.f32 %v532, %v583
  %v601 = vadd.f32 %v533, %v583
  %v602 = vadd.f32 %v534, %v583
  %v603 = vadd.f32 %v535, %v583
  %v604 = vadd.f32 %v536, %v583
  %v605 = vadd.f32 %v537, %v583
  %v606 = vadd.f32 %v538, %v583
  %v607 = vadd.f32 %v539, %v583
  %v608 = vadd.f32 %v540, %v583
  %v609 = vadd.f32 %v541, %v583
  %v610 = vadd.f32 %v542, %v583
  %v611 = vadd.f32 %v543, %v583
  %v612 = vadd.f32 %v544, %v583
  %v613 = vadd.f32 %v545, %v583
  %v614 = vadd.f32 %v546, %v583
  %v615 = vadd.f32 %v547, %v583
  %v616 = vadd.f32 %v548, %v583
  %v617 = vadd.f32 %v549, %v583
  %v618 = vadd.f32 %v550, %v583
  %v619 = vadd.f32 %v551, %v583
  %v620 = vadd.f32 %v552, %v583
  %v621 = vadd.f32 %v553, %v583
  %v622 = vadd.f32 %v554, %v583
  %v623 = vadd.f32 %v555, %v583
  %v624 = vadd.f32 %v556, %v583
  %v625 = vadd.f32 %v557, %v583
  %v626 = vadd.f32 %v558, %v583
  %v627 = vadd.f32 %v559, %v583
  %v628 = vadd.f32 %v560, %v583
  %v629 = vadd.f32 %v561, %v583
  %v630 = vadd.f32 %v562, %v583
  %v631 = vadd.f32 %v563, %v583
  %v632 = vadd.f32 %v564, %v583
  %v633 = vadd.f32 %v565, %v583
  %v634 = vadd.f32 %v566, %v583
  %v635 = vadd.f32 %v567, %v583
  %v636 = vadd.f32 %v568, %v583
  %v637 = vadd.f32 %v569, %v583
  %v638 = vadd.f32 %v570, %v583
  %v639 = vadd.f32 %v571, %v583
  %v640 = vadd.f32 %v572, %v583
  %v641 = vadd.f32 %v573, %v583
  %v642 = vadd.f32 %v574, %v583
  %v643 = vadd.f32 %v575, %v583
  %v644 = vadd.f32 %v576, %v583
  %v645 = vadd.f32 %v577, %v583
  %v646 = vadd.f32 %v578, %v583
  %v647 = vadd.f32 %v579, %v583
  %v648 = vadd.f32 %v580, %v583
  %v649 = vxor.u32 %v585, 2147483648
  %v650 = vxor.u32 %v586, 2147483648
  %v651 = vxor.u32 %v587, 2147483648
  %v652 = vxor.u32 %v588, 2147483648
  %v653 = vxor.u32 %v589, 2147483648
  %v654 = vxor.u32 %v590, 2147483648
  %v655 = vxor.u32 %v591, 2147483648
  %v656 = vxor.u32 %v592, 2147483648
  %v657 = vxor.u32 %v593, 2147483648
  %v658 = vxor.u32 %v594, 2147483648
  %v659 = vxor.u32 %v595, 2147483648
  %v660 = vxor.u32 %v596, 2147483648
  %v661 = vxor.u32 %v597, 2147483648
  %v662 = vxor.u32 %v598, 2147483648
  %v663 = vxor.u32 %v599, 2147483648
  %v664 = vxor.u32 %v600, 2147483648
  %v665 = vxor.u32 %v601, 2147483648
  %v666 = vxor.u32 %v602, 2147483648
  %v667 = vxor.u32 %v603, 2147483648
  %v668 = vxor.u32 %v604, 2147483648
  %v669 = vxor.u32 %v605, 2147483648
  %v670 = vxor.u32 %v606, 2147483648
  %v671 = vxor.u32 %v607, 2147483648
  %v672 = vxor.u32 %v608, 2147483648
  %v673 = vxor.u32 %v609, 2147483648
  %v674 = vxor.u32 %v610, 2147483648
  %v675 = vxor.u32 %v611, 2147483648
  %v676 = vxor.u32 %v612, 2147483648
  %v677 = vxor.u32 %v613, 2147483648
  %v678 = vxor.u32 %v614, 2147483648
  %v679 = vxor.u32 %v615, 2147483648
  %v680 = vxor.u32 %v616, 2147483648
  %v681 = vxor.u32 %v617, 2147483648
  %v682 = vxor.u32 %v618, 2147483648
  %v683 = vxor.u32 %v619, 2147483648
  %v684 = vxor.u32 %v620, 2147483648
  %v685 = vxor.u32 %v621, 2147483648
  %v686 = vxor.u32 %v622, 2147483648
  %v687 = vxor.u32 %v623, 2147483648
  %v688 = vxor.u32 %v624, 2147483648
  %v689 = vxor.u32 %v625, 2147483648
  %v690 = vxor.u32 %v626, 2147483648
  %v691 = vxor.u32 %v627, 2147483648
  %v692 = vxor.u32 %v628, 2147483648
  %v693 = vxor.u32 %v629, 2147483648
  %v694 = vxor.u32 %v630, 2147483648
  %v695 = vxor.u32 %v631, 2147483648
  %v696 = vxor.u32 %v632, 2147483648
  %v697 = vxor.u32 %v633, 2147483648
  %v698 = vxor.u32 %v634, 2147483648
  %v699 = vxor.u32 %v635, 2147483648
  %v700 = vxor.u32 %v636, 2147483648
  %v701 = vxor.u32 %v637, 2147483648
  %v702 = vxor.u32 %v638, 2147483648
  %v703 = vxor.u32 %v639, 2147483648
  %v704 = vxor.u32 %v640, 2147483648
  %v705 = vxor.u32 %v641, 2147483648
  %v706 = vxor.u32 %v642, 2147483648
  %v707 = vxor.u32 %v643, 2147483648
  %v708 = vxor.u32 %v644, 2147483648
  %v709 = vxor.u32 %v645, 2147483648
  %v710 = vxor.u32 %v646, 2147483648
  %v711 = vxor.u32 %v647, 2147483648
  %v712 = vxor.u32 %v648, 2147483648
  %v713 = vmul.f32 %v649, 1.442695
  %v714 = vpow.pop %v713
  %v715 = vmul.f32 %v650, 1.442695
  %v716 = vpow.pop %v715
  %v717 = vmul.f32 %v651, 1.442695
  %v718 = vpow.pop %v717
  %v719 = vmul.f32 %v652, 1.442695
  %v720 = vpow.pop %v719
  %v721 = vmul.f32 %v653, 1.442695
  %v722 = vpow.pop %v721
  %v723 = vmul.f32 %v654, 1.442695
  %v724 = vpow.pop %v723
  %v725 = vmul.f32 %v655, 1.442695
  %v726 = vpow.pop %v725
  %v727 = vmul.f32 %v656, 1.442695
  %v728 = vpow.pop %v727
  %v729 = vmul.f32 %v657, 1.442695
  %v730 = vpow.pop %v729
  %v731 = vmul.f32 %v658, 1.442695
  %v732 = vpow.pop %v731
  %v733 = vmul.f32 %v659, 1.442695
  %v734 = vpow.pop %v733
  %v735 = vmul.f32 %v660, 1.442695
  %v736 = vpow.pop %v735
  %v737 = vmul.f32 %v661, 1.442695
  %v738 = vpow.pop %v737
  %v739 = vmul.f32 %v662, 1.442695
  %v740 = vpow.pop %v739
  %v741 = vmul.f32 %v663, 1.442695
  %v742 = vpow.pop %v741
  %v743 = vmul.f32 %v664, 1.442695
  %v744 = vpow.pop %v743
  %v745 = vmul.f32 %v665, 1.442695
  %v746 = vpow.pop %v745
  %v747 = vmul.f32 %v666, 1.442695
  %v748 = vpow.pop %v747
  %v749 = vmul.f32 %v667, 1.442695
  %v750 = vpow.pop %v749
  %v751 = vmul.f32 %v668, 1.442695
  %v752 = vpow.pop %v751
  %v753 = vmul.f32 %v669, 1.442695
  %v754 = vpow.pop %v753
  %v755 = vmul.f32 %v670, 1.442695
  %v756 = vpow.pop %v755
  %v757 = vmul.f32 %v671, 1.442695
  %v758 = vpow.pop %v757
  %v759 = vmul.f32 %v672, 1.442695
  %v760 = vpow.pop %v759
  %v761 = vmul.f32 %v673, 1.442695
  %v762 = vpow.pop %v761
  %v763 = vmul.f32 %v674, 1.442695
  %v764 = vpow.pop %v763
  %v765 = vmul.f32 %v675, 1.442695
  %v766 = vpow.pop %v765
  %v767 = vmul.f32 %v676, 1.442695
  %v768 = vpow.pop %v767
  %v769 = vmul.f32 %v677, 1.442695
  %v770 = vpow.pop %v769
  %v771 = vmul.f32 %v678, 1.442695
  %v772 = vpow.pop %v771
  %v773 = vmul.f32 %v679, 1.442695
  %v774 = vpow.pop %v773
  %v775 = vmul.f32 %v680, 1.442695
  %v776 = vpow.pop %v775
  %v777 = vmul.f32 %v681, 1.442695
  %v778 = vpow.pop %v777
  %v779 = vmul.f32 %v682, 1.442695
  %v780 = vpow.pop %v779
  %v781 = vmul.f32 %v683, 1.442695
  %v782 = vpow.pop %v781
  %v783 = vmul.f32 %v684, 1.442695
  %v784 = vpow.pop %v783
  %v785 = vmul.f32 %v685, 1.442695
  %v786 = vpow.pop %v785
  %v787 = vmul.f32 %v686, 1.442695
  %v788 = vpow.pop %v787
  %v789 = vmul.f32 %v687, 1.442695
  %v790 = vpow.pop %v789
  %v791 = vmul.f32 %v688, 1.442695
  %v792 = vpow.pop %v791
  %v793 = vmul.f32 %v689, 1.442695
  %v794 = vpow.pop %v793
  %v795 = vmul.f32 %v690, 1.442695
  %v796 = vpow.pop %v795
  %v797 = vmul.f32 %v691, 1.442695
  %v798 = vpow.pop %v797
  %v799 = vmul.f32 %v692, 1.442695
  %v800 = vpow.pop %v799
  %v801 = vmul.f32 %v693, 1.442695
  %v802 = vpow.pop %v801
  %v803 = vmul.f32 %v694, 1.442695
  %v804 = vpow.pop %v803
  %v805 = vmul.f32 %v695, 1.442695
  %v806 = vpow.pop %v805
  %v807 = vmul.f32 %v696, 1.442695
  %v808 = vpow.pop %v807
  %v809 = vmul.f32 %v697, 1.442695
  %v810 = vpow.pop %v809
  %v811 = vmul.f32 %v698, 1.442695
  %v812 = vpow.pop %v811
  %v813 = vmul.f32 %v699, 1.442695
  %v814 = vpow.pop %v813
  %v815 = vmul.f32 %v700, 1.442695
  %v816 = vpow.pop %v815
  %v817 = vmul.f32 %v701, 1.442695
  %v818 = vpow.pop %v817
  %v819 = vmul.f32 %v702, 1.442695
  %v820 = vpow.pop %v819
  %v821 = vmul.f32 %v703, 1.442695
  %v822 = vpow.pop %v821
  %v823 = vmul.f32 %v704, 1.442695
  %v824 = vpow.pop %v823
  %v825 = vmul.f32 %v705, 1.442695
  %v826 = vpow.pop %v825
  %v827 = vmul.f32 %v706, 1.442695
  %v828 = vpow.pop %v827
  %v829 = vmul.f32 %v707, 1.442695
  %v830 = vpow.pop %v829
  %v831 = vmul.f32 %v708, 1.442695
  %v832 = vpow.pop %v831
  %v833 = vmul.f32 %v709, 1.442695
  %v834 = vpow.pop %v833
  %v835 = vmul.f32 %v710, 1.442695
  %v836 = vpow.pop %v835
  %v837 = vmul.f32 %v711, 1.442695
  %v838 = vpow.pop %v837
  %v839 = vmul.f32 %v712, 1.442695
  %v840 = vpow.pop %v839
  %v841 = vadd.f32 %v714, 1.0
  %v842 = vadd.f32 %v716, 1.0
  %v843 = vadd.f32 %v718, 1.0
  %v844 = vadd.f32 %v720, 1.0
  %v845 = vadd.f32 %v722, 1.0
  %v846 = vadd.f32 %v724, 1.0
  %v847 = vadd.f32 %v726, 1.0
  %v848 = vadd.f32 %v728, 1.0
  %v849 = vadd.f32 %v730, 1.0
  %v850 = vadd.f32 %v732, 1.0
  %v851 = vadd.f32 %v734, 1.0
  %v852 = vadd.f32 %v736, 1.0
  %v853 = vadd.f32 %v738, 1.0
  %v854 = vadd.f32 %v740, 1.0
  %v855 = vadd.f32 %v742, 1.0
  %v856 = vadd.f32 %v744, 1.0
  %v857 = vadd.f32 %v746, 1.0
  %v858 = vadd.f32 %v748, 1.0
  %v859 = vadd.f32 %v750, 1.0
  %v860 = vadd.f32 %v752, 1.0
  %v861 = vadd.f32 %v754, 1.0
  %v862 = vadd.f32 %v756, 1.0
  %v863 = vadd.f32 %v758, 1.0
  %v864 = vadd.f32 %v760, 1.0
  %v865 = vadd.f32 %v762, 1.0
  %v866 = vadd.f32 %v764, 1.0
  %v867 = vadd.f32 %v766, 1.0
  %v868 = vadd.f32 %v768, 1.0
  %v869 = vadd.f32 %v770, 1.0
  %v870 = vadd.f32 %v772, 1.0
  %v871 = vadd.f32 %v774, 1.0
  %v872 = vadd.f32 %v776, 1.0
  %v873 = vadd.f32 %v778, 1.0
  %v874 = vadd.f32 %v780, 1.0
  %v875 = vadd.f32 %v782, 1.0
  %v876 = vadd.f32 %v784, 1.0
  %v877 = vadd.f32 %v786, 1.0
  %v878 = vadd.f32 %v788, 1.0
  %v879 = vadd.f32 %v790, 1.0
  %v880 = vadd.f32 %v792, 1.0
  %v881 = vadd.f32 %v794, 1.0
  %v882 = vadd.f32 %v796, 1.0
  %v883 = vadd.f32 %v798, 1.0
  %v884 = vadd.f32 %v800, 1.0
  %v885 = vadd.f32 %v802, 1.0
  %v886 = vadd.f32 %v804, 1.0
  %v887 = vadd.f32 %v806, 1.0
  %v888 = vadd.f32 %v808, 1.0
  %v889 = vadd.f32 %v810, 1.0
  %v890 = vadd.f32 %v812, 1.0
  %v891 = vadd.f32 %v814, 1.0
  %v892 = vadd.f32 %v816, 1.0
  %v893 = vadd.f32 %v818, 1.0
  %v894 = vadd.f32 %v820, 1.0
  %v895 = vadd.f32 %v822, 1.0
  %v896 = vadd.f32 %v824, 1.0
  %v897 = vadd.f32 %v826, 1.0
  %v898 = vadd.f32 %v828, 1.0
  %v899 = vadd.f32 %v830, 1.0
  %v900 = vadd.f32 %v832, 1.0
  %v901 = vadd.f32 %v834, 1.0
  %v902 = vadd.f32 %v836, 1.0
  %v903 = vadd.f32 %v838, 1.0
  %v904 = vadd.f32 %v840, 1.0
  %v905 = vrcp.pop %v841
  %v906 = vmul.f32 %v841, %v905
  %v907 = vsub.f32 1.0, %v906
  %v908 = vmul.f32 %v905, %v907
  %v909 = vadd.f32 %v905, %v908
  %vm910 = vweird.f32 %v841
  %vm911 = vweird.f32 %v905
  %vm912 = vmor %vm910, %vm911
  %v913 = vsel %vm912, %v905, %v909
  %v914 = vand.u32 2147483647, %v841
  %vm915 = vcmp.eq.f32.partialorder %v914, 8.507059e+37
  %v916 = vand.u32 %v841, 2147483648
  %v917 = vor.u32 1.1754944e-38, %v916
  %v918 = vsel %vm915, %v917, %v913
  %v919 = vmul.f32 1.0, %v918
  %v920 = vrcp.pop %v842
  %v921 = vmul.f32 %v842, %v920
  %v922 = vsub.f32 1.0, %v921
  %v923 = vmul.f32 %v920, %v922
  %v924 = vadd.f32 %v920, %v923
  %vm925 = vweird.f32 %v842
  %vm926 = vweird.f32 %v920
  %vm927 = vmor %vm925, %vm926
  %v928 = vsel %vm927, %v920, %v924
  %v929 = vand.u32 2147483647, %v842
  %vm930 = vcmp.eq.f32.partialorder %v929, 8.507059e+37
  %v931 = vand.u32 %v842, 2147483648
  %v932 = vor.u32 1.1754944e-38, %v931
  %v933 = vsel %vm930, %v932, %v928
  %v934 = vmul.f32 1.0, %v933
  %v935 = vrcp.pop %v843
  %v936 = vmul.f32 %v843, %v935
  %v937 = vsub.f32 1.0, %v936
  %v938 = vmul.f32 %v935, %v937
  %v939 = vadd.f32 %v935, %v938
  %vm940 = vweird.f32 %v843
  %vm941 = vweird.f32 %v935
  %vm942 = vmor %vm940, %vm941
  %v943 = vsel %vm942, %v935, %v939
  %v944 = vand.u32 2147483647, %v843
  %vm945 = vcmp.eq.f32.partialorder %v944, 8.507059e+37
  %v946 = vand.u32 %v843, 2147483648
  %v947 = vor.u32 1.1754944e-38, %v946
  %v948 = vsel %vm945, %v947, %v943
  %v949 = vmul.f32 1.0, %v948
  %v950 = vrcp.pop %v844
  %v951 = vmul.f32 %v844, %v950
  %v952 = vsub.f32 1.0, %v951
  %v953 = vmul.f32 %v950, %v952
  %v954 = vadd.f32 %v950, %v953
  %vm955 = vweird.f32 %v844
  %vm956 = vweird.f32 %v950
  %vm957 = vmor %vm955, %vm956
  %v958 = vsel %vm957, %v950, %v954
  %v959 = vand.u32 2147483647, %v844
  %vm960 = vcmp.eq.f32.partialorder %v959, 8.507059e+37
  %v961 = vand.u32 %v844, 2147483648
  %v962 = vor.u32 1.1754944e-38, %v961
  %v963 = vsel %vm960, %v962, %v958
  %v964 = vmul.f32 1.0, %v963
  %v965 = vrcp.pop %v845
  %v966 = vmul.f32 %v845, %v965
  %v967 = vsub.f32 1.0, %v966
  %v968 = vmul.f32 %v965, %v967
  %v969 = vadd.f32 %v965, %v968
  %vm970 = vweird.f32 %v845
  %vm971 = vweird.f32 %v965
  %vm972 = vmor %vm970, %vm971
  %v973 = vsel %vm972, %v965, %v969
  %v974 = vand.u32 2147483647, %v845
  %vm975 = vcmp.eq.f32.partialorder %v974, 8.507059e+37
  %v976 = vand.u32 %v845, 2147483648
  %v977 = vor.u32 1.1754944e-38, %v976
  %v978 = vsel %vm975, %v977, %v973
  %v979 = vmul.f32 1.0, %v978
  %v980 = vrcp.pop %v846
  %v981 = vmul.f32 %v846, %v980
  %v982 = vsub.f32 1.0, %v981
  %v983 = vmul.f32 %v980, %v982
  %v984 = vadd.f32 %v980, %v983
  %vm985 = vweird.f32 %v846
  %vm986 = vweird.f32 %v980
  %vm987 = vmor %vm985, %vm986
  %v988 = vsel %vm987, %v980, %v984
  %v989 = vand.u32 2147483647, %v846
  %vm990 = vcmp.eq.f32.partialorder %v989, 8.507059e+37
  %v991 = vand.u32 %v846, 2147483648
  %v992 = vor.u32 1.1754944e-38, %v991
  %v993 = vsel %vm990, %v992, %v988
  %v994 = vmul.f32 1.0, %v993
  %v995 = vrcp.pop %v847
  %v996 = vmul.f32 %v847, %v995
  %v997 = vsub.f32 1.0, %v996
  %v998 = vmul.f32 %v995, %v997
  %v999 = vadd.f32 %v995, %v998
  %vm1000 = vweird.f32 %v847
  %vm1001 = vweird.f32 %v995
  %vm1002 = vmor %vm1000, %vm1001
  %v1003 = vsel %vm1002, %v995, %v999
  %v1004 = vand.u32 2147483647, %v847
  %vm1005 = vcmp.eq.f32.partialorder %v1004, 8.507059e+37
  %v1006 = vand.u32 %v847, 2147483648
  %v1007 = vor.u32 1.1754944e-38, %v1006
  %v1008 = vsel %vm1005, %v1007, %v1003
  %v1009 = vmul.f32 1.0, %v1008
  %v1010 = vrcp.pop %v848
  %v1011 = vmul.f32 %v848, %v1010
  %v1012 = vsub.f32 1.0, %v1011
  %v1013 = vmul.f32 %v1010, %v1012
  %v1014 = vadd.f32 %v1010, %v1013
  %vm1015 = vweird.f32 %v848
  %vm1016 = vweird.f32 %v1010
  %vm1017 = vmor %vm1015, %vm1016
  %v1018 = vsel %vm1017, %v1010, %v1014
  %v1019 = vand.u32 2147483647, %v848
  %vm1020 = vcmp.eq.f32.partialorder %v1019, 8.507059e+37
  %v1021 = vand.u32 %v848, 2147483648
  %v1022 = vor.u32 1.1754944e-38, %v1021
  %v1023 = vsel %vm1020, %v1022, %v1018
  %v1024 = vmul.f32 1.0, %v1023
  %v1025 = vrcp.pop %v849
  %v1026 = vmul.f32 %v849, %v1025
  %v1027 = vsub.f32 1.0, %v1026
  %v1028 = vmul.f32 %v1025, %v1027
  %v1029 = vadd.f32 %v1025, %v1028
  %vm1030 = vweird.f32 %v849
  %vm1031 = vweird.f32 %v1025
  %vm1032 = vmor %vm1030, %vm1031
  %v1033 = vsel %vm1032, %v1025, %v1029
  %v1034 = vand.u32 2147483647, %v849
  %vm1035 = vcmp.eq.f32.partialorder %v1034, 8.507059e+37
  %v1036 = vand.u32 %v849, 2147483648
  %v1037 = vor.u32 1.1754944e-38, %v1036
  %v1038 = vsel %vm1035, %v1037, %v1033
  %v1039 = vmul.f32 1.0, %v1038
  %v1040 = vrcp.pop %v850
  %v1041 = vmul.f32 %v850, %v1040
  %v1042 = vsub.f32 1.0, %v1041
  %v1043 = vmul.f32 %v1040, %v1042
  %v1044 = vadd.f32 %v1040, %v1043
  %vm1045 = vweird.f32 %v850
  %vm1046 = vweird.f32 %v1040
  %vm1047 = vmor %vm1045, %vm1046
  %v1048 = vsel %vm1047, %v1040, %v1044
  %v1049 = vand.u32 2147483647, %v850
  %vm1050 = vcmp.eq.f32.partialorder %v1049, 8.507059e+37
  %v1051 = vand.u32 %v850, 2147483648
  %v1052 = vor.u32 1.1754944e-38, %v1051
  %v1053 = vsel %vm1050, %v1052, %v1048
  %v1054 = vmul.f32 1.0, %v1053
  %v1055 = vrcp.pop %v851
  %v1056 = vmul.f32 %v851, %v1055
  %v1057 = vsub.f32 1.0, %v1056
  %v1058 = vmul.f32 %v1055, %v1057
  %v1059 = vadd.f32 %v1055, %v1058
  %vm1060 = vweird.f32 %v851
  %vm1061 = vweird.f32 %v1055
  %vm1062 = vmor %vm1060, %vm1061
  %v1063 = vsel %vm1062, %v1055, %v1059
  %v1064 = vand.u32 2147483647, %v851
  %vm1065 = vcmp.eq.f32.partialorder %v1064, 8.507059e+37
  %v1066 = vand.u32 %v851, 2147483648
  %v1067 = vor.u32 1.1754944e-38, %v1066
  %v1068 = vsel %vm1065, %v1067, %v1063
  %v1069 = vmul.f32 1.0, %v1068
  %v1070 = vrcp.pop %v852
  %v1071 = vmul.f32 %v852, %v1070
  %v1072 = vsub.f32 1.0, %v1071
  %v1073 = vmul.f32 %v1070, %v1072
  %v1074 = vadd.f32 %v1070, %v1073
  %vm1075 = vweird.f32 %v852
  %vm1076 = vweird.f32 %v1070
  %vm1077 = vmor %vm1075, %vm1076
  %v1078 = vsel %vm1077, %v1070, %v1074
  %v1079 = vand.u32 2147483647, %v852
  %vm1080 = vcmp.eq.f32.partialorder %v1079, 8.507059e+37
  %v1081 = vand.u32 %v852, 2147483648
  %v1082 = vor.u32 1.1754944e-38, %v1081
  %v1083 = vsel %vm1080, %v1082, %v1078
  %v1084 = vmul.f32 1.0, %v1083
  %v1085 = vrcp.pop %v853
  %v1086 = vmul.f32 %v853, %v1085
  %v1087 = vsub.f32 1.0, %v1086
  %v1088 = vmul.f32 %v1085, %v1087
  %v1089 = vadd.f32 %v1085, %v1088
  %vm1090 = vweird.f32 %v853
  %vm1091 = vweird.f32 %v1085
  %vm1092 = vmor %vm1090, %vm1091
  %v1093 = vsel %vm1092, %v1085, %v1089
  %v1094 = vand.u32 2147483647, %v853
  %vm1095 = vcmp.eq.f32.partialorder %v1094, 8.507059e+37
  %v1096 = vand.u32 %v853, 2147483648
  %v1097 = vor.u32 1.1754944e-38, %v1096
  %v1098 = vsel %vm1095, %v1097, %v1093
  %v1099 = vmul.f32 1.0, %v1098
  %v1100 = vrcp.pop %v854
  %v1101 = vmul.f32 %v854, %v1100
  %v1102 = vsub.f32 1.0, %v1101
  %v1103 = vmul.f32 %v1100, %v1102
  %v1104 = vadd.f32 %v1100, %v1103
  %vm1105 = vweird.f32 %v854
  %vm1106 = vweird.f32 %v1100
  %vm1107 = vmor %vm1105, %vm1106
  %v1108 = vsel %vm1107, %v1100, %v1104
  %v1109 = vand.u32 2147483647, %v854
  %vm1110 = vcmp.eq.f32.partialorder %v1109, 8.507059e+37
  %v1111 = vand.u32 %v854, 2147483648
  %v1112 = vor.u32 1.1754944e-38, %v1111
  %v1113 = vsel %vm1110, %v1112, %v1108
  %v1114 = vmul.f32 1.0, %v1113
  %v1115 = vrcp.pop %v855
  %v1116 = vmul.f32 %v855, %v1115
  %v1117 = vsub.f32 1.0, %v1116
  %v1118 = vmul.f32 %v1115, %v1117
  %v1119 = vadd.f32 %v1115, %v1118
  %vm1120 = vweird.f32 %v855
  %vm1121 = vweird.f32 %v1115
  %vm1122 = vmor %vm1120, %vm1121
  %v1123 = vsel %vm1122, %v1115, %v1119
  %v1124 = vand.u32 2147483647, %v855
  %vm1125 = vcmp.eq.f32.partialorder %v1124, 8.507059e+37
  %v1126 = vand.u32 %v855, 2147483648
  %v1127 = vor.u32 1.1754944e-38, %v1126
  %v1128 = vsel %vm1125, %v1127, %v1123
  %v1129 = vmul.f32 1.0, %v1128
  %v1130 = vrcp.pop %v856
  %v1131 = vmul.f32 %v856, %v1130
  %v1132 = vsub.f32 1.0, %v1131
  %v1133 = vmul.f32 %v1130, %v1132
  %v1134 = vadd.f32 %v1130, %v1133
  %vm1135 = vweird.f32 %v856
  %vm1136 = vweird.f32 %v1130
  %vm1137 = vmor %vm1135, %vm1136
  %v1138 = vsel %vm1137, %v1130, %v1134
  %v1139 = vand.u32 2147483647, %v856
  %vm1140 = vcmp.eq.f32.partialorder %v1139, 8.507059e+37
  %v1141 = vand.u32 %v856, 2147483648
  %v1142 = vor.u32 1.1754944e-38, %v1141
  %v1143 = vsel %vm1140, %v1142, %v1138
  %v1144 = vmul.f32 1.0, %v1143
  %v1145 = vrcp.pop %v857
  %v1146 = vmul.f32 %v857, %v1145
  %v1147 = vsub.f32 1.0, %v1146
  %v1148 = vmul.f32 %v1145, %v1147
  %v1149 = vadd.f32 %v1145, %v1148
  %vm1150 = vweird.f32 %v857
  %vm1151 = vweird.f32 %v1145
  %vm1152 = vmor %vm1150, %vm1151
  %v1153 = vsel %vm1152, %v1145, %v1149
  %v1154 = vand.u32 2147483647, %v857
  %vm1155 = vcmp.eq.f32.partialorder %v1154, 8.507059e+37
  %v1156 = vand.u32 %v857, 2147483648
  %v1157 = vor.u32 1.1754944e-38, %v1156
  %v1158 = vsel %vm1155, %v1157, %v1153
  %v1159 = vmul.f32 1.0, %v1158
  %v1160 = vrcp.pop %v858
  %v1161 = vmul.f32 %v858, %v1160
  %v1162 = vsub.f32 1.0, %v1161
  %v1163 = vmul.f32 %v1160, %v1162
  %v1164 = vadd.f32 %v1160, %v1163
  %vm1165 = vweird.f32 %v858
  %vm1166 = vweird.f32 %v1160
  %vm1167 = vmor %vm1165, %vm1166
  %v1168 = vsel %vm1167, %v1160, %v1164
  %v1169 = vand.u32 2147483647, %v858
  %vm1170 = vcmp.eq.f32.partialorder %v1169, 8.507059e+37
  %v1171 = vand.u32 %v858, 2147483648
  %v1172 = vor.u32 1.1754944e-38, %v1171
  %v1173 = vsel %vm1170, %v1172, %v1168
  %v1174 = vmul.f32 1.0, %v1173
  %v1175 = vrcp.pop %v859
  %v1176 = vmul.f32 %v859, %v1175
  %v1177 = vsub.f32 1.0, %v1176
  %v1178 = vmul.f32 %v1175, %v1177
  %v1179 = vadd.f32 %v1175, %v1178
  %vm1180 = vweird.f32 %v859
  %vm1181 = vweird.f32 %v1175
  %vm1182 = vmor %vm1180, %vm1181
  %v1183 = vsel %vm1182, %v1175, %v1179
  %v1184 = vand.u32 2147483647, %v859
  %vm1185 = vcmp.eq.f32.partialorder %v1184, 8.507059e+37
  %v1186 = vand.u32 %v859, 2147483648
  %v1187 = vor.u32 1.1754944e-38, %v1186
  %v1188 = vsel %vm1185, %v1187, %v1183
  %v1189 = vmul.f32 1.0, %v1188
  %v1190 = vrcp.pop %v860
  %v1191 = vmul.f32 %v860, %v1190
  %v1192 = vsub.f32 1.0, %v1191
  %v1193 = vmul.f32 %v1190, %v1192
  %v1194 = vadd.f32 %v1190, %v1193
  %vm1195 = vweird.f32 %v860
  %vm1196 = vweird.f32 %v1190
  %vm1197 = vmor %vm1195, %vm1196
  %v1198 = vsel %vm1197, %v1190, %v1194
  %v1199 = vand.u32 2147483647, %v860
  %vm1200 = vcmp.eq.f32.partialorder %v1199, 8.507059e+37
  %v1201 = vand.u32 %v860, 2147483648
  %v1202 = vor.u32 1.1754944e-38, %v1201
  %v1203 = vsel %vm1200, %v1202, %v1198
  %v1204 = vmul.f32 1.0, %v1203
  %v1205 = vrcp.pop %v861
  %v1206 = vmul.f32 %v861, %v1205
  %v1207 = vsub.f32 1.0, %v1206
  %v1208 = vmul.f32 %v1205, %v1207
  %v1209 = vadd.f32 %v1205, %v1208
  %vm1210 = vweird.f32 %v861
  %vm1211 = vweird.f32 %v1205
  %vm1212 = vmor %vm1210, %vm1211
  %v1213 = vsel %vm1212, %v1205, %v1209
  %v1214 = vand.u32 2147483647, %v861
  %vm1215 = vcmp.eq.f32.partialorder %v1214, 8.507059e+37
  %v1216 = vand.u32 %v861, 2147483648
  %v1217 = vor.u32 1.1754944e-38, %v1216
  %v1218 = vsel %vm1215, %v1217, %v1213
  %v1219 = vmul.f32 1.0, %v1218
  %v1220 = vrcp.pop %v862
  %v1221 = vmul.f32 %v862, %v1220
  %v1222 = vsub.f32 1.0, %v1221
  %v1223 = vmul.f32 %v1220, %v1222
  %v1224 = vadd.f32 %v1220, %v1223
  %vm1225 = vweird.f32 %v862
  %vm1226 = vweird.f32 %v1220
  %vm1227 = vmor %vm1225, %vm1226
  %v1228 = vsel %vm1227, %v1220, %v1224
  %v1229 = vand.u32 2147483647, %v862
  %vm1230 = vcmp.eq.f32.partialorder %v1229, 8.507059e+37
  %v1231 = vand.u32 %v862, 2147483648
  %v1232 = vor.u32 1.1754944e-38, %v1231
  %v1233 = vsel %vm1230, %v1232, %v1228
  %v1234 = vmul.f32 1.0, %v1233
  %v1235 = vrcp.pop %v863
  %v1236 = vmul.f32 %v863, %v1235
  %v1237 = vsub.f32 1.0, %v1236
  %v1238 = vmul.f32 %v1235, %v1237
  %v1239 = vadd.f32 %v1235, %v1238
  %vm1240 = vweird.f32 %v863
  %vm1241 = vweird.f32 %v1235
  %vm1242 = vmor %vm1240, %vm1241
  %v1243 = vsel %vm1242, %v1235, %v1239
  %v1244 = vand.u32 2147483647, %v863
  %vm1245 = vcmp.eq.f32.partialorder %v1244, 8.507059e+37
  %v1246 = vand.u32 %v863, 2147483648
  %v1247 = vor.u32 1.1754944e-38, %v1246
  %v1248 = vsel %vm1245, %v1247, %v1243
  %v1249 = vmul.f32 1.0, %v1248
  %v1250 = vrcp.pop %v864
  %v1251 = vmul.f32 %v864, %v1250
  %v1252 = vsub.f32 1.0, %v1251
  %v1253 = vmul.f32 %v1250, %v1252
  %v1254 = vadd.f32 %v1250, %v1253
  %vm1255 = vweird.f32 %v864
  %vm1256 = vweird.f32 %v1250
  %vm1257 = vmor %vm1255, %vm1256
  %v1258 = vsel %vm1257, %v1250, %v1254
  %v1259 = vand.u32 2147483647, %v864
  %vm1260 = vcmp.eq.f32.partialorder %v1259, 8.507059e+37
  %v1261 = vand.u32 %v864, 2147483648
  %v1262 = vor.u32 1.1754944e-38, %v1261
  %v1263 = vsel %vm1260, %v1262, %v1258
  %v1264 = vmul.f32 1.0, %v1263
  %v1265 = vrcp.pop %v865
  %v1266 = vmul.f32 %v865, %v1265
  %v1267 = vsub.f32 1.0, %v1266
  %v1268 = vmul.f32 %v1265, %v1267
  %v1269 = vadd.f32 %v1265, %v1268
  %vm1270 = vweird.f32 %v865
  %vm1271 = vweird.f32 %v1265
  %vm1272 = vmor %vm1270, %vm1271
  %v1273 = vsel %vm1272, %v1265, %v1269
  %v1274 = vand.u32 2147483647, %v865
  %vm1275 = vcmp.eq.f32.partialorder %v1274, 8.507059e+37
  %v1276 = vand.u32 %v865, 2147483648
  %v1277 = vor.u32 1.1754944e-38, %v1276
  %v1278 = vsel %vm1275, %v1277, %v1273
  %v1279 = vmul.f32 1.0, %v1278
  %v1280 = vrcp.pop %v866
  %v1281 = vmul.f32 %v866, %v1280
  %v1282 = vsub.f32 1.0, %v1281
  %v1283 = vmul.f32 %v1280, %v1282
  %v1284 = vadd.f32 %v1280, %v1283
  %vm1285 = vweird.f32 %v866
  %vm1286 = vweird.f32 %v1280
  %vm1287 = vmor %vm1285, %vm1286
  %v1288 = vsel %vm1287, %v1280, %v1284
  %v1289 = vand.u32 2147483647, %v866
  %vm1290 = vcmp.eq.f32.partialorder %v1289, 8.507059e+37
  %v1291 = vand.u32 %v866, 2147483648
  %v1292 = vor.u32 1.1754944e-38, %v1291
  %v1293 = vsel %vm1290, %v1292, %v1288
  %v1294 = vmul.f32 1.0, %v1293
  %v1295 = vrcp.pop %v867
  %v1296 = vmul.f32 %v867, %v1295
  %v1297 = vsub.f32 1.0, %v1296
  %v1298 = vmul.f32 %v1295, %v1297
  %v1299 = vadd.f32 %v1295, %v1298
  %vm1300 = vweird.f32 %v867
  %vm1301 = vweird.f32 %v1295
  %vm1302 = vmor %vm1300, %vm1301
  %v1303 = vsel %vm1302, %v1295, %v1299
  %v1304 = vand.u32 2147483647, %v867
  %vm1305 = vcmp.eq.f32.partialorder %v1304, 8.507059e+37
  %v1306 = vand.u32 %v867, 2147483648
  %v1307 = vor.u32 1.1754944e-38, %v1306
  %v1308 = vsel %vm1305, %v1307, %v1303
  %v1309 = vmul.f32 1.0, %v1308
  %v1310 = vrcp.pop %v868
  %v1311 = vmul.f32 %v868, %v1310
  %v1312 = vsub.f32 1.0, %v1311
  %v1313 = vmul.f32 %v1310, %v1312
  %v1314 = vadd.f32 %v1310, %v1313
  %vm1315 = vweird.f32 %v868
  %vm1316 = vweird.f32 %v1310
  %vm1317 = vmor %vm1315, %vm1316
  %v1318 = vsel %vm1317, %v1310, %v1314
  %v1319 = vand.u32 2147483647, %v868
  %vm1320 = vcmp.eq.f32.partialorder %v1319, 8.507059e+37
  %v1321 = vand.u32 %v868, 2147483648
  %v1322 = vor.u32 1.1754944e-38, %v1321
  %v1323 = vsel %vm1320, %v1322, %v1318
  %v1324 = vmul.f32 1.0, %v1323
  %v1325 = vrcp.pop %v869
  %v1326 = vmul.f32 %v869, %v1325
  %v1327 = vsub.f32 1.0, %v1326
  %v1328 = vmul.f32 %v1325, %v1327
  %v1329 = vadd.f32 %v1325, %v1328
  %vm1330 = vweird.f32 %v869
  %vm1331 = vweird.f32 %v1325
  %vm1332 = vmor %vm1330, %vm1331
  %v1333 = vsel %vm1332, %v1325, %v1329
  %v1334 = vand.u32 2147483647, %v869
  %vm1335 = vcmp.eq.f32.partialorder %v1334, 8.507059e+37
  %v1336 = vand.u32 %v869, 2147483648
  %v1337 = vor.u32 1.1754944e-38, %v1336
  %v1338 = vsel %vm1335, %v1337, %v1333
  %v1339 = vmul.f32 1.0, %v1338
  %v1340 = vrcp.pop %v870
  %v1341 = vmul.f32 %v870, %v1340
  %v1342 = vsub.f32 1.0, %v1341
  %v1343 = vmul.f32 %v1340, %v1342
  %v1344 = vadd.f32 %v1340, %v1343
  %vm1345 = vweird.f32 %v870
  %vm1346 = vweird.f32 %v1340
  %vm1347 = vmor %vm1345, %vm1346
  %v1348 = vsel %vm1347, %v1340, %v1344
  %v1349 = vand.u32 2147483647, %v870
  %vm1350 = vcmp.eq.f32.partialorder %v1349, 8.507059e+37
  %v1351 = vand.u32 %v870, 2147483648
  %v1352 = vor.u32 1.1754944e-38, %v1351
  %v1353 = vsel %vm1350, %v1352, %v1348
  %v1354 = vmul.f32 1.0, %v1353
  %v1355 = vrcp.pop %v871
  %v1356 = vmul.f32 %v871, %v1355
  %v1357 = vsub.f32 1.0, %v1356
  %v1358 = vmul.f32 %v1355, %v1357
  %v1359 = vadd.f32 %v1355, %v1358
  %vm1360 = vweird.f32 %v871
  %vm1361 = vweird.f32 %v1355
  %vm1362 = vmor %vm1360, %vm1361
  %v1363 = vsel %vm1362, %v1355, %v1359
  %v1364 = vand.u32 2147483647, %v871
  %vm1365 = vcmp.eq.f32.partialorder %v1364, 8.507059e+37
  %v1366 = vand.u32 %v871, 2147483648
  %v1367 = vor.u32 1.1754944e-38, %v1366
  %v1368 = vsel %vm1365, %v1367, %v1363
  %v1369 = vmul.f32 1.0, %v1368
  %v1370 = vrcp.pop %v872
  %v1371 = vmul.f32 %v872, %v1370
  %v1372 = vsub.f32 1.0, %v1371
  %v1373 = vmul.f32 %v1370, %v1372
  %v1374 = vadd.f32 %v1370, %v1373
  %vm1375 = vweird.f32 %v872
  %vm1376 = vweird.f32 %v1370
  %vm1377 = vmor %vm1375, %vm1376
  %v1378 = vsel %vm1377, %v1370, %v1374
  %v1379 = vand.u32 2147483647, %v872
  %vm1380 = vcmp.eq.f32.partialorder %v1379, 8.507059e+37
  %v1381 = vand.u32 %v872, 2147483648
  %v1382 = vor.u32 1.1754944e-38, %v1381
  %v1383 = vsel %vm1380, %v1382, %v1378
  %v1384 = vmul.f32 1.0, %v1383
  %v1385 = vrcp.pop %v873
  %v1386 = vmul.f32 %v873, %v1385
  %v1387 = vsub.f32 1.0, %v1386
  %v1388 = vmul.f32 %v1385, %v1387
  %v1389 = vadd.f32 %v1385, %v1388
  %vm1390 = vweird.f32 %v873
  %vm1391 = vweird.f32 %v1385
  %vm1392 = vmor %vm1390, %vm1391
  %v1393 = vsel %vm1392, %v1385, %v1389
  %v1394 = vand.u32 2147483647, %v873
  %vm1395 = vcmp.eq.f32.partialorder %v1394, 8.507059e+37
  %v1396 = vand.u32 %v873, 2147483648
  %v1397 = vor.u32 1.1754944e-38, %v1396
  %v1398 = vsel %vm1395, %v1397, %v1393
  %v1399 = vmul.f32 1.0, %v1398
  %v1400 = vrcp.pop %v874
  %v1401 = vmul.f32 %v874, %v1400
  %v1402 = vsub.f32 1.0, %v1401
  %v1403 = vmul.f32 %v1400, %v1402
  %v1404 = vadd.f32 %v1400, %v1403
  %vm1405 = vweird.f32 %v874
  %vm1406 = vweird.f32 %v1400
  %vm1407 = vmor %vm1405, %vm1406
  %v1408 = vsel %vm1407, %v1400, %v1404
  %v1409 = vand.u32 2147483647, %v874
  %vm1410 = vcmp.eq.f32.partialorder %v1409, 8.507059e+37
  %v1411 = vand.u32 %v874, 2147483648
  %v1412 = vor.u32 1.1754944e-38, %v1411
  %v1413 = vsel %vm1410, %v1412, %v1408
  %v1414 = vmul.f32 1.0, %v1413
  %v1415 = vrcp.pop %v875
  %v1416 = vmul.f32 %v875, %v1415
  %v1417 = vsub.f32 1.0, %v1416
  %v1418 = vmul.f32 %v1415, %v1417
  %v1419 = vadd.f32 %v1415, %v1418
  %vm1420 = vweird.f32 %v875
  %vm1421 = vweird.f32 %v1415
  %vm1422 = vmor %vm1420, %vm1421
  %v1423 = vsel %vm1422, %v1415, %v1419
  %v1424 = vand.u32 2147483647, %v875
  %vm1425 = vcmp.eq.f32.partialorder %v1424, 8.507059e+37
  %v1426 = vand.u32 %v875, 2147483648
  %v1427 = vor.u32 1.1754944e-38, %v1426
  %v1428 = vsel %vm1425, %v1427, %v1423
  %v1429 = vmul.f32 1.0, %v1428
  %v1430 = vrcp.pop %v876
  %v1431 = vmul.f32 %v876, %v1430
  %v1432 = vsub.f32 1.0, %v1431
  %v1433 = vmul.f32 %v1430, %v1432
  %v1434 = vadd.f32 %v1430, %v1433
  %vm1435 = vweird.f32 %v876
  %vm1436 = vweird.f32 %v1430
  %vm1437 = vmor %vm1435, %vm1436
  %v1438 = vsel %vm1437, %v1430, %v1434
  %v1439 = vand.u32 2147483647, %v876
  %vm1440 = vcmp.eq.f32.partialorder %v1439, 8.507059e+37
  %v1441 = vand.u32 %v876, 2147483648
  %v1442 = vor.u32 1.1754944e-38, %v1441
  %v1443 = vsel %vm1440, %v1442, %v1438
  %v1444 = vmul.f32 1.0, %v1443
  %v1445 = vrcp.pop %v877
  %v1446 = vmul.f32 %v877, %v1445
  %v1447 = vsub.f32 1.0, %v1446
  %v1448 = vmul.f32 %v1445, %v1447
  %v1449 = vadd.f32 %v1445, %v1448
  %vm1450 = vweird.f32 %v877
  %vm1451 = vweird.f32 %v1445
  %vm1452 = vmor %vm1450, %vm1451
  %v1453 = vsel %vm1452, %v1445, %v1449
  %v1454 = vand.u32 2147483647, %v877
  %vm1455 = vcmp.eq.f32.partialorder %v1454, 8.507059e+37
  %v1456 = vand.u32 %v877, 2147483648
  %v1457 = vor.u32 1.1754944e-38, %v1456
  %v1458 = vsel %vm1455, %v1457, %v1453
  %v1459 = vmul.f32 1.0, %v1458
  %v1460 = vrcp.pop %v878
  %v1461 = vmul.f32 %v878, %v1460
  %v1462 = vsub.f32 1.0, %v1461
  %v1463 = vmul.f32 %v1460, %v1462
  %v1464 = vadd.f32 %v1460, %v1463
  %vm1465 = vweird.f32 %v878
  %vm1466 = vweird.f32 %v1460
  %vm1467 = vmor %vm1465, %vm1466
  %v1468 = vsel %vm1467, %v1460, %v1464
  %v1469 = vand.u32 2147483647, %v878
  %vm1470 = vcmp.eq.f32.partialorder %v1469, 8.507059e+37
  %v1471 = vand.u32 %v878, 2147483648
  %v1472 = vor.u32 1.1754944e-38, %v1471
  %v1473 = vsel %vm1470, %v1472, %v1468
  %v1474 = vmul.f32 1.0, %v1473
  %v1475 = vrcp.pop %v879
  %v1476 = vmul.f32 %v879, %v1475
  %v1477 = vsub.f32 1.0, %v1476
  %v1478 = vmul.f32 %v1475, %v1477
  %v1479 = vadd.f32 %v1475, %v1478
  %vm1480 = vweird.f32 %v879
  %vm1481 = vweird.f32 %v1475
  %vm1482 = vmor %vm1480, %vm1481
  %v1483 = vsel %vm1482, %v1475, %v1479
  %v1484 = vand.u32 2147483647, %v879
  %vm1485 = vcmp.eq.f32.partialorder %v1484, 8.507059e+37
  %v1486 = vand.u32 %v879, 2147483648
  %v1487 = vor.u32 1.1754944e-38, %v1486
  %v1488 = vsel %vm1485, %v1487, %v1483
  %v1489 = vmul.f32 1.0, %v1488
  %v1490 = vrcp.pop %v880
  %v1491 = vmul.f32 %v880, %v1490
  %v1492 = vsub.f32 1.0, %v1491
  %v1493 = vmul.f32 %v1490, %v1492
  %v1494 = vadd.f32 %v1490, %v1493
  %vm1495 = vweird.f32 %v880
  %vm1496 = vweird.f32 %v1490
  %vm1497 = vmor %vm1495, %vm1496
  %v1498 = vsel %vm1497, %v1490, %v1494
  %v1499 = vand.u32 2147483647, %v880
  %vm1500 = vcmp.eq.f32.partialorder %v1499, 8.507059e+37
  %v1501 = vand.u32 %v880, 2147483648
  %v1502 = vor.u32 1.1754944e-38, %v1501
  %v1503 = vsel %vm1500, %v1502, %v1498
  %v1504 = vmul.f32 1.0, %v1503
  %v1505 = vrcp.pop %v881
  %v1506 = vmul.f32 %v881, %v1505
  %v1507 = vsub.f32 1.0, %v1506
  %v1508 = vmul.f32 %v1505, %v1507
  %v1509 = vadd.f32 %v1505, %v1508
  %vm1510 = vweird.f32 %v881
  %vm1511 = vweird.f32 %v1505
  %vm1512 = vmor %vm1510, %vm1511
  %v1513 = vsel %vm1512, %v1505, %v1509
  %v1514 = vand.u32 2147483647, %v881
  %vm1515 = vcmp.eq.f32.partialorder %v1514, 8.507059e+37
  %v1516 = vand.u32 %v881, 2147483648
  %v1517 = vor.u32 1.1754944e-38, %v1516
  %v1518 = vsel %vm1515, %v1517, %v1513
  %v1519 = vmul.f32 1.0, %v1518
  %v1520 = vrcp.pop %v882
  %v1521 = vmul.f32 %v882, %v1520
  %v1522 = vsub.f32 1.0, %v1521
  %v1523 = vmul.f32 %v1520, %v1522
  %v1524 = vadd.f32 %v1520, %v1523
  %vm1525 = vweird.f32 %v882
  %vm1526 = vweird.f32 %v1520
  %vm1527 = vmor %vm1525, %vm1526
  %v1528 = vsel %vm1527, %v1520, %v1524
  %v1529 = vand.u32 2147483647, %v882
  %vm1530 = vcmp.eq.f32.partialorder %v1529, 8.507059e+37
  %v1531 = vand.u32 %v882, 2147483648
  %v1532 = vor.u32 1.1754944e-38, %v1531
  %v1533 = vsel %vm1530, %v1532, %v1528
  %v1534 = vmul.f32 1.0, %v1533
  %v1535 = vrcp.pop %v883
  %v1536 = vmul.f32 %v883, %v1535
  %v1537 = vsub.f32 1.0, %v1536
  %v1538 = vmul.f32 %v1535, %v1537
  %v1539 = vadd.f32 %v1535, %v1538
  %vm1540 = vweird.f32 %v883
  %vm1541 = vweird.f32 %v1535
  %vm1542 = vmor %vm1540, %vm1541
  %v1543 = vsel %vm1542, %v1535, %v1539
  %v1544 = vand.u32 2147483647, %v883
  %vm1545 = vcmp.eq.f32.partialorder %v1544, 8.507059e+37
  %v1546 = vand.u32 %v883, 2147483648
  %v1547 = vor.u32 1.1754944e-38, %v1546
  %v1548 = vsel %vm1545, %v1547, %v1543
  %v1549 = vmul.f32 1.0, %v1548
  %v1550 = vrcp.pop %v884
  %v1551 = vmul.f32 %v884, %v1550
  %v1552 = vsub.f32 1.0, %v1551
  %v1553 = vmul.f32 %v1550, %v1552
  %v1554 = vadd.f32 %v1550, %v1553
  %vm1555 = vweird.f32 %v884
  %vm1556 = vweird.f32 %v1550
  %vm1557 = vmor %vm1555, %vm1556
  %v1558 = vsel %vm1557, %v1550, %v1554
  %v1559 = vand.u32 2147483647, %v884
  %vm1560 = vcmp.eq.f32.partialorder %v1559, 8.507059e+37
  %v1561 = vand.u32 %v884, 2147483648
  %v1562 = vor.u32 1.1754944e-38, %v1561
  %v1563 = vsel %vm1560, %v1562, %v1558
  %v1564 = vmul.f32 1.0, %v1563
  %v1565 = vrcp.pop %v885
  %v1566 = vmul.f32 %v885, %v1565
  %v1567 = vsub.f32 1.0, %v1566
  %v1568 = vmul.f32 %v1565, %v1567
  %v1569 = vadd.f32 %v1565, %v1568
  %vm1570 = vweird.f32 %v885
  %vm1571 = vweird.f32 %v1565
  %vm1572 = vmor %vm1570, %vm1571
  %v1573 = vsel %vm1572, %v1565, %v1569
  %v1574 = vand.u32 2147483647, %v885
  %vm1575 = vcmp.eq.f32.partialorder %v1574, 8.507059e+37
  %v1576 = vand.u32 %v885, 2147483648
  %v1577 = vor.u32 1.1754944e-38, %v1576
  %v1578 = vsel %vm1575, %v1577, %v1573
  %v1579 = vmul.f32 1.0, %v1578
  %v1580 = vrcp.pop %v886
  %v1581 = vmul.f32 %v886, %v1580
  %v1582 = vsub.f32 1.0, %v1581
  %v1583 = vmul.f32 %v1580, %v1582
  %v1584 = vadd.f32 %v1580, %v1583
  %vm1585 = vweird.f32 %v886
  %vm1586 = vweird.f32 %v1580
  %vm1587 = vmor %vm1585, %vm1586
  %v1588 = vsel %vm1587, %v1580, %v1584
  %v1589 = vand.u32 2147483647, %v886
  %vm1590 = vcmp.eq.f32.partialorder %v1589, 8.507059e+37
  %v1591 = vand.u32 %v886, 2147483648
  %v1592 = vor.u32 1.1754944e-38, %v1591
  %v1593 = vsel %vm1590, %v1592, %v1588
  %v1594 = vmul.f32 1.0, %v1593
  %v1595 = vrcp.pop %v887
  %v1596 = vmul.f32 %v887, %v1595
  %v1597 = vsub.f32 1.0, %v1596
  %v1598 = vmul.f32 %v1595, %v1597
  %v1599 = vadd.f32 %v1595, %v1598
  %vm1600 = vweird.f32 %v887
  %vm1601 = vweird.f32 %v1595
  %vm1602 = vmor %vm1600, %vm1601
  %v1603 = vsel %vm1602, %v1595, %v1599
  %v1604 = vand.u32 2147483647, %v887
  %vm1605 = vcmp.eq.f32.partialorder %v1604, 8.507059e+37
  %v1606 = vand.u32 %v887, 2147483648
  %v1607 = vor.u32 1.1754944e-38, %v1606
  %v1608 = vsel %vm1605, %v1607, %v1603
  %v1609 = vmul.f32 1.0, %v1608
  %v1610 = vrcp.pop %v888
  %v1611 = vmul.f32 %v888, %v1610
  %v1612 = vsub.f32 1.0, %v1611
  %v1613 = vmul.f32 %v1610, %v1612
  %v1614 = vadd.f32 %v1610, %v1613
  %vm1615 = vweird.f32 %v888
  %vm1616 = vweird.f32 %v1610
  %vm1617 = vmor %vm1615, %vm1616
  %v1618 = vsel %vm1617, %v1610, %v1614
  %v1619 = vand.u32 2147483647, %v888
  %vm1620 = vcmp.eq.f32.partialorder %v1619, 8.507059e+37
  %v1621 = vand.u32 %v888, 2147483648
  %v1622 = vor.u32 1.1754944e-38, %v1621
  %v1623 = vsel %vm1620, %v1622, %v1618
  %v1624 = vmul.f32 1.0, %v1623
  %v1625 = vrcp.pop %v889
  %v1626 = vmul.f32 %v889, %v1625
  %v1627 = vsub.f32 1.0, %v1626
  %v1628 = vmul.f32 %v1625, %v1627
  %v1629 = vadd.f32 %v1625, %v1628
  %vm1630 = vweird.f32 %v889
  %vm1631 = vweird.f32 %v1625
  %vm1632 = vmor %vm1630, %vm1631
  %v1633 = vsel %vm1632, %v1625, %v1629
  %v1634 = vand.u32 2147483647, %v889
  %vm1635 = vcmp.eq.f32.partialorder %v1634, 8.507059e+37
  %v1636 = vand.u32 %v889, 2147483648
  %v1637 = vor.u32 1.1754944e-38, %v1636
  %v1638 = vsel %vm1635, %v1637, %v1633
  %v1639 = vmul.f32 1.0, %v1638
  %v1640 = vrcp.pop %v890
  %v1641 = vmul.f32 %v890, %v1640
  %v1642 = vsub.f32 1.0, %v1641
  %v1643 = vmul.f32 %v1640, %v1642
  %v1644 = vadd.f32 %v1640, %v1643
  %vm1645 = vweird.f32 %v890
  %vm1646 = vweird.f32 %v1640
  %vm1647 = vmor %vm1645, %vm1646
  %v1648 = vsel %vm1647, %v1640, %v1644
  %v1649 = vand.u32 2147483647, %v890
  %vm1650 = vcmp.eq.f32.partialorder %v1649, 8.507059e+37
  %v1651 = vand.u32 %v890, 2147483648
  %v1652 = vor.u32 1.1754944e-38, %v1651
  %v1653 = vsel %vm1650, %v1652, %v1648
  %v1654 = vmul.f32 1.0, %v1653
  %v1655 = vrcp.pop %v891
  %v1656 = vmul.f32 %v891, %v1655
  %v1657 = vsub.f32 1.0, %v1656
  %v1658 = vmul.f32 %v1655, %v1657
  %v1659 = vadd.f32 %v1655, %v1658
  %vm1660 = vweird.f32 %v891
  %vm1661 = vweird.f32 %v1655
  %vm1662 = vmor %vm1660, %vm1661
  %v1663 = vsel %vm1662, %v1655, %v1659
  %v1664 = vand.u32 2147483647, %v891
  %vm1665 = vcmp.eq.f32.partialorder %v1664, 8.507059e+37
  %v1666 = vand.u32 %v891, 2147483648
  %v1667 = vor.u32 1.1754944e-38, %v1666
  %v1668 = vsel %vm1665, %v1667, %v1663
  %v1669 = vmul.f32 1.0, %v1668
  %v1670 = vrcp.pop %v892
  %v1671 = vmul.f32 %v892, %v1670
  %v1672 = vsub.f32 1.0, %v1671
  %v1673 = vmul.f32 %v1670, %v1672
  %v1674 = vadd.f32 %v1670, %v1673
  %vm1675 = vweird.f32 %v892
  %vm1676 = vweird.f32 %v1670
  %vm1677 = vmor %vm1675, %vm1676
  %v1678 = vsel %vm1677, %v1670, %v1674
  %v1679 = vand.u32 2147483647, %v892
  %vm1680 = vcmp.eq.f32.partialorder %v1679, 8.507059e+37
  %v1681 = vand.u32 %v892, 2147483648
  %v1682 = vor.u32 1.1754944e-38, %v1681
  %v1683 = vsel %vm1680, %v1682, %v1678
  %v1684 = vmul.f32 1.0, %v1683
  %v1685 = vrcp.pop %v893
  %v1686 = vmul.f32 %v893, %v1685
  %v1687 = vsub.f32 1.0, %v1686
  %v1688 = vmul.f32 %v1685, %v1687
  %v1689 = vadd.f32 %v1685, %v1688
  %vm1690 = vweird.f32 %v893
  %vm1691 = vweird.f32 %v1685
  %vm1692 = vmor %vm1690, %vm1691
  %v1693 = vsel %vm1692, %v1685, %v1689
  %v1694 = vand.u32 2147483647, %v893
  %vm1695 = vcmp.eq.f32.partialorder %v1694, 8.507059e+37
  %v1696 = vand.u32 %v893, 2147483648
  %v1697 = vor.u32 1.1754944e-38, %v1696
  %v1698 = vsel %vm1695, %v1697, %v1693
  %v1699 = vmul.f32 1.0, %v1698
  %v1700 = vrcp.pop %v894
  %v1701 = vmul.f32 %v894, %v1700
  %v1702 = vsub.f32 1.0, %v1701
  %v1703 = vmul.f32 %v1700, %v1702
  %v1704 = vadd.f32 %v1700, %v1703
  %vm1705 = vweird.f32 %v894
  %vm1706 = vweird.f32 %v1700
  %vm1707 = vmor %vm1705, %vm1706
  %v1708 = vsel %vm1707, %v1700, %v1704
  %v1709 = vand.u32 2147483647, %v894
  %vm1710 = vcmp.eq.f32.partialorder %v1709, 8.507059e+37
  %v1711 = vand.u32 %v894, 2147483648
  %v1712 = vor.u32 1.1754944e-38, %v1711
  %v1713 = vsel %vm1710, %v1712, %v1708
  %v1714 = vmul.f32 1.0, %v1713
  %v1715 = vrcp.pop %v895
  %v1716 = vmul.f32 %v895, %v1715
  %v1717 = vsub.f32 1.0, %v1716
  %v1718 = vmul.f32 %v1715, %v1717
  %v1719 = vadd.f32 %v1715, %v1718
  %vm1720 = vweird.f32 %v895
  %vm1721 = vweird.f32 %v1715
  %vm1722 = vmor %vm1720, %vm1721
  %v1723 = vsel %vm1722, %v1715, %v1719
  %v1724 = vand.u32 2147483647, %v895
  %vm1725 = vcmp.eq.f32.partialorder %v1724, 8.507059e+37
  %v1726 = vand.u32 %v895, 2147483648
  %v1727 = vor.u32 1.1754944e-38, %v1726
  %v1728 = vsel %vm1725, %v1727, %v1723
  %v1729 = vmul.f32 1.0, %v1728
  %v1730 = vrcp.pop %v896
  %v1731 = vmul.f32 %v896, %v1730
  %v1732 = vsub.f32 1.0, %v1731
  %v1733 = vmul.f32 %v1730, %v1732
  %v1734 = vadd.f32 %v1730, %v1733
  %vm1735 = vweird.f32 %v896
  %vm1736 = vweird.f32 %v1730
  %vm1737 = vmor %vm1735, %vm1736
  %v1738 = vsel %vm1737, %v1730, %v1734
  %v1739 = vand.u32 2147483647, %v896
  %vm1740 = vcmp.eq.f32.partialorder %v1739, 8.507059e+37
  %v1741 = vand.u32 %v896, 2147483648
  %v1742 = vor.u32 1.1754944e-38, %v1741
  %v1743 = vsel %vm1740, %v1742, %v1738
  %v1744 = vmul.f32 1.0, %v1743
  %v1745 = vrcp.pop %v897
  %v1746 = vmul.f32 %v897, %v1745
  %v1747 = vsub.f32 1.0, %v1746
  %v1748 = vmul.f32 %v1745, %v1747
  %v1749 = vadd.f32 %v1745, %v1748
  %vm1750 = vweird.f32 %v897
  %vm1751 = vweird.f32 %v1745
  %vm1752 = vmor %vm1750, %vm1751
  %v1753 = vsel %vm1752, %v1745, %v1749
  %v1754 = vand.u32 2147483647, %v897
  %vm1755 = vcmp.eq.f32.partialorder %v1754, 8.507059e+37
  %v1756 = vand.u32 %v897, 2147483648
  %v1757 = vor.u32 1.1754944e-38, %v1756
  %v1758 = vsel %vm1755, %v1757, %v1753
  %v1759 = vmul.f32 1.0, %v1758
  %v1760 = vrcp.pop %v898
  %v1761 = vmul.f32 %v898, %v1760
  %v1762 = vsub.f32 1.0, %v1761
  %v1763 = vmul.f32 %v1760, %v1762
  %v1764 = vadd.f32 %v1760, %v1763
  %vm1765 = vweird.f32 %v898
  %vm1766 = vweird.f32 %v1760
  %vm1767 = vmor %vm1765, %vm1766
  %v1768 = vsel %vm1767, %v1760, %v1764
  %v1769 = vand.u32 2147483647, %v898
  %vm1770 = vcmp.eq.f32.partialorder %v1769, 8.507059e+37
  %v1771 = vand.u32 %v898, 2147483648
  %v1772 = vor.u32 1.1754944e-38, %v1771
  %v1773 = vsel %vm1770, %v1772, %v1768
  %v1774 = vmul.f32 1.0, %v1773
  %v1775 = vrcp.pop %v899
  %v1776 = vmul.f32 %v899, %v1775
  %v1777 = vsub.f32 1.0, %v1776
  %v1778 = vmul.f32 %v1775, %v1777
  %v1779 = vadd.f32 %v1775, %v1778
  %vm1780 = vweird.f32 %v899
  %vm1781 = vweird.f32 %v1775
  %vm1782 = vmor %vm1780, %vm1781
  %v1783 = vsel %vm1782, %v1775, %v1779
  %v1784 = vand.u32 2147483647, %v899
  %vm1785 = vcmp.eq.f32.partialorder %v1784, 8.507059e+37
  %v1786 = vand.u32 %v899, 2147483648
  %v1787 = vor.u32 1.1754944e-38, %v1786
  %v1788 = vsel %vm1785, %v1787, %v1783
  %v1789 = vmul.f32 1.0, %v1788
  %v1790 = vrcp.pop %v900
  %v1791 = vmul.f32 %v900, %v1790
  %v1792 = vsub.f32 1.0, %v1791
  %v1793 = vmul.f32 %v1790, %v1792
  %v1794 = vadd.f32 %v1790, %v1793
  %vm1795 = vweird.f32 %v900
  %vm1796 = vweird.f32 %v1790
  %vm1797 = vmor %vm1795, %vm1796
  %v1798 = vsel %vm1797, %v1790, %v1794
  %v1799 = vand.u32 2147483647, %v900
  %vm1800 = vcmp.eq.f32.partialorder %v1799, 8.507059e+37
  %v1801 = vand.u32 %v900, 2147483648
  %v1802 = vor.u32 1.1754944e-38, %v1801
  %v1803 = vsel %vm1800, %v1802, %v1798
  %v1804 = vmul.f32 1.0, %v1803
  %v1805 = vrcp.pop %v901
  %v1806 = vmul.f32 %v901, %v1805
  %v1807 = vsub.f32 1.0, %v1806
  %v1808 = vmul.f32 %v1805, %v1807
  %v1809 = vadd.f32 %v1805, %v1808
  %vm1810 = vweird.f32 %v901
  %vm1811 = vweird.f32 %v1805
  %vm1812 = vmor %vm1810, %vm1811
  %v1813 = vsel %vm1812, %v1805, %v1809
  %v1814 = vand.u32 2147483647, %v901
  %vm1815 = vcmp.eq.f32.partialorder %v1814, 8.507059e+37
  %v1816 = vand.u32 %v901, 2147483648
  %v1817 = vor.u32 1.1754944e-38, %v1816
  %v1818 = vsel %vm1815, %v1817, %v1813
  %v1819 = vmul.f32 1.0, %v1818
  %v1820 = vrcp.pop %v902
  %v1821 = vmul.f32 %v902, %v1820
  %v1822 = vsub.f32 1.0, %v1821
  %v1823 = vmul.f32 %v1820, %v1822
  %v1824 = vadd.f32 %v1820, %v1823
  %vm1825 = vweird.f32 %v902
  %vm1826 = vweird.f32 %v1820
  %vm1827 = vmor %vm1825, %vm1826
  %v1828 = vsel %vm1827, %v1820, %v1824
  %v1829 = vand.u32 2147483647, %v902
  %vm1830 = vcmp.eq.f32.partialorder %v1829, 8.507059e+37
  %v1831 = vand.u32 %v902, 2147483648
  %v1832 = vor.u32 1.1754944e-38, %v1831
  %v1833 = vsel %vm1830, %v1832, %v1828
  %v1834 = vmul.f32 1.0, %v1833
  %v1835 = vrcp.pop %v903
  %v1836 = vmul.f32 %v903, %v1835
  %v1837 = vsub.f32 1.0, %v1836
  %v1838 = vmul.f32 %v1835, %v1837
  %v1839 = vadd.f32 %v1835, %v1838
  %vm1840 = vweird.f32 %v903
  %vm1841 = vweird.f32 %v1835
  %vm1842 = vmor %vm1840, %vm1841
  %v1843 = vsel %vm1842, %v1835, %v1839
  %v1844 = vand.u32 2147483647, %v903
  %vm1845 = vcmp.eq.f32.partialorder %v1844, 8.507059e+37
  %v1846 = vand.u32 %v903, 2147483648
  %v1847 = vor.u32 1.1754944e-38, %v1846
  %v1848 = vsel %vm1845, %v1847, %v1843
  %v1849 = vmul.f32 1.0, %v1848
  %v1850 = vrcp.pop %v904
  %v1851 = vmul.f32 %v904, %v1850
  %v1852 = vsub.f32 1.0, %v1851
  %v1853 = vmul.f32 %v1850, %v1852
  %v1854 = vadd.f32 %v1850, %v1853
  %vm1855 = vweird.f32 %v904
  %vm1856 = vweird.f32 %v1850
  %vm1857 = vmor %vm1855, %vm1856
  %v1858 = vsel %vm1857, %v1850, %v1854
  %v1859 = vand.u32 2147483647, %v904
  %vm1860 = vcmp.eq.f32.partialorder %v1859, 8.507059e+37
  %v1861 = vand.u32 %v904, 2147483648
  %v1862 = vor.u32 1.1754944e-38, %v1861
  %v1863 = vsel %vm1860, %v1862, %v1858
  %v1864 = vmul.f32 1.0, %v1863
  %v1865 = vmul.f32 %v585, %v919
  %v1866 = vmul.f32 %v586, %v934
  %v1867 = vmul.f32 %v587, %v949
  %v1868 = vmul.f32 %v588, %v964
  %v1869 = vmul.f32 %v589, %v979
  %v1870 = vmul.f32 %v590, %v994
  %v1871 = vmul.f32 %v591, %v1009
  %v1872 = vmul.f32 %v592, %v1024
  %v1873 = vmul.f32 %v593, %v1039
  %v1874 = vmul.f32 %v594, %v1054
  %v1875 = vmul.f32 %v595, %v1069
  %v1876 = vmul.f32 %v596, %v1084
  %v1877 = vmul.f32 %v597, %v1099
  %v1878 = vmul.f32 %v598, %v1114
  %v1879 = vmul.f32 %v599, %v1129
  %v1880 = vmul.f32 %v600, %v1144
  %v1881 = vmul.f32 %v601, %v1159
  %v1882 = vmul.f32 %v602, %v1174
  %v1883 = vmul.f32 %v603, %v1189
  %v1884 = vmul.f32 %v604, %v1204
  %v1885 = vmul.f32 %v605, %v1219
  %v1886 = vmul.f32 %v606, %v1234
  %v1887 = vmul.f32 %v607, %v1249
  %v1888 = vmul.f32 %v608, %v1264
  %v1889 = vmul.f32 %v609, %v1279
  %v1890 = vmul.f32 %v610, %v1294
  %v1891 = vmul.f32 %v611, %v1309
  %v1892 = vmul.f32 %v612, %v1324
  %v1893 = vmul.f32 %v613, %v1339
  %v1894 = vmul.f32 %v614, %v1354
  %v1895 = vmul.f32 %v615, %v1369
  %v1896 = vmul.f32 %v616, %v1384
  %v1897 = vmul.f32 %v617, %v1399
  %v1898 = vmul.f32 %v618, %v1414
  %v1899 = vmul.f32 %v619, %v1429
  %v1900 = vmul.f32 %v620, %v1444
  %v1901 = vmul.f32 %v621, %v1459
  %v1902 = vmul.f32 %v622, %v1474
  %v1903 = vmul.f32 %v623, %v1489
  %v1904 = vmul.f32 %v624, %v1504
  %v1905 = vmul.f32 %v625, %v1519
  %v1906 = vmul.f32 %v626, %v1534
  %v1907 = vmul.f32 %v627, %v1549
  %v1908 = vmul.f32 %v628, %v1564
  %v1909 = vmul.f32 %v629, %v1579
  %v1910 = vmul.f32 %v630, %v1594
  %v1911 = vmul.f32 %v631, %v1609
  %v1912 = vmul.f32 %v632, %v1624
  %v1913 = vmul.f32 %v633, %v1639
  %v1914 = vmul.f32 %v634, %v1654
  %v1915 = vmul.f32 %v635, %v1669
  %v1916 = vmul.f32 %v636, %v1684
  %v1917 = vmul.f32 %v637, %v1699
  %v1918 = vmul.f32 %v638, %v1714
  %v1919 = vmul.f32 %v639, %v1729
  %v1920 = vmul.f32 %v640, %v1744
  %v1921 = vmul.f32 %v641, %v1759
  %v1922 = vmul.f32 %v642, %v1774
  %v1923 = vmul.f32 %v643, %v1789
  %v1924 = vmul.f32 %v644, %v1804
  %v1925 = vmul.f32 %v645, %v1819
  %v1926 = vmul.f32 %v646, %v1834
  %v1927 = vmul.f32 %v647, %v1849
  %v1928 = vmul.f32 %v648, %v1864
  %v1929 = vpack.c.bf16 %v1865, %v1865
  %v1930 = vpack.c.bf16 %v1866, %v1866
  %v1931 = vpack.c.bf16 %v1867, %v1867
  %v1932 = vpack.c.bf16 %v1868, %v1868
  %v1933 = vpack.c.bf16 %v1869, %v1869
  %v1934 = vpack.c.bf16 %v1870, %v1870
  %v1935 = vpack.c.bf16 %v1871, %v1871
  %v1936 = vpack.c.bf16 %v1872, %v1872
  %v1937 = vpack.c.bf16 %v1873, %v1873
  %v1938 = vpack.c.bf16 %v1874, %v1874
  %v1939 = vpack.c.bf16 %v1875, %v1875
  %v1940 = vpack.c.bf16 %v1876, %v1876
  %v1941 = vpack.c.bf16 %v1877, %v1877
  %v1942 = vpack.c.bf16 %v1878, %v1878
  %v1943 = vpack.c.bf16 %v1879, %v1879
  %v1944 = vpack.c.bf16 %v1880, %v1880
  %v1945 = vpack.c.bf16 %v1881, %v1881
  %v1946 = vpack.c.bf16 %v1882, %v1882
  %v1947 = vpack.c.bf16 %v1883, %v1883
  %v1948 = vpack.c.bf16 %v1884, %v1884
  %v1949 = vpack.c.bf16 %v1885, %v1885
  %v1950 = vpack.c.bf16 %v1886, %v1886
  %v1951 = vpack.c.bf16 %v1887, %v1887
  %v1952 = vpack.c.bf16 %v1888, %v1888
  %v1953 = vpack.c.bf16 %v1889, %v1889
  %v1954 = vpack.c.bf16 %v1890, %v1890
  %v1955 = vpack.c.bf16 %v1891, %v1891
  %v1956 = vpack.c.bf16 %v1892, %v1892
  %v1957 = vpack.c.bf16 %v1893, %v1893
  %v1958 = vpack.c.bf16 %v1894, %v1894
  %v1959 = vpack.c.bf16 %v1895, %v1895
  %v1960 = vpack.c.bf16 %v1896, %v1896
  %v1961 = vpack.c.bf16 %v1897, %v1897
  %v1962 = vpack.c.bf16 %v1898, %v1898
  %v1963 = vpack.c.bf16 %v1899, %v1899
  %v1964 = vpack.c.bf16 %v1900, %v1900
  %v1965 = vpack.c.bf16 %v1901, %v1901
  %v1966 = vpack.c.bf16 %v1902, %v1902
  %v1967 = vpack.c.bf16 %v1903, %v1903
  %v1968 = vpack.c.bf16 %v1904, %v1904
  %v1969 = vpack.c.bf16 %v1905, %v1905
  %v1970 = vpack.c.bf16 %v1906, %v1906
  %v1971 = vpack.c.bf16 %v1907, %v1907
  %v1972 = vpack.c.bf16 %v1908, %v1908
  %v1973 = vpack.c.bf16 %v1909, %v1909
  %v1974 = vpack.c.bf16 %v1910, %v1910
  %v1975 = vpack.c.bf16 %v1911, %v1911
  %v1976 = vpack.c.bf16 %v1912, %v1912
  %v1977 = vpack.c.bf16 %v1913, %v1913
  %v1978 = vpack.c.bf16 %v1914, %v1914
  %v1979 = vpack.c.bf16 %v1915, %v1915
  %v1980 = vpack.c.bf16 %v1916, %v1916
  %v1981 = vpack.c.bf16 %v1917, %v1917
  %v1982 = vpack.c.bf16 %v1918, %v1918
  %v1983 = vpack.c.bf16 %v1919, %v1919
  %v1984 = vpack.c.bf16 %v1920, %v1920
  %v1985 = vpack.c.bf16 %v1921, %v1921
  %v1986 = vpack.c.bf16 %v1922, %v1922
  %v1987 = vpack.c.bf16 %v1923, %v1923
  %v1988 = vpack.c.bf16 %v1924, %v1924
  %v1989 = vpack.c.bf16 %v1925, %v1925
  %v1990 = vpack.c.bf16 %v1926, %v1926
  %v1991 = vpack.c.bf16 %v1927, %v1927
  %v1992 = vpack.c.bf16 %v1928, %v1928
  %1993 = vst [vmem:[%s4] sm:$0xf] %v1929
  %1994 = vst [vmem:[%s4 + $0x4] sm:$0xf] %v1930
  %1995 = vst [vmem:[%s4 + $0x8] sm:$0xf] %v1931
  %1996 = vst [vmem:[%s4 + $0xc] sm:$0xf] %v1932
  %1997 = vst [vmem:[%s4 + $0x10] sm:$0xf] %v1933
  %1998 = vst [vmem:[%s4 + $0x14] sm:$0xf] %v1934
  %1999 = vst [vmem:[%s4 + $0x18] sm:$0xf] %v1935
  %2000 = vst [vmem:[%s4 + $0x1c] sm:$0xf] %v1936
  %2001 = vst [vmem:[%s4 + $0x20] sm:$0xf] %v1937
  %2002 = vst [vmem:[%s4 + $0x24] sm:$0xf] %v1938
  %2003 = vst [vmem:[%s4 + $0x28] sm:$0xf] %v1939
  %2004 = vst [vmem:[%s4 + $0x2c] sm:$0xf] %v1940
  %2005 = vst [vmem:[%s4 + $0x30] sm:$0xf] %v1941
  %2006 = vst [vmem:[%s4 + $0x34] sm:$0xf] %v1942
  %2007 = vst [vmem:[%s4 + $0x38] sm:$0xf] %v1943
  %2008 = vst [vmem:[%s4 + $0x3c] sm:$0xf] %v1944
  %2009 = vst [vmem:[%s4 + $0x40] sm:$0xf] %v1945
  %2010 = vst [vmem:[%s4 + $0x44] sm:$0xf] %v1946
  %2011 = vst [vmem:[%s4 + $0x48] sm:$0xf] %v1947
  %2012 = vst [vmem:[%s4 + $0x4c] sm:$0xf] %v1948
  %2013 = vst [vmem:[%s4 + $0x50] sm:$0xf] %v1949
  %2014 = vst [vmem:[%s4 + $0x54] sm:$0xf] %v1950
  %2015 = vst [vmem:[%s4 + $0x58] sm:$0xf] %v1951
  %2016 = vst [vmem:[%s4 + $0x5c] sm:$0xf] %v1952
  %2017 = vst [vmem:[%s4 + $0x60] sm:$0xf] %v1953
  %2018 = vst [vmem:[%s4 + $0x64] sm:$0xf] %v1954
  %2019 = vst [vmem:[%s4 + $0x68] sm:$0xf] %v1955
  %2020 = vst [vmem:[%s4 + $0x6c] sm:$0xf] %v1956
  %2021 = vst [vmem:[%s4 + $0x70] sm:$0xf] %v1957
  %2022 = vst [vmem:[%s4 + $0x74] sm:$0xf] %v1958
  %2023 = vst [vmem:[%s4 + $0x78] sm:$0xf] %v1959
  %2024 = vst [vmem:[%s4 + $0x7c] sm:$0xf] %v1960
  %2025 = vst [vmem:[%s4 + $0x80] sm:$0xf] %v1961
  %2026 = vst [vmem:[%s4 + $0x84] sm:$0xf] %v1962
  %2027 = vst [vmem:[%s4 + $0x88] sm:$0xf] %v1963
  %2028 = vst [vmem:[%s4 + $0x8c] sm:$0xf] %v1964
  %2029 = vst [vmem:[%s4 + $0x90] sm:$0xf] %v1965
  %2030 = vst [vmem:[%s4 + $0x94] sm:$0xf] %v1966
  %2031 = vst [vmem:[%s4 + $0x98] sm:$0xf] %v1967
  %2032 = vst [vmem:[%s4 + $0x9c] sm:$0xf] %v1968
  %2033 = vst [vmem:[%s4 + $0xa0] sm:$0xf] %v1969
  %2034 = vst [vmem:[%s4 + $0xa4] sm:$0xf] %v1970
  %2035 = vst [vmem:[%s4 + $0xa8] sm:$0xf] %v1971
  %2036 = vst [vmem:[%s4 + $0xac] sm:$0xf] %v1972
  %2037 = vst [vmem:[%s4 + $0xb0] sm:$0xf] %v1973
  %2038 = vst [vmem:[%s4 + $0xb4] sm:$0xf] %v1974
  %2039 = vst [vmem:[%s4 + $0xb8] sm:$0xf] %v1975
  %2040 = vst [vmem:[%s4 + $0xbc] sm:$0xf] %v1976
  %2041 = vst [vmem:[%s4 + $0xc0] sm:$0xf] %v1977
  %2042 = vst [vmem:[%s4 + $0xc4] sm:$0xf] %v1978
  %2043 = vst [vmem:[%s4 + $0xc8] sm:$0xf] %v1979
  %2044 = vst [vmem:[%s4 + $0xcc] sm:$0xf] %v1980
  %2045 = vst [vmem:[%s4 + $0xd0] sm:$0xf] %v1981
  %2046 = vst [vmem:[%s4 + $0xd4] sm:$0xf] %v1982
  %2047 = vst [vmem:[%s4 + $0xd8] sm:$0xf] %v1983
  %2048 = vst [vmem:[%s4 + $0xdc] sm:$0xf] %v1984
  %2049 = vst [vmem:[%s4 + $0xe0] sm:$0xf] %v1985
  %2050 = vst [vmem:[%s4 + $0xe4] sm:$0xf] %v1986
  %2051 = vst [vmem:[%s4 + $0xe8] sm:$0xf] %v1987
  %2052 = vst [vmem:[%s4 + $0xec] sm:$0xf] %v1988
  %2053 = vst [vmem:[%s4 + $0xf0] sm:$0xf] %v1989
  %2054 = vst [vmem:[%s4 + $0xf4] sm:$0xf] %v1990
  %2055 = vst [vmem:[%s4 + $0xf8] sm:$0xf] %v1991
  %2056 = vst [vmem:[%s4 + $0xfc] sm:$0xf] %v1992
  // Predicated region
  $region18: #{inverted_residual_block.3} parent=0 // pred_check
    _
  $region19: #{inverted_residual_block.3} parent=0 // pred_check_branch
    %2058 = sbr.rel (0) target = $region21
  $region20: #{inverted_residual_block.3} parent=0 // pred_region
    _
  $region21: #{inverted_residual_block.3} parent=0 // pred_fallthru
    _
  // Predicated region
  $region22: #{inverted_residual_block.3} parent=0 // pred_check
    _
  $region23: #{inverted_residual_block.3} parent=0 // pred_check_branch
    %2060 = sbr.rel (0) target = $region25
  $region24: #{inverted_residual_block.3} parent=0 // pred_region
    _
  $region25: #{inverted_residual_block.3} parent=0 // pred_fallthru
    _

// kernel: inverted_residual_block.4
$region0: #{inverted_residual_block.4}
  #allocation0 [shape = 'u32[]', space=smem, size = 0x4, offset = 0x4, fixed_abs, tag = 'smem constant byte address 0x4 - core index']
  #allocation1 [shape = 'u32[72,128]{1,0:T(1,128)}', space=vmem, size = 0x9000, scoped, tag = 'internal scratch']
  %s0 = inlined_call_operand.vmem [shape: bf16[2,16,16,128], index: 0, kind: input, shape index: {}, may-alias: {0,1,2}]
  %s1 = inlined_call_operand.vmem [shape: bf16[2,16,16,128], index: 1, kind: input, shape index: {}, may-alias: {0,1,2}]
  %s2 = inlined_call_operand.vmem [shape: bf16[2,16,16,128], index: 2, kind: input, shape index: {}, may-alias: {0,1,2}]
  %s3 = inlined_call_operand.vmem [shape: f32[3,3,128], index: 3, kind: input, shape index: {}]
  %s4 = inlined_call_operand.vmem [shape: f32[1,128], index: 4, kind: input, shape index: {}]
  %s5 = inlined_call_operand.vmem [shape: f32[1,128], index: 5, kind: input, shape index: {}]
  %s6 = inlined_call_operand.vmem [shape: bf16[2,16,16,128], index: 6, kind: output, shape index: {0}]
  %s7 = inlined_call_operand.vmem [shape: f32[2,1,128], index: 7, kind: output, shape index: {1}]
  %8 = xla_tuple %s6, %s7
  %s9 = sld [smem:[#allocation0]]
  $region65: #{inverted_residual_block.4} parent=0
    _
  %s11 = ssub.s32 1, %s9
  %s12 = scalar_select 0, %s11, %s9
  loop: start=0, step=1, limit=4
  $region2: #{inverted_residual_block.4} parent=0 // loop_pre_header
    _
  $region3: #{inverted_residual_block.4} parent=0 // loop_header
    %s14 = sphi 0, %s18
    %p15 = scmp.ge.s32.totalorder %s14, 4
    %s21 = sphi 0, %s33
    %s22 = sphi 0, %s29
    %s23 = sphi 0, %s21
    %s24 = sphi 0, %s22
    %s25 = sphi 0, %s23
    %s26 = sphi 0, %s24
    %s46 = sphi 0, %s48
    %s49 = sphi 0, %s46
    %s50 = sphi 0, %s49
    %s66 = sphi 0, %s50
    %s74 = sphi 0, %s76
    %s77 = sphi 0, %s74
    %s78 = sphi 0, %s77
    %s94 = sphi 0, %s78
    %s110 = sphi 0, %s112
    %s113 = sphi 0, %s110
    %s114 = sphi 0, %s113
    %s130 = sphi 0, %s114
    %s134 = sphi 0, %s134
    %s136 = sphi 0, %s134
    %s137 = sphi 0, %s136
    %s151 = sphi 0, %s137
    %s155 = sphi 0, %s155
    %s157 = sphi 0, %s155
    %s158 = sphi 0, %s157
    %s172 = sphi 0, %s158
    %s176 = sphi 0, %s176
    %s178 = sphi 0, %s176
    %s179 = sphi 0, %s178
    %s193 = sphi 0, %s179
    %s201 = sphi 0, %s203
    %s204 = sphi 0, %s201
    %s205 = sphi 0, %s204
    %s221 = sphi 0, %s205
    %s229 = sphi 0, %s231
    %s232 = sphi 0, %s229
    %s233 = sphi 0, %s232
    %s249 = sphi 0, %s233
  $region4: #{inverted_residual_block.4} parent=0 // loop_header_branch
    %17 = sbr.rel (%p15) target = $region8
  $region5: #{inverted_residual_block.4} parent=0 // loop_body
    %s19 = ssub.s32 %s14, 1
    %s20 = ssub.s32 %s14, 2
    %s27 = sadd.s32 1, %s22
    %p28 = scmp.ge.s32.totalorder %s27, 1
    %s29 = scalar_select %p28, 0, %s27
    %s30 = sadd.s32 1, %s21
    %s31 = scalar_select %p28, %s30, %s21
    %p32 = scmp.ge.s32.totalorder %s31, 2
    %s33 = scalar_select %p32, 0, %s31
    %s34 = smul.u32 %s22, 16
    %s35 = ssub.s32 %s34, 1
    %p36 = scmp.gt.s32.totalorder %s35, 0
    %s37 = scalar_select %p36, %s35, 0
    %s38 = smul.u32 %s29, 16
    %s39 = ssub.s32 %s38, 1
    %p40 = scmp.gt.s32.totalorder %s39, 0
    %s41 = scalar_select %p40, %s39, 0
    %s42 = ssub.s32 %s21, %s33
    %s43 = ssub.s32 %s37, %s41
    %s44 = sor.u32 %s42, %s43
    %p45 = scmp.eq.s32.totalorder %s44, 0
    %s47 = sadd.s32 %s46, 1
    %s48 = scalar_select %p45, %s46, %s47
    %p51 = pneg %p45
    %p52 = scmp.eq.s32.totalorder %s14, 1
    %p53 = por %p51, %p52
    %p54 = scmp.ne.s32.totalorder %s46, %s49
    %p55 = scmp.eq.s32.totalorder %s14, 0
    %p56 = por %p54, %p55
    %p57 = scmp.ne.s32.totalorder %s46, %s49
    %p58 = scmp.eq.s32.totalorder %s19, 1
    %p59 = por %p57, %p58
    %p60 = scmp.ne.s32.totalorder %s49, %s50
    %p61 = scmp.eq.s32.totalorder %s19, 0
    %p62 = por %p60, %p61
    %p63 = scmp.ne.s32.totalorder %s49, %s50
    %p64 = scmp.eq.s32.totalorder %s20, 1
    %p65 = por %p63, %p64
    %p67 = scmp.ne.s32.totalorder %s50, %s66
    %p68 = scmp.eq.s32.totalorder %s20, 0
    %p69 = por %p67, %p68
    %s70 = ssub.s32 %s21, %s33
    %s71 = ssub.s32 %s22, %s29
    %s72 = sor.u32 %s70, %s71
    %p73 = scmp.eq.s32.totalorder %s72, 0
    %s75 = sadd.s32 %s74, 1
    %s76 = scalar_select %p73, %s74, %s75
    %p79 = pneg %p73
    %p80 = scmp.eq.s32.totalorder %s14, 1
    %p81 = por %p79, %p80
    %p82 = scmp.ne.s32.totalorder %s74, %s77
    %p83 = scmp.eq.s32.totalorder %s14, 0
    %p84 = por %p82, %p83
    %p85 = scmp.ne.s32.totalorder %s74, %s77
    %p86 = scmp.eq.s32.totalorder %s19, 1
    %p87 = por %p85, %p86
    %p88 = scmp.ne.s32.totalorder %s77, %s78
    %p89 = scmp.eq.s32.totalorder %s19, 0
    %p90 = por %p88, %p89
    %p91 = scmp.ne.s32.totalorder %s77, %s78
    %p92 = scmp.eq.s32.totalorder %s20, 1
    %p93 = por %p91, %p92
    %p95 = scmp.ne.s32.totalorder %s78, %s94
    %p96 = scmp.eq.s32.totalorder %s20, 0
    %p97 = por %p95, %p96
    %s98 = sadd.s32 %s22, 1
    %s99 = smul.u32 %s98, 16
    %p100 = scmp.lt.s32.totalorder %s99, 15
    %s101 = scalar_select %p100, %s99, 15
    %s102 = sadd.s32 %s29, 1
    %s103 = smul.u32 %s102, 16
    %p104 = scmp.lt.s32.totalorder %s103, 15
    %s105 = scalar_select %p104, %s103, 15
    %s106 = ssub.s32 %s21, %s33
    %s107 = ssub.s32 %s101, %s105
    %s108 = sor.u32 %s106, %s107
    %p109 = scmp.eq.s32.totalorder %s108, 0
    %s111 = sadd.s32 %s110, 1
    %s112 = scalar_select %p109, %s110, %s111
    %p115 = pneg %p109
    %p116 = scmp.eq.s32.totalorder %s14, 1
    %p117 = por %p115, %p116
    %p118 = scmp.ne.s32.totalorder %s110, %s113
    %p119 = scmp.eq.s32.totalorder %s14, 0
    %p120 = por %p118, %p119
    %p121 = scmp.ne.s32.totalorder %s110, %s113
    %p122 = scmp.eq.s32.totalorder %s19, 1
    %p123 = por %p121, %p122
    %p124 = scmp.ne.s32.totalorder %s113, %s114
    %p125 = scmp.eq.s32.totalorder %s19, 0
    %p126 = por %p124, %p125
    %p127 = scmp.ne.s32.totalorder %s113, %s114
    %p128 = scmp.eq.s32.totalorder %s20, 1
    %p129 = por %p127, %p128
    %p131 = scmp.ne.s32.totalorder %s114, %s130
    %p132 = scmp.eq.s32.totalorder %s20, 0
    %p133 = por %p131, %p132
    %s135 = sadd.s32 %s134, 1
    %p138 = scmp.eq.s32.totalorder %s14, 1
    %p139 = scmp.ne.s32.totalorder %s134, %s136
    %p140 = scmp.eq.s32.totalorder %s14, 0
    %p141 = por %p139, %p140
    %p142 = scmp.ne.s32.totalorder %s134, %s136
    %p143 = scmp.eq.s32.totalorder %s19, 1
    %p144 = por %p142, %p143
    %p145 = scmp.ne.s32.totalorder %s136, %s137
    %p146 = scmp.eq.s32.totalorder %s19, 0
    %p147 = por %p145, %p146
    %p148 = scmp.ne.s32.totalorder %s136, %s137
    %p149 = scmp.eq.s32.totalorder %s20, 1
    %p150 = por %p148, %p149
    %p152 = scmp.ne.s32.totalorder %s137, %s151
    %p153 = scmp.eq.s32.totalorder %s20, 0
    %p154 = por %p152, %p153
    %s156 = sadd.s32 %s155, 1
    %p159 = scmp.eq.s32.totalorder %s14, 1
    %p160 = scmp.ne.s32.totalorder %s155, %s157
    %p161 = scmp.eq.s32.totalorder %s14, 0
    %p162 = por %p160, %p161
    %p163 = scmp.ne.s32.totalorder %s155, %s157
    %p164 = scmp.eq.s32.totalorder %s19, 1
    %p165 = por %p163, %p164
    %p166 = scmp.ne.s32.totalorder %s157, %s158
    %p167 = scmp.eq.s32.totalorder %s19, 0
    %p168 = por %p166, %p167
    %p169 = scmp.ne.s32.totalorder %s157, %s158
    %p170 = scmp.eq.s32.totalorder %s20, 1
    %p171 = por %p169, %p170
    %p173 = scmp.ne.s32.totalorder %s158, %s172
    %p174 = scmp.eq.s32.totalorder %s20, 0
    %p175 = por %p173, %p174
    %s177 = sadd.s32 %s176, 1
    %p180 = scmp.eq.s32.totalorder %s14, 1
    %p181 = scmp.ne.s32.totalorder %s176, %s178
    %p182 = scmp.eq.s32.totalorder %s14, 0
    %p183 = por %p181, %p182
    %p184 = scmp.ne.s32.totalorder %s176, %s178
    %p185 = scmp.eq.s32.totalorder %s19, 1
    %p186 = por %p184, %p185
    %p187 = scmp.ne.s32.totalorder %s178, %s179
    %p188 = scmp.eq.s32.totalorder %s19, 0
    %p189 = por %p187, %p188
    %p190 = scmp.ne.s32.totalorder %s178, %s179
    %p191 = scmp.eq.s32.totalorder %s20, 1
    %p192 = por %p190, %p191
    %p194 = scmp.ne.s32.totalorder %s179, %s193
    %p195 = scmp.eq.s32.totalorder %s20, 0
    %p196 = por %p194, %p195
    %s197 = ssub.s32 %s21, %s33
    %s198 = ssub.s32 %s22, %s29
    %s199 = sor.u32 %s197, %s198
    %p200 = scmp.eq.s32.totalorder %s199, 0
    %s202 = sadd.s32 %s201, 1
    %s203 = scalar_select %p200, %s201, %s202
    %p206 = pneg %p200
    %p207 = scmp.eq.s32.totalorder %s14, 1
    %p208 = por %p206, %p207
    %p209 = scmp.ne.s32.totalorder %s201, %s204
    %p210 = scmp.eq.s32.totalorder %s14, 0
    %p211 = por %p209, %p210
    %p212 = scmp.ne.s32.totalorder %s201, %s204
    %p213 = scmp.eq.s32.totalorder %s19, 1
    %p214 = por %p212, %p213
    %p215 = scmp.ne.s32.totalorder %s204, %s205
    %p216 = scmp.eq.s32.totalorder %s19, 0
    %p217 = por %p215, %p216
    %p218 = scmp.ne.s32.totalorder %s204, %s205
    %p219 = scmp.eq.s32.totalorder %s20, 1
    %p220 = por %p218, %p219
    %p222 = scmp.ne.s32.totalorder %s205, %s221
    %p223 = scmp.eq.s32.totalorder %s20, 0
    %p224 = por %p222, %p223
    %s225 = ssub.s32 %s21, %s33
    %s226 = ssub.s32 %s22, %s29
    %s227 = sor.u32 %s225, %s226
    %p228 = scmp.eq.s32.totalorder %s227, 0
    %s230 = sadd.s32 %s229, 1
    %s231 = scalar_select %p228, %s229, %s230
    %p234 = pneg %p228
    %p235 = scmp.eq.s32.totalorder %s14, 1
    %p236 = por %p234, %p235
    %p237 = scmp.ne.s32.totalorder %s229, %s232
    %p238 = scmp.eq.s32.totalorder %s14, 0
    %p239 = por %p237, %p238
    %p240 = scmp.ne.s32.totalorder %s229, %s232
    %p241 = scmp.eq.s32.totalorder %s19, 1
    %p242 = por %p240, %p241
    %p243 = scmp.ne.s32.totalorder %s232, %s233
    %p244 = scmp.eq.s32.totalorder %s19, 0
    %p245 = por %p243, %p244
    %p246 = scmp.ne.s32.totalorder %s232, %s233
    %p247 = scmp.eq.s32.totalorder %s20, 1
    %p248 = por %p246, %p247
    %p250 = scmp.ne.s32.totalorder %s233, %s249
    %p251 = scmp.eq.s32.totalorder %s20, 0
    %p252 = por %p250, %p251
    %p253 = scmp.le.s32.totalorder 1, %s14
    %p254 = scmp.lt.s32.totalorder %s14, 3
    %p255 = pnand %p253, %p254
    %p256 = pneg %p255
    // Predicated region
    $region9: #{inverted_residual_block.4} parent=5 // pred_check
      _
    $region10: #{inverted_residual_block.4} parent=5 // pred_check_branch
      %258 = sbr.rel (%p255) target = $region12
    $region11: #{inverted_residual_block.4} parent=5 // pred_region
      %s259 = ssub.s32 %s14, 1
      // Predicated region
      $region13: #{inverted_residual_block.4} parent=11 // pred_check
        %p260 = pneg %p147
      $region14: #{inverted_residual_block.4} parent=11 // pred_check_branch
        %262 = sbr.rel (%p260) target = $region16
      $region15: #{inverted_residual_block.4} parent=11 // pred_region
        _
      $region16: #{inverted_residual_block.4} parent=11 // pred_fallthru
        _
      // Predicated region
      $region17: #{inverted_residual_block.4} parent=11 // pred_check
        %p263 = pneg %p168
      $region18: #{inverted_residual_block.4} parent=11 // pred_check_branch
        %265 = sbr.rel (%p263) target = $region20
      $region19: #{inverted_residual_block.4} parent=11 // pred_region
        _
      $region20: #{inverted_residual_block.4} parent=11 // pred_fallthru
        _
      // Predicated region
      $region21: #{inverted_residual_block.4} parent=11 // pred_check
        %p266 = pneg %p189
      $region22: #{inverted_residual_block.4} parent=11 // pred_check_branch
        %268 = sbr.rel (%p266) target = $region24
      $region23: #{inverted_residual_block.4} parent=11 // pred_region
        _
      $region24: #{inverted_residual_block.4} parent=11 // pred_fallthru
        _
    $region12: #{inverted_residual_block.4} parent=5 // pred_fallthru
      _
    %p269 = scmp.lt.s32.totalorder %s14, 2
    // Predicated region
    $region25: #{inverted_residual_block.4} parent=5 // pred_check
      %p270 = pneg %p269
    $region26: #{inverted_residual_block.4} parent=5 // pred_check_branch
      %272 = sbr.rel (%p270) target = $region28
    $region27: #{inverted_residual_block.4} parent=5 // pred_region
      // Predicated region
      $region29: #{inverted_residual_block.4} parent=27 // pred_check
        %p273 = pneg %p56
      $region30: #{inverted_residual_block.4} parent=27 // pred_check_branch
        %275 = sbr.rel (%p273) target = $region32
      $region31: #{inverted_residual_block.4} parent=27 // pred_region
        %s276 = smul.u32 %s22, 16
        %s277 = ssub.s32 %s276, 1
        %p278 = scmp.gt.s32.totalorder %s277, 0
        %s279 = scalar_select %p278, %s277, 0
        %p280 = scmp.lt.s32.totalorder %s21, 1
        %s281 = scalar_select %p280, %s21, 1
        %p282 = scmp.lt.s32.totalorder %s279, 15
        %s283 = scalar_select %p282, %s279, 15
        %s284 = smul.addr %s283, 2
        %s285 = smul.addr %s281, 32
        %s286 = sadd.s32 %s284, %s285
        %s287 = smul.addr %s286, 4
        %s288 = scalar_lea.vmem %s0, %s287
        %s289 = smul.u32 %s22, 16
        %s290 = ssub.s32 %s289, 1
        %p291 = scmp.gt.s32.totalorder %s290, 0
        %s292 = scalar_select %p291, %s290, 0
      $region32: #{inverted_residual_block.4} parent=27 // pred_fallthru
        _
      // Predicated region
      $region33: #{inverted_residual_block.4} parent=27 // pred_check
        %p293 = pneg %p84
      $region34: #{inverted_residual_block.4} parent=27 // pred_check_branch
        %295 = sbr.rel (%p293) target = $region36
      $region35: #{inverted_residual_block.4} parent=27 // pred_region
        %s296 = smul.u32 16, %s22
        %p297 = scmp.lt.s32.totalorder %s21, 1
        %s298 = scalar_select %p297, %s21, 1
        %p299 = scmp.lt.s32.totalorder %s296, 15
        %s300 = scalar_select %p299, %s296, 15
        %s301 = smul.addr %s300, 2
        %s302 = smul.addr %s298, 32
        %s303 = sadd.s32 %s301, %s302
        %s304 = smul.addr %s303, 4
        %s305 = scalar_lea.vmem %s1, %s304
        %s306 = smul.u32 16, %s22
      $region36: #{inverted_residual_block.4} parent=27 // pred_fallthru
        _
      // Predicated region
      $region37: #{inverted_residual_block.4} parent=27 // pred_check
        %p307 = pneg %p120
      $region38: #{inverted_residual_block.4} parent=27 // pred_check_branch
        %309 = sbr.rel (%p307) target = $region40
      $region39: #{inverted_residual_block.4} parent=27 // pred_region
        %s310 = sadd.s32 %s22, 1
        %s311 = smul.u32 %s310, 16
        %p312 = scmp.lt.s32.totalorder %s311, 15
        %s313 = scalar_select %p312, %s311, 15
        %p314 = scmp.lt.s32.totalorder %s21, 1
        %s315 = scalar_select %p314, %s21, 1
        %p316 = scmp.lt.s32.totalorder %s313, 15
        %s317 = scalar_select %p316, %s313, 15
        %s318 = smul.addr %s317, 2
        %s319 = smul.addr %s315, 32
        %s320 = sadd.s32 %s318, %s319
        %s321 = smul.addr %s320, 4
        %s322 = scalar_lea.vmem %s2, %s321
        %s323 = sadd.s32 %s22, 1
        %s324 = smul.u32 %s323, 16
        %p325 = scmp.lt.s32.totalorder %s324, 15
        %s326 = scalar_select %p325, %s324, 15
      $region40: #{inverted_residual_block.4} parent=27 // pred_fallthru
        _
    $region28: #{inverted_residual_block.4} parent=5 // pred_fallthru
      _
    %p327 = scmp.le.s32.totalorder 1, %s14
    %p328 = scmp.lt.s32.totalorder %s14, 3
    %p329 = pnand %p327, %p328
    %p330 = pneg %p329
    // Predicated region
    $region41: #{inverted_residual_block.4} parent=5 // pred_check
      _
    $region42: #{inverted_residual_block.4} parent=5 // pred_check_branch
      %332 = sbr.rel (%p329) target = $region44
    $region43: #{inverted_residual_block.4} parent=5 // pred_region
      %s333 = ssub.s32 %s14, 1
      %s334 = smul.u32 %s24, 16
      %s335 = ssub.s32 %s334, 1
      %p336 = scmp.gt.s32.totalorder %s335, 0
      %s337 = scalar_select %p336, %s335, 0
      %p338 = scmp.lt.s32.totalorder %s23, 1
      %s339 = scalar_select %p338, %s23, 1
      %p340 = scmp.lt.s32.totalorder %s337, 15
      %s341 = scalar_select %p340, %s337, 15
      %s342 = smul.addr %s341, 2
      %s343 = smul.addr %s339, 32
      %s344 = sadd.s32 %s342, %s343
      %s345 = smul.addr %s344, 4
      %s346 = scalar_lea.vmem %s0, %s345
      %p347 = pneg %p62
      %p348 = pneg %p59
      %s349 = smul.u32 16, %s24
      %p350 = scmp.lt.s32.totalorder %s23, 1
      %s351 = scalar_select %p350, %s23, 1
      %p352 = scmp.lt.s32.totalorder %s349, 15
      %s353 = scalar_select %p352, %s349, 15
      %s354 = smul.addr %s353, 2
      %s355 = smul.addr %s351, 32
      %s356 = sadd.s32 %s354, %s355
      %s357 = smul.addr %s356, 4
      %s358 = scalar_lea.vmem %s1, %s357
      %p359 = pneg %p90
      %p360 = pneg %p87
      %s361 = sadd.s32 %s24, 1
      %s362 = smul.u32 %s361, 16
      %p363 = scmp.lt.s32.totalorder %s362, 15
      %s364 = scalar_select %p363, %s362, 15
      %p365 = scmp.lt.s32.totalorder %s23, 1
      %s366 = scalar_select %p365, %s23, 1
      %p367 = scmp.lt.s32.totalorder %s364, 15
      %s368 = scalar_select %p367, %s364, 15
      %s369 = smul.addr %s368, 2
      %s370 = smul.addr %s366, 32
      %s371 = sadd.s32 %s369, %s370
      %s372 = smul.addr %s371, 4
      %s373 = scalar_lea.vmem %s2, %s372
      %p374 = pneg %p126
      %p375 = pneg %p123
      %p376 = pneg %p147
      %p377 = pneg %p144
      %p378 = pneg %p168
      %p379 = pneg %p165
      %p380 = pneg %p189
      %p381 = pneg %p186
      %p382 = pneg %p217
      %p383 = pneg %p214
      %s384 = smul.u32 16, %s24
      %p385 = scmp.lt.s32.totalorder %s23, 1
      %s386 = scalar_select %p385, %s23, 1
      %p387 = scmp.lt.s32.totalorder %s384, 15
      %s388 = scalar_select %p387, %s384, 15
      %s389 = smul.addr %s388, 2
      %s390 = smul.addr %s386, 32
      %s391 = sadd.s32 %s389, %s390
      %s392 = smul.addr %s391, 4
      %s393 = scalar_lea.vmem %s6, %s392
      %p394 = pneg %p245
      %p395 = pneg %p242
      %p396 = scmp.lt.s32.totalorder %s23, 1
      %s397 = scalar_select %p396, %s23, 1
      %p398 = scmp.lt.s32.totalorder %s24, 0
      %s399 = scalar_select %p398, %s24, 0
      %s400 = sadd.s32 %s399, %s397
      %s401 = scalar_lea.vmem %s7, %s400
      %s402 = smul.u32 %s24, 16
      %s403 = ssub.s32 %s402, 1
      %p404 = scmp.gt.s32.totalorder %s403, 0
      %s405 = scalar_select %p404, %s403, 0
      %p406 = scmp.lt.s32.totalorder %s23, 1
      %s407 = scalar_select %p406, %s23, 1
      %p408 = scmp.lt.s32.totalorder %s405, 15
      %s409 = scalar_select %p408, %s405, 15
      %s410 = smul.addr %s409, 2
      %s411 = smul.addr %s407, 32
      %s412 = sadd.s32 %s410, %s411
      %s413 = smul.addr %s412, 4
      %s414 = scalar_lea.vmem %s0, %s413
      %s415 = smul.u32 %s24, 16
      %s416 = ssub.s32 %s415, 1
      %p417 = scmp.gt.s32.totalorder %s416, 0
      %s418 = scalar_select %p417, %s416, 0
      %s419 = smul.u32 16, %s24
      %p420 = scmp.lt.s32.totalorder %s23, 1
      %s421 = scalar_select %p420, %s23, 1
      %p422 = scmp.lt.s32.totalorder %s419, 15
      %s423 = scalar_select %p422, %s419, 15
      %s424 = smul.addr %s423, 2
      %s425 = smul.addr %s421, 32
      %s426 = sadd.s32 %s424, %s425
      %s427 = smul.addr %s426, 4
      %s428 = scalar_lea.vmem %s1, %s427
      %s429 = smul.u32 16, %s24
      %s430 = sadd.s32 %s24, 1
      %s431 = smul.u32 %s430, 16
      %p432 = scmp.lt.s32.totalorder %s431, 15
      %s433 = scalar_select %p432, %s431, 15
      %p434 = scmp.lt.s32.totalorder %s23, 1
      %s435 = scalar_select %p434, %s23, 1
      %p436 = scmp.lt.s32.totalorder %s433, 15
      %s437 = scalar_select %p436, %s433, 15
      %s438 = smul.addr %s437, 2
      %s439 = smul.addr %s435, 32
      %s440 = sadd.s32 %s438, %s439
      %s441 = smul.addr %s440, 4
      %s442 = scalar_lea.vmem %s2, %s441
      %s443 = sadd.s32 %s24, 1
      %s444 = smul.u32 %s443, 16
      %p445 = scmp.lt.s32.totalorder %s444, 15
      %s446 = scalar_select %p445, %s444, 15
      %s447 = smul.u32 16, %s24
      %p448 = scmp.lt.s32.totalorder %s23, 1
      %s449 = scalar_select %p448, %s23, 1
      %p450 = scmp.lt.s32.totalorder %s447, 15
      %s451 = scalar_select %p450, %s447, 15
      %s452 = smul.addr %s451, 2
      %s453 = smul.addr %s449, 32
      %s454 = sadd.s32 %s452, %s453
      %s455 = smul.addr %s454, 4
      %s456 = scalar_lea.vmem %s6, %s455
      %s457 = smul.u32 16, %s24
      %p458 = scmp.lt.s32.totalorder %s23, 1
      %s459 = scalar_select %p458, %s23, 1
      %p460 = scmp.lt.s32.totalorder %s24, 0
      %s461 = scalar_select %p460, %s24, 0
      %s462 = sadd.s32 %s461, %s459
      %s463 = scalar_lea.vmem %s7, %s462
      %v464 = vld [vmem:[%s428] sm:$0xf]
      %v465 = vld [vmem:[%s428 + $0x4] sm:$0xf]
      %v466 = vld [vmem:[%s428 + $0x8] sm:$0xf]
      %v467 = vld [vmem:[%s428 + $0xc] sm:$0xf]
      %v468 = vld [vmem:[%s428 + $0x10] sm:$0xf]
      %v469 = vld [vmem:[%s428 + $0x14] sm:$0xf]
      %v470 = vld [vmem:[%s428 + $0x18] sm:$0xf]
      %v471 = vld [vmem:[%s428 + $0x1c] sm:$0xf]
      %v472 = vld [vmem:[%s428 + $0x20] sm:$0xf]
      %v473 = vld [vmem:[%s428 + $0x24] sm:$0xf]
      %v474 = vld [vmem:[%s428 + $0x28] sm:$0xf]
      %v475 = vld [vmem:[%s428 + $0x2c] sm:$0xf]
      %v476 = vld [vmem:[%s428 + $0x30] sm:$0xf]
      %v477 = vld [vmem:[%s428 + $0x34] sm:$0xf]
      %v478 = vld [vmem:[%s428 + $0x38] sm:$0xf]
      %v479 = vld [vmem:[%s428 + $0x3c] sm:$0xf]
      %v480 = vld [vmem:[%s428 + $0x40] sm:$0xf]
      %v481 = vld [vmem:[%s428 + $0x44] sm:$0xf]
      %v482 = vld [vmem:[%s428 + $0x48] sm:$0xf]
      %v483 = vld [vmem:[%s428 + $0x4c] sm:$0xf]
      %v484 = vld [vmem:[%s428 + $0x50] sm:$0xf]
      %v485 = vld [vmem:[%s428 + $0x54] sm:$0xf]
      %v486 = vld [vmem:[%s428 + $0x58] sm:$0xf]
      %v487 = vld [vmem:[%s428 + $0x5c] sm:$0xf]
      %v488 = vld [vmem:[%s428 + $0x60] sm:$0xf]
      %v489 = vld [vmem:[%s428 + $0x64] sm:$0xf]
      %v490 = vld [vmem:[%s428 + $0x68] sm:$0xf]
      %v491 = vld [vmem:[%s428 + $0x6c] sm:$0xf]
      %v492 = vld [vmem:[%s428 + $0x70] sm:$0xf]
      %v493 = vld [vmem:[%s428 + $0x74] sm:$0xf]
      %v494 = vld [vmem:[%s428 + $0x78] sm:$0xf]
      %v495 = vld [vmem:[%s428 + $0x7c] sm:$0xf]
      %v496 = vunpack.c.l.bf16 %v464
      %v497 = vunpack.c.l.bf16 %v465
      %v498 = vunpack.c.l.bf16 %v466
      %v499 = vunpack.c.l.bf16 %v467
      %v500 = vunpack.c.l.bf16 %v468
      %v501 = vunpack.c.l.bf16 %v469
      %v502 = vunpack.c.l.bf16 %v470
      %v503 = vunpack.c.l.bf16 %v471
      %v504 = vunpack.c.l.bf16 %v472
      %v505 = vunpack.c.l.bf16 %v473
      %v506 = vunpack.c.l.bf16 %v474
      %v507 = vunpack.c.l.bf16 %v475
      %v508 = vunpack.c.l.bf16 %v476
      %v509 = vunpack.c.l.bf16 %v477
      %v510 = vunpack.c.l.bf16 %v478
      %v511 = vunpack.c.l.bf16 %v479
      %v512 = vunpack.c.l.bf16 %v480
      %v513 = vunpack.c.l.bf16 %v481
      %v514 = vunpack.c.l.bf16 %v482
      %v515 = vunpack.c.l.bf16 %v483
      %v516 = vunpack.c.l.bf16 %v484
      %v517 = vunpack.c.l.bf16 %v485
      %v518 = vunpack.c.l.bf16 %v486
      %v519 = vunpack.c.l.bf16 %v487
      %v520 = vunpack.c.l.bf16 %v488
      %v521 = vunpack.c.l.bf16 %v489
      %v522 = vunpack.c.l.bf16 %v490
      %v523 = vunpack.c.l.bf16 %v491
      %v524 = vunpack.c.l.bf16 %v492
      %v525 = vunpack.c.l.bf16 %v493
      %v526 = vunpack.c.l.bf16 %v494
      %v527 = vunpack.c.l.bf16 %v495
      %p528 = scmp.gt.s32.totalorder %s24, 0
      %v529 = vld [vmem:[%s414] sm:$0xf]
      %v530 = vld [vmem:[%s414 + $0x4] sm:$0xf]
      %v531 = vunpack.c.l.bf16 %v529
      %v532 = vunpack.c.l.bf16 %v530
      %s533 = scalar_select %p528, 1, 0
      %v534 = vstv %s533
      %vm535 = vcmp.eq.s32.totalorder %v534, 1
      %v536 = vsel %vm535, %v531, 0.0
      %v537 = vsel %vm535, %v532, 0.0
      %p538 = scmp.lt.s32.totalorder %s24, 0
      %v539 = vld [vmem:[%s442] sm:$0xf]
      %v540 = vld [vmem:[%s442 + $0x4] sm:$0xf]
      %v541 = vunpack.c.l.bf16 %v539
      %v542 = vunpack.c.l.bf16 %v540
      %s543 = scalar_select %p538, 1, 0
      %v544 = vstv %s543
      %vm545 = vcmp.eq.s32.totalorder %v544, 1
      %v546 = vsel %vm545, %v541, 0.0
      %v547 = vsel %vm545, %v542, 0.0
      %vm584 = vcmask 1040384
      %v585 = vrot.slane %v536, 7
      %v586 = vrot.slane %v537, 7
      %v587 = vsel %vm584, %v585, %v586
      %v588 = vrot.slane %v496, 7
      %v589 = vrot.slane %v497, 7
      %v590 = vsel %vm584, %v588, %v589
      %v591 = vrot.slane %v498, 7
      %v592 = vrot.slane %v499, 7
      %v593 = vsel %vm584, %v591, %v592
      %v594 = vrot.slane %v500, 7
      %v595 = vrot.slane %v501, 7
      %v596 = vsel %vm584, %v594, %v595
      %v597 = vrot.slane %v502, 7
      %v598 = vrot.slane %v503, 7
      %v599 = vsel %vm584, %v597, %v598
      %v600 = vrot.slane %v504, 7
      %v601 = vrot.slane %v505, 7
      %v602 = vsel %vm584, %v600, %v601
      %v603 = vrot.slane %v506, 7
      %v604 = vrot.slane %v507, 7
      %v605 = vsel %vm584, %v603, %v604
      %v606 = vrot.slane %v508, 7
      %v607 = vrot.slane %v509, 7
      %v608 = vsel %vm584, %v606, %v607
      %v609 = vrot.slane %v510, 7
      %v610 = vrot.slane %v511, 7
      %v611 = vsel %vm584, %v609, %v610
      %v612 = vrot.slane %v512, 7
      %v613 = vrot.slane %v513, 7
      %v614 = vsel %vm584, %v612, %v613
      %v615 = vrot.slane %v514, 7
      %v616 = vrot.slane %v515, 7
      %v617 = vsel %vm584, %v615, %v616
      %v618 = vrot.slane %v516, 7
      %v619 = vrot.slane %v517, 7
      %v620 = vsel %vm584, %v618, %v619
      %v621 = vrot.slane %v518, 7
      %v622 = vrot.slane %v519, 7
      %v623 = vsel %vm584, %v621, %v622
      %v624 = vrot.slane %v520, 7
      %v625 = vrot.slane %v521, 7
      %v626 = vsel %vm584, %v624, %v625
      %v627 = vrot.slane %v522, 7
      %v628 = vrot.slane %v523, 7
      %v629 = vsel %vm584, %v627, %v628
      %v630 = vrot.slane %v524, 7
      %v631 = vrot.slane %v525, 7
      %v632 = vsel %vm584, %v630, %v631
      %v633 = vrot.slane %v526, 7
      %v634 = vrot.slane %v527, 7
      %v635 = vsel %vm584, %v633, %v634
      %v636 = vrot.slane %v546, 7
      %v637 = vrot.slane %v547, 7
      %v638 = vsel %vm584, %v636, %v637
      %v693 = vsel %vm584, 0.0, %v585
      %v694 = vsel %vm584, 0.0, %v588
      %v695 = vsel %vm584, 0.0, %v591
      %v696 = vsel %vm584, 0.0, %v594
      %v697 = vsel %vm584, 0.0, %v597
      %v698 = vsel %vm584, 0.0, %v600
      %v699 = vsel %vm584, 0.0, %v603
      %v700 = vsel %vm584, 0.0, %v606
      %v701 = vsel %vm584, 0.0, %v609
      %v702 = vsel %vm584, 0.0, %v612
      %v703 = vsel %vm584, 0.0, %v615
      %v704 = vsel %vm584, 0.0, %v618
      %v705 = vsel %vm584, 0.0, %v621
      %v706 = vsel %vm584, 0.0, %v624
      %v707 = vsel %vm584, 0.0, %v627
      %v708 = vsel %vm584, 0.0, %v630
      %v709 = vsel %vm584, 0.0, %v633
      %v710 = vsel %vm584, 0.0, %v636
      %v711 = vsel %vm584, %v586, 0.0
      %v712 = vsel %vm584, %v589, 0.0
      %v713 = vsel %vm584, %v592, 0.0
      %v714 = vsel %vm584, %v595, 0.0
      %v715 = vsel %vm584, %v598, 0.0
      %v716 = vsel %vm584, %v601, 0.0
      %v717 = vsel %vm584, %v604, 0.0
      %v718 = vsel %vm584, %v607, 0.0
      %v719 = vsel %vm584, %v610, 0.0
      %v720 = vsel %vm584, %v613, 0.0
      %v721 = vsel %vm584, %v616, 0.0
      %v722 = vsel %vm584, %v619, 0.0
      %v723 = vsel %vm584, %v622, 0.0
      %v724 = vsel %vm584, %v625, 0.0
      %v725 = vsel %vm584, %v628, 0.0
      %v726 = vsel %vm584, %v631, 0.0
      %v727 = vsel %vm584, %v634, 0.0
      %v728 = vsel %vm584, %v637, 0.0
      %v729 = vld [vmem:[%s3] sm:$0x7]
      %v730 = vld [vmem:[%s3 + $0x4] sm:$0x7]
      %v731 = vld [vmem:[%s3 + $0x8] sm:$0x7]
      %v732 = vperm.slane %v729, 0
      %v733 = vmul.f32 %v693, %v732
      %v734 = vmul.f32 %v587, %v732
      %v735 = vmul.f32 %v694, %v732
      %v736 = vmul.f32 %v590, %v732
      %v737 = vmul.f32 %v695, %v732
      %v738 = vmul.f32 %v593, %v732
      %v739 = vmul.f32 %v696, %v732
      %v740 = vmul.f32 %v596, %v732
      %v741 = vmul.f32 %v697, %v732
      %v742 = vmul.f32 %v599, %v732
      %v743 = vmul.f32 %v698, %v732
      %v744 = vmul.f32 %v602, %v732
      %v745 = vmul.f32 %v699, %v732
      %v746 = vmul.f32 %v605, %v732
      %v747 = vmul.f32 %v700, %v732
      %v748 = vmul.f32 %v608, %v732
      %v749 = vmul.f32 %v701, %v732
      %v750 = vmul.f32 %v611, %v732
      %v751 = vmul.f32 %v702, %v732
      %v752 = vmul.f32 %v614, %v732
      %v753 = vmul.f32 %v703, %v732
      %v754 = vmul.f32 %v617, %v732
      %v755 = vmul.f32 %v704, %v732
      %v756 = vmul.f32 %v620, %v732
      %v757 = vmul.f32 %v705, %v732
      %v758 = vmul.f32 %v623, %v732
      %v759 = vmul.f32 %v706, %v732
      %v760 = vmul.f32 %v626, %v732
      %v761 = vmul.f32 %v707, %v732
      %v762 = vmul.f32 %v629, %v732
      %v763 = vmul.f32 %v708, %v732
      %v764 = vmul.f32 %v632, %v732
      %v765 = vadd.f32 %v733, 0.0
      %v766 = vadd.f32 %v734, 0.0
      %v767 = vadd.f32 %v735, 0.0
      %v768 = vadd.f32 %v736, 0.0
      %v769 = vadd.f32 %v737, 0.0
      %v770 = vadd.f32 %v738, 0.0
      %v771 = vadd.f32 %v739, 0.0
      %v772 = vadd.f32 %v740, 0.0
      %v773 = vadd.f32 %v741, 0.0
      %v774 = vadd.f32 %v742, 0.0
      %v775 = vadd.f32 %v743, 0.0
      %v776 = vadd.f32 %v744, 0.0
      %v777 = vadd.f32 %v745, 0.0
      %v778 = vadd.f32 %v746, 0.0
      %v779 = vadd.f32 %v747, 0.0
      %v780 = vadd.f32 %v748, 0.0
      %v781 = vadd.f32 %v749, 0.0
      %v782 = vadd.f32 %v750, 0.0
      %v783 = vadd.f32 %v751, 0.0
      %v784 = vadd.f32 %v752, 0.0
      %v785 = vadd.f32 %v753, 0.0
      %v786 = vadd.f32 %v754, 0.0
      %v787 = vadd.f32 %v755, 0.0
      %v788 = vadd.f32 %v756, 0.0
      %v789 = vadd.f32 %v757, 0.0
      %v790 = vadd.f32 %v758, 0.0
      %v791 = vadd.f32 %v759, 0.0
      %v792 = vadd.f32 %v760, 0.0
      %v793 = vadd.f32 %v761, 0.0
      %v794 = vadd.f32 %v762, 0.0
      %v795 = vadd.f32 %v763, 0.0
      %v796 = vadd.f32 %v764, 0.0
      %v797 = vperm.slane %v729, 1
      %v798 = vmul.f32 %v693, %v797
      %v799 = vmul.f32 %v587, %v797
      %v800 = vmul.f32 %v711, %v797
      %v801 = vmul.f32 %v694, %v797
      %v802 = vmul.f32 %v590, %v797
      %v803 = vmul.f32 %v712, %v797
      %v804 = vmul.f32 %v695, %v797
      %v805 = vmul.f32 %v593, %v797
      %v806 = vmul.f32 %v713, %v797
      %v807 = vmul.f32 %v696, %v797
      %v808 = vmul.f32 %v596, %v797
      %v809 = vmul.f32 %v714, %v797
      %v810 = vmul.f32 %v697, %v797
      %v811 = vmul.f32 %v599, %v797
      %v812 = vmul.f32 %v715, %v797
      %v813 = vmul.f32 %v698, %v797
      %v814 = vmul.f32 %v602, %v797
      %v815 = vmul.f32 %v716, %v797
      %v816 = vmul.f32 %v699, %v797
      %v817 = vmul.f32 %v605, %v797
      %v818 = vmul.f32 %v717, %v797
      %v819 = vmul.f32 %v700, %v797
      %v820 = vmul.f32 %v608, %v797
      %v821 = vmul.f32 %v718, %v797
      %v822 = vmul.f32 %v701, %v797
      %v823 = vmul.f32 %v611, %v797
      %v824 = vmul.f32 %v719, %v797
      %v825 = vmul.f32 %v702, %v797
      %v826 = vmul.f32 %v614, %v797
      %v827 = vmul.f32 %v720, %v797
      %v828 = vmul.f32 %v703, %v797
      %v829 = vmul.f32 %v617, %v797
      %v830 = vmul.f32 %v721, %v797
      %v831 = vmul.f32 %v704, %v797
      %v832 = vmul.f32 %v620, %v797
      %v833 = vmul.f32 %v722, %v797
      %v834 = vmul.f32 %v705, %v797
      %v835 = vmul.f32 %v623, %v797
      %v836 = vmul.f32 %v723, %v797
      %v837 = vmul.f32 %v706, %v797
      %v838 = vmul.f32 %v626, %v797
      %v839 = vmul.f32 %v724, %v797
      %v840 = vmul.f32 %v707, %v797
      %v841 = vmul.f32 %v629, %v797
      %v842 = vmul.f32 %v725, %v797
      %v843 = vmul.f32 %v708, %v797
      %v844 = vmul.f32 %v632, %v797
      %v845 = vmul.f32 %v726, %v797
      %vm894 = vcmask 1046528
      %v895 = vrot.slane %v798, 1
      %v896 = vrot.slane %v799, 1
      %v897 = vsel %vm894, %v895, %v896
      %v898 = vrot.slane %v800, 1
      %v899 = vsel %vm894, %v896, %v898
      %v900 = vrot.slane %v801, 1
      %v901 = vrot.slane %v802, 1
      %v902 = vsel %vm894, %v900, %v901
      %v903 = vrot.slane %v803, 1
      %v904 = vsel %vm894, %v901, %v903
      %v905 = vrot.slane %v804, 1
      %v906 = vrot.slane %v805, 1
      %v907 = vsel %vm894, %v905, %v906
      %v908 = vrot.slane %v806, 1
      %v909 = vsel %vm894, %v906, %v908
      %v910 = vrot.slane %v807, 1
      %v911 = vrot.slane %v808, 1
      %v912 = vsel %vm894, %v910, %v911
      %v913 = vrot.slane %v809, 1
      %v914 = vsel %vm894, %v911, %v913
      %v915 = vrot.slane %v810, 1
      %v916 = vrot.slane %v811, 1
      %v917 = vsel %vm894, %v915, %v916
      %v918 = vrot.slane %v812, 1
      %v919 = vsel %vm894, %v916, %v918
      %v920 = vrot.slane %v813, 1
      %v921 = vrot.slane %v814, 1
      %v922 = vsel %vm894, %v920, %v921
      %v923 = vrot.slane %v815, 1
      %v924 = vsel %vm894, %v921, %v923
      %v925 = vrot.slane %v816, 1
      %v926 = vrot.slane %v817, 1
      %v927 = vsel %vm894, %v925, %v926
      %v928 = vrot.slane %v818, 1
      %v929 = vsel %vm894, %v926, %v928
      %v930 = vrot.slane %v819, 1
      %v931 = vrot.slane %v820, 1
      %v932 = vsel %vm894, %v930, %v931
      %v933 = vrot.slane %v821, 1
      %v934 = vsel %vm894, %v931, %v933
      %v935 = vrot.slane %v822, 1
      %v936 = vrot.slane %v823, 1
      %v937 = vsel %vm894, %v935, %v936
      %v938 = vrot.slane %v824, 1
      %v939 = vsel %vm894, %v936, %v938
      %v940 = vrot.slane %v825, 1
      %v941 = vrot.slane %v826, 1
      %v942 = vsel %vm894, %v940, %v941
      %v943 = vrot.slane %v827, 1
      %v944 = vsel %vm894, %v941, %v943
      %v945 = vrot.slane %v828, 1
      %v946 = vrot.slane %v829, 1
      %v947 = vsel %vm894, %v945, %v946
      %v948 = vrot.slane %v830, 1
      %v949 = vsel %vm894, %v946, %v948
      %v950 = vrot.slane %v831, 1
      %v951 = vrot.slane %v832, 1
      %v952 = vsel %vm894, %v950, %v951
      %v953 = vrot.slane %v833, 1
      %v954 = vsel %vm894, %v951, %v953
      %v955 = vrot.slane %v834, 1
      %v956 = vrot.slane %v835, 1
      %v957 = vsel %vm894, %v955, %v956
      %v958 = vrot.slane %v836, 1
      %v959 = vsel %vm894, %v956, %v958
      %v960 = vrot.slane %v837, 1
      %v961 = vrot.slane %v838, 1
      %v962 = vsel %vm894, %v960, %v961
      %v963 = vrot.slane %v839, 1
      %v964 = vsel %vm894, %v961, %v963
      %v965 = vrot.slane %v840, 1
      %v966 = vrot.slane %v841, 1
      %v967 = vsel %vm894, %v965, %v966
      %v968 = vrot.slane %v842, 1
      %v969 = vsel %vm894, %v966, %v968
      %v970 = vrot.slane %v843, 1
      %v971 = vrot.slane %v844, 1
      %v972 = vsel %vm894, %v970, %v971
      %v973 = vrot.slane %v845, 1
      %v974 = vsel %vm894, %v971, %v973
      %v1007 = vadd.f32 %v765, %v897
      %v1008 = vadd.f32 %v766, %v899
      %v1009 = vadd.f32 %v767, %v902
      %v1010 = vadd.f32 %v768, %v904
      %v1011 = vadd.f32 %v769, %v907
      %v1012 = vadd.f32 %v770, %v909
      %v1013 = vadd.f32 %v771, %v912
      %v1014 = vadd.f32 %v772, %v914
      %v1015 = vadd.f32 %v773, %v917
      %v1016 = vadd.f32 %v774, %v919
      %v1017 = vadd.f32 %v775, %v922
      %v1018 = vadd.f32 %v776, %v924
      %v1019 = vadd.f32 %v777, %v927
      %v1020 = vadd.f32 %v778, %v929
      %v1021 = vadd.f32 %v779, %v932
      %v1022 = vadd.f32 %v780, %v934
      %v1023 = vadd.f32 %v781, %v937
      %v1024 = vadd.f32 %v782, %v939
      %v1025 = vadd.f32 %v783, %v942
      %v1026 = vadd.f32 %v784, %v944
      %v1027 = vadd.f32 %v785, %v947
      %v1028 = vadd.f32 %v786, %v949
      %v1029 = vadd.f32 %v787, %v952
      %v1030 = vadd.f32 %v788, %v954
      %v1031 = vadd.f32 %v789, %v957
      %v1032 = vadd.f32 %v790, %v959
      %v1033 = vadd.f32 %v791, %v962
      %v1034 = vadd.f32 %v792, %v964
      %v1035 = vadd.f32 %v793, %v967
      %v1036 = vadd.f32 %v794, %v969
      %v1037 = vadd.f32 %v795, %v972
      %v1038 = vadd.f32 %v796, %v974
      %v1039 = vperm.slane %v729, 2
      %v1040 = vmul.f32 %v693, %v1039
      %v1041 = vmul.f32 %v587, %v1039
      %v1042 = vmul.f32 %v711, %v1039
      %v1043 = vmul.f32 %v694, %v1039
      %v1044 = vmul.f32 %v590, %v1039
      %v1045 = vmul.f32 %v712, %v1039
      %v1046 = vmul.f32 %v695, %v1039
      %v1047 = vmul.f32 %v593, %v1039
      %v1048 = vmul.f32 %v713, %v1039
      %v1049 = vmul.f32 %v696, %v1039
      %v1050 = vmul.f32 %v596, %v1039
      %v1051 = vmul.f32 %v714, %v1039
      %v1052 = vmul.f32 %v697, %v1039
      %v1053 = vmul.f32 %v599, %v1039
      %v1054 = vmul.f32 %v715, %v1039
      %v1055 = vmul.f32 %v698, %v1039
      %v1056 = vmul.f32 %v602, %v1039
      %v1057 = vmul.f32 %v716, %v1039
      %v1058 = vmul.f32 %v699, %v1039
      %v1059 = vmul.f32 %v605, %v1039
      %v1060 = vmul.f32 %v717, %v1039
      %v1061 = vmul.f32 %v700, %v1039
      %v1062 = vmul.f32 %v608, %v1039
      %v1063 = vmul.f32 %v718, %v1039
      %v1064 = vmul.f32 %v701, %v1039
      %v1065 = vmul.f32 %v611, %v1039
      %v1066 = vmul.f32 %v719, %v1039
      %v1067 = vmul.f32 %v702, %v1039
      %v1068 = vmul.f32 %v614, %v1039
      %v1069 = vmul.f32 %v720, %v1039
      %v1070 = vmul.f32 %v703, %v1039
      %v1071 = vmul.f32 %v617, %v1039
      %v1072 = vmul.f32 %v721, %v1039
      %v1073 = vmul.f32 %v704, %v1039
      %v1074 = vmul.f32 %v620, %v1039
      %v1075 = vmul.f32 %v722, %v1039
      %v1076 = vmul.f32 %v705, %v1039
      %v1077 = vmul.f32 %v623, %v1039
      %v1078 = vmul.f32 %v723, %v1039
      %v1079 = vmul.f32 %v706, %v1039
      %v1080 = vmul.f32 %v626, %v1039
      %v1081 = vmul.f32 %v724, %v1039
      %v1082 = vmul.f32 %v707, %v1039
      %v1083 = vmul.f32 %v629, %v1039
      %v1084 = vmul.f32 %v725, %v1039
      %v1085 = vmul.f32 %v708, %v1039
      %v1086 = vmul.f32 %v632, %v1039
      %v1087 = vmul.f32 %v726, %v1039
      %vm1136 = vcmask 1045504
      %v1137 = vrot.slane %v1040, 2
      %v1138 = vrot.slane %v1041, 2
      %v1139 = vsel %vm1136, %v1137, %v1138
      %v1140 = vrot.slane %v1042, 2
      %v1141 = vsel %vm1136, %v1138, %v1140
      %v1142 = vrot.slane %v1043, 2
      %v1143 = vrot.slane %v1044, 2
      %v1144 = vsel %vm1136, %v1142, %v1143
      %v1145 = vrot.slane %v1045, 2
      %v1146 = vsel %vm1136, %v1143, %v1145
      %v1147 = vrot.slane %v1046, 2
      %v1148 = vrot.slane %v1047, 2
      %v1149 = vsel %vm1136, %v1147, %v1148
      %v1150 = vrot.slane %v1048, 2
      %v1151 = vsel %vm1136, %v1148, %v1150
      %v1152 = vrot.slane %v1049, 2
      %v1153 = vrot.slane %v1050, 2
      %v1154 = vsel %vm1136, %v1152, %v1153
      %v1155 = vrot.slane %v1051, 2
      %v1156 = vsel %vm1136, %v1153, %v1155
      %v1157 = vrot.slane %v1052, 2
      %v1158 = vrot.slane %v1053, 2
      %v1159 = vsel %vm1136, %v1157, %v1158
      %v1160 = vrot.slane %v1054, 2
      %v1161 = vsel %vm1136, %v1158, %v1160
      %v1162 = vrot.slane %v1055, 2
      %v1163 = vrot.slane %v1056, 2
      %v1164 = vsel %vm1136, %v1162, %v1163
      %v1165 = vrot.slane %v1057, 2
      %v1166 = vsel %vm1136, %v1163, %v1165
      %v1167 = vrot.slane %v1058, 2
      %v1168 = vrot.slane %v1059, 2
      %v1169 = vsel %vm1136, %v1167, %v1168
      %v1170 = vrot.slane %v1060, 2
      %v1171 = vsel %vm1136, %v1168, %v1170
      %v1172 = vrot.slane %v1061, 2
      %v1173 = vrot.slane %v1062, 2
      %v1174 = vsel %vm1136, %v1172, %v1173
      %v1175 = vrot.slane %v1063, 2
      %v1176 = vsel %vm1136, %v1173, %v1175
      %v1177 = vrot.slane %v1064, 2
      %v1178 = vrot.slane %v1065, 2
      %v1179 = vsel %vm1136, %v1177, %v1178
      %v1180 = vrot.slane %v1066, 2
      %v1181 = vsel %vm1136, %v1178, %v1180
      %v1182 = vrot.slane %v1067, 2
      %v1183 = vrot.slane %v1068, 2
      %v1184 = vsel %vm1136, %v1182, %v1183
      %v1185 = vrot.slane %v1069, 2
      %v1186 = vsel %vm1136, %v1183, %v1185
      %v1187 = vrot.slane %v1070, 2
      %v1188 = vrot.slane %v1071, 2
      %v1189 = vsel %vm1136, %v1187, %v1188
      %v1190 = vrot.slane %v1072, 2
      %v1191 = vsel %vm1136, %v1188, %v1190
      %v1192 = vrot.slane %v1073, 2
      %v1193 = vrot.slane %v1074, 2
      %v1194 = vsel %vm1136, %v1192, %v1193
      %v1195 = vrot.slane %v1075, 2
      %v1196 = vsel %vm1136, %v1193, %v1195
      %v1197 = vrot.slane %v1076, 2
      %v1198 = vrot.slane %v1077, 2
      %v1199 = vsel %vm1136, %v1197, %v1198
      %v1200 = vrot.slane %v1078, 2
      %v1201 = vsel %vm1136, %v1198, %v1200
      %v1202 = vrot.slane %v1079, 2
      %v1203 = vrot.slane %v1080, 2
      %v1204 = vsel %vm1136, %v1202, %v1203
      %v1205 = vrot.slane %v1081, 2
      %v1206 = vsel %vm1136, %v1203, %v1205
      %v1207 = vrot.slane %v1082, 2
      %v1208 = vrot.slane %v1083, 2
      %v1209 = vsel %vm1136, %v1207, %v1208
      %v1210 = vrot.slane %v1084, 2
      %v1211 = vsel %vm1136, %v1208, %v1210
      %v1212 = vrot.slane %v1085, 2
      %v1213 = vrot.slane %v1086, 2
      %v1214 = vsel %vm1136, %v1212, %v1213
      %v1215 = vrot.slane %v1087, 2
      %v1216 = vsel %vm1136, %v1213, %v1215
      %v1249 = vadd.f32 %v1007, %v1139
      %v1250 = vadd.f32 %v1008, %v1141
      %v1251 = vadd.f32 %v1009, %v1144
      %v1252 = vadd.f32 %v1010, %v1146
      %v1253 = vadd.f32 %v1011, %v1149
      %v1254 = vadd.f32 %v1012, %v1151
      %v1255 = vadd.f32 %v1013, %v1154
      %v1256 = vadd.f32 %v1014, %v1156
      %v1257 = vadd.f32 %v1015, %v1159
      %v1258 = vadd.f32 %v1016, %v1161
      %v1259 = vadd.f32 %v1017, %v1164
      %v1260 = vadd.f32 %v1018, %v1166
      %v1261 = vadd.f32 %v1019, %v1169
      %v1262 = vadd.f32 %v1020, %v1171
      %v1263 = vadd.f32 %v1021, %v1174
      %v1264 = vadd.f32 %v1022, %v1176
      %v1265 = vadd.f32 %v1023, %v1179
      %v1266 = vadd.f32 %v1024, %v1181
      %v1267 = vadd.f32 %v1025, %v1184
      %v1268 = vadd.f32 %v1026, %v1186
      %v1269 = vadd.f32 %v1027, %v1189
      %v1270 = vadd.f32 %v1028, %v1191
      %v1271 = vadd.f32 %v1029, %v1194
      %v1272 = vadd.f32 %v1030, %v1196
      %v1273 = vadd.f32 %v1031, %v1199
      %v1274 = vadd.f32 %v1032, %v1201
      %v1275 = vadd.f32 %v1033, %v1204
      %v1276 = vadd.f32 %v1034, %v1206
      %v1277 = vadd.f32 %v1035, %v1209
      %v1278 = vadd.f32 %v1036, %v1211
      %v1279 = vadd.f32 %v1037, %v1214
      %v1280 = vadd.f32 %v1038, %v1216
      %v1281 = vperm.slane %v730, 0
      %v1282 = vmul.f32 %v694, %v1281
      %v1283 = vmul.f32 %v590, %v1281
      %v1284 = vmul.f32 %v695, %v1281
      %v1285 = vmul.f32 %v593, %v1281
      %v1286 = vmul.f32 %v696, %v1281
      %v1287 = vmul.f32 %v596, %v1281
      %v1288 = vmul.f32 %v697, %v1281
      %v1289 = vmul.f32 %v599, %v1281
      %v1290 = vmul.f32 %v698, %v1281
      %v1291 = vmul.f32 %v602, %v1281
      %v1292 = vmul.f32 %v699, %v1281
      %v1293 = vmul.f32 %v605, %v1281
      %v1294 = vmul.f32 %v700, %v1281
      %v1295 = vmul.f32 %v608, %v1281
      %v1296 = vmul.f32 %v701, %v1281
      %v1297 = vmul.f32 %v611, %v1281
      %v1298 = vmul.f32 %v702, %v1281
      %v1299 = vmul.f32 %v614, %v1281
      %v1300 = vmul.f32 %v703, %v1281
      %v1301 = vmul.f32 %v617, %v1281
      %v1302 = vmul.f32 %v704, %v1281
      %v1303 = vmul.f32 %v620, %v1281
      %v1304 = vmul.f32 %v705, %v1281
      %v1305 = vmul.f32 %v623, %v1281
      %v1306 = vmul.f32 %v706, %v1281
      %v1307 = vmul.f32 %v626, %v1281
      %v1308 = vmul.f32 %v707, %v1281
      %v1309 = vmul.f32 %v629, %v1281
      %v1310 = vmul.f32 %v708, %v1281
      %v1311 = vmul.f32 %v632, %v1281
      %v1312 = vmul.f32 %v709, %v1281
      %v1313 = vmul.f32 %v635, %v1281
      %v1314 = vadd.f32 %v1249, %v1282
      %v1315 = vadd.f32 %v1250, %v1283
      %v1316 = vadd.f32 %v1251, %v1284
      %v1317 = vadd.f32 %v1252, %v1285
      %v1318 = vadd.f32 %v1253, %v1286
      %v1319 = vadd.f32 %v1254, %v1287
      %v1320 = vadd.f32 %v1255, %v1288
      %v1321 = vadd.f32 %v1256, %v1289
      %v1322 = vadd.f32 %v1257, %v1290
      %v1323 = vadd.f32 %v1258, %v1291
      %v1324 = vadd.f32 %v1259, %v1292
      %v1325 = vadd.f32 %v1260, %v1293
      %v1326 = vadd.f32 %v1261, %v1294
      %v1327 = vadd.f32 %v1262, %v1295
      %v1328 = vadd.f32 %v1263, %v1296
      %v1329 = vadd.f32 %v1264, %v1297
      %v1330 = vadd.f32 %v1265, %v1298
      %v1331 = vadd.f32 %v1266, %v1299
      %v1332 = vadd.f32 %v1267, %v1300
      %v1333 = vadd.f32 %v1268, %v1301
      %v1334 = vadd.f32 %v1269, %v1302
      %v1335 = vadd.f32 %v1270, %v1303
      %v1336 = vadd.f32 %v1271, %v1304
      %v1337 = vadd.f32 %v1272, %v1305
      %v1338 = vadd.f32 %v1273, %v1306
      %v1339 = vadd.f32 %v1274, %v1307
      %v1340 = vadd.f32 %v1275, %v1308
      %v1341 = vadd.f32 %v1276, %v1309
      %v1342 = vadd.f32 %v1277, %v1310
      %v1343 = vadd.f32 %v1278, %v1311
      %v1344 = vadd.f32 %v1279, %v1312
      %v1345 = vadd.f32 %v1280, %v1313
      %v1346 = vperm.slane %v730, 1
      %v1347 = vmul.f32 %v694, %v1346
      %v1348 = vmul.f32 %v590, %v1346
      %v1349 = vmul.f32 %v712, %v1346
      %v1350 = vmul.f32 %v695, %v1346
      %v1351 = vmul.f32 %v593, %v1346
      %v1352 = vmul.f32 %v713, %v1346
      %v1353 = vmul.f32 %v696, %v1346
      %v1354 = vmul.f32 %v596, %v1346
      %v1355 = vmul.f32 %v714, %v1346
      %v1356 = vmul.f32 %v697, %v1346
      %v1357 = vmul.f32 %v599, %v1346
      %v1358 = vmul.f32 %v715, %v1346
      %v1359 = vmul.f32 %v698, %v1346
      %v1360 = vmul.f32 %v602, %v1346
      %v1361 = vmul.f32 %v716, %v1346
      %v1362 = vmul.f32 %v699, %v1346
      %v1363 = vmul.f32 %v605, %v1346
      %v1364 = vmul.f32 %v717, %v1346
      %v1365 = vmul.f32 %v700, %v1346
      %v1366 = vmul.f32 %v608, %v1346
      %v1367 = vmul.f32 %v718, %v1346
      %v1368 = vmul.f32 %v701, %v1346
      %v1369 = vmul.f32 %v611, %v1346
      %v1370 = vmul.f32 %v719, %v1346
      %v1371 = vmul.f32 %v702, %v1346
      %v1372 = vmul.f32 %v614, %v1346
      %v1373 = vmul.f32 %v720, %v1346
      %v1374 = vmul.f32 %v703, %v1346
      %v1375 = vmul.f32 %v617, %v1346
      %v1376 = vmul.f32 %v721, %v1346
      %v1377 = vmul.f32 %v704, %v1346
      %v1378 = vmul.f32 %v620, %v1346
      %v1379 = vmul.f32 %v722, %v1346
      %v1380 = vmul.f32 %v705, %v1346
      %v1381 = vmul.f32 %v623, %v1346
      %v1382 = vmul.f32 %v723, %v1346
      %v1383 = vmul.f32 %v706, %v1346
      %v1384 = vmul.f32 %v626, %v1346
      %v1385 = vmul.f32 %v724, %v1346
      %v1386 = vmul.f32 %v707, %v1346
      %v1387 = vmul.f32 %v629, %v1346
      %v1388 = vmul.f32 %v725, %v1346
      %v1389 = vmul.f32 %v708, %v1346
      %v1390 = vmul.f32 %v632, %v1346
      %v1391 = vmul.f32 %v726, %v1346
      %v1392 = vmul.f32 %v709, %v1346
      %v1393 = vmul.f32 %v635, %v1346
      %v1394 = vmul.f32 %v727, %v1346
      %v1443 = vrot.slane %v1347, 1
      %v1444 = vrot.slane %v1348, 1
      %v1445 = vsel %vm894, %v1443, %v1444
      %v1446 = vrot.slane %v1349, 1
      %v1447 = vsel %vm894, %v1444, %v1446
      %v1448 = vrot.slane %v1350, 1
      %v1449 = vrot.slane %v1351, 1
      %v1450 = vsel %vm894, %v1448, %v1449
      %v1451 = vrot.slane %v1352, 1
      %v1452 = vsel %vm894, %v1449, %v1451
      %v1453 = vrot.slane %v1353, 1
      %v1454 = vrot.slane %v1354, 1
      %v1455 = vsel %vm894, %v1453, %v1454
      %v1456 = vrot.slane %v1355, 1
      %v1457 = vsel %vm894, %v1454, %v1456
      %v1458 = vrot.slane %v1356, 1
      %v1459 = vrot.slane %v1357, 1
      %v1460 = vsel %vm894, %v1458, %v1459
      %v1461 = vrot.slane %v1358, 1
      %v1462 = vsel %vm894, %v1459, %v1461
      %v1463 = vrot.slane %v1359, 1
      %v1464 = vrot.slane %v1360, 1
      %v1465 = vsel %vm894, %v1463, %v1464
      %v1466 = vrot.slane %v1361, 1
      %v1467 = vsel %vm894, %v1464, %v1466
      %v1468 = vrot.slane %v1362, 1
      %v1469 = vrot.slane %v1363, 1
      %v1470 = vsel %vm894, %v1468, %v1469
      %v1471 = vrot.slane %v1364, 1
      %v1472 = vsel %vm894, %v1469, %v1471
      %v1473 = vrot.slane %v1365, 1
      %v1474 = vrot.slane %v1366, 1
      %v1475 = vsel %vm894, %v1473, %v1474
      %v1476 = vrot.slane %v1367, 1
      %v1477 = vsel %vm894, %v1474, %v1476
      %v1478 = vrot.slane %v1368, 1
      %v1479 = vrot.slane %v1369, 1
      %v1480 = vsel %vm894, %v1478, %v1479
      %v1481 = vrot.slane %v1370, 1
      %v1482 = vsel %vm894, %v1479, %v1481
      %v1483 = vrot.slane %v1371, 1
      %v1484 = vrot.slane %v1372, 1
      %v1485 = vsel %vm894, %v1483, %v1484
      %v1486 = vrot.slane %v1373, 1
      %v1487 = vsel %vm894, %v1484, %v1486
      %v1488 = vrot.slane %v1374, 1
      %v1489 = vrot.slane %v1375, 1
      %v1490 = vsel %vm894, %v1488, %v1489
      %v1491 = vrot.slane %v1376, 1
      %v1492 = vsel %vm894, %v1489, %v1491
      %v1493 = vrot.slane %v1377, 1
      %v1494 = vrot.slane %v1378, 1
      %v1495 = vsel %vm894, %v1493, %v1494
      %v1496 = vrot.slane %v1379, 1
      %v1497 = vsel %vm894, %v1494, %v1496
      %v1498 = vrot.slane %v1380, 1
      %v1499 = vrot.slane %v1381, 1
      %v1500 = vsel %vm894, %v1498, %v1499
      %v1501 = vrot.slane %v1382, 1
      %v1502 = vsel %vm894, %v1499, %v1501
      %v1503 = vrot.slane %v1383, 1
      %v1504 = vrot.slane %v1384, 1
      %v1505 = vsel %vm894, %v1503, %v1504
      %v1506 = vrot.slane %v1385, 1
      %v1507 = vsel %vm894, %v1504, %v1506
      %v1508 = vrot.slane %v1386, 1
      %v1509 = vrot.slane %v1387, 1
      %v1510 = vsel %vm894, %v1508, %v1509
      %v1511 = vrot.slane %v1388, 1
      %v1512 = vsel %vm894, %v1509, %v1511
      %v1513 = vrot.slane %v1389, 1
      %v1514 = vrot.slane %v1390, 1
      %v1515 = vsel %vm894, %v1513, %v1514
      %v1516 = vrot.slane %v1391, 1
      %v1517 = vsel %vm894, %v1514, %v1516
      %v1518 = vrot.slane %v1392, 1
      %v1519 = vrot.slane %v1393, 1
      %v1520 = vsel %vm894, %v1518, %v1519
      %v1521 = vrot.slane %v1394, 1
      %v1522 = vsel %vm894, %v1519, %v1521
      %v1555 = vadd.f32 %v1314, %v1445
      %v1556 = vadd.f32 %v1315, %v1447
      %v1557 = vadd.f32 %v1316, %v1450
      %v1558 = vadd.f32 %v1317, %v1452
      %v1559 = vadd.f32 %v1318, %v1455
      %v1560 = vadd.f32 %v1319, %v1457
      %v1561 = vadd.f32 %v1320, %v1460
      %v1562 = vadd.f32 %v1321, %v1462
      %v1563 = vadd.f32 %v1322, %v1465
      %v1564 = vadd.f32 %v1323, %v1467
      %v1565 = vadd.f32 %v1324, %v1470
      %v1566 = vadd.f32 %v1325, %v1472
      %v1567 = vadd.f32 %v1326, %v1475
      %v1568 = vadd.f32 %v1327, %v1477
      %v1569 = vadd.f32 %v1328, %v1480
      %v1570 = vadd.f32 %v1329, %v1482
      %v1571 = vadd.f32 %v1330, %v1485
      %v1572 = vadd.f32 %v1331, %v1487
      %v1573 = vadd.f32 %v1332, %v1490
      %v1574 = vadd.f32 %v1333, %v1492
      %v1575 = vadd.f32 %v1334, %v1495
      %v1576 = vadd.f32 %v1335, %v1497
      %v1577 = vadd.f32 %v1336, %v1500
      %v1578 = vadd.f32 %v1337, %v1502
      %v1579 = vadd.f32 %v1338, %v1505
      %v1580 = vadd.f32 %v1339, %v1507
      %v1581 = vadd.f32 %v1340, %v1510
      %v1582 = vadd.f32 %v1341, %v1512
      %v1583 = vadd.f32 %v1342, %v1515
      %v1584 = vadd.f32 %v1343, %v1517
      %v1585 = vadd.f32 %v1344, %v1520
      %v1586 = vadd.f32 %v1345, %v1522
      %v1587 = vperm.slane %v730, 2
      %v1588 = vmul.f32 %v694, %v1587
      %v1589 = vmul.f32 %v590, %v1587
      %v1590 = vmul.f32 %v712, %v1587
      %v1591 = vmul.f32 %v695, %v1587
      %v1592 = vmul.f32 %v593, %v1587
      %v1593 = vmul.f32 %v713, %v1587
      %v1594 = vmul.f32 %v696, %v1587
      %v1595 = vmul.f32 %v596, %v1587
      %v1596 = vmul.f32 %v714, %v1587
      %v1597 = vmul.f32 %v697, %v1587
      %v1598 = vmul.f32 %v599, %v1587
      %v1599 = vmul.f32 %v715, %v1587
      %v1600 = vmul.f32 %v698, %v1587
      %v1601 = vmul.f32 %v602, %v1587
      %v1602 = vmul.f32 %v716, %v1587
      %v1603 = vmul.f32 %v699, %v1587
      %v1604 = vmul.f32 %v605, %v1587
      %v1605 = vmul.f32 %v717, %v1587
      %v1606 = vmul.f32 %v700, %v1587
      %v1607 = vmul.f32 %v608, %v1587
      %v1608 = vmul.f32 %v718, %v1587
      %v1609 = vmul.f32 %v701, %v1587
      %v1610 = vmul.f32 %v611, %v1587
      %v1611 = vmul.f32 %v719, %v1587
      %v1612 = vmul.f32 %v702, %v1587
      %v1613 = vmul.f32 %v614, %v1587
      %v1614 = vmul.f32 %v720, %v1587
      %v1615 = vmul.f32 %v703, %v1587
      %v1616 = vmul.f32 %v617, %v1587
      %v1617 = vmul.f32 %v721, %v1587
      %v1618 = vmul.f32 %v704, %v1587
      %v1619 = vmul.f32 %v620, %v1587
      %v1620 = vmul.f32 %v722, %v1587
      %v1621 = vmul.f32 %v705, %v1587
      %v1622 = vmul.f32 %v623, %v1587
      %v1623 = vmul.f32 %v723, %v1587
      %v1624 = vmul.f32 %v706, %v1587
      %v1625 = vmul.f32 %v626, %v1587
      %v1626 = vmul.f32 %v724, %v1587
      %v1627 = vmul.f32 %v707, %v1587
      %v1628 = vmul.f32 %v629, %v1587
      %v1629 = vmul.f32 %v725, %v1587
      %v1630 = vmul.f32 %v708, %v1587
      %v1631 = vmul.f32 %v632, %v1587
      %v1632 = vmul.f32 %v726, %v1587
      %v1633 = vmul.f32 %v709, %v1587
      %v1634 = vmul.f32 %v635, %v1587
      %v1635 = vmul.f32 %v727, %v1587
      %v1684 = vrot.slane %v1588, 2
      %v1685 = vrot.slane %v1589, 2
      %v1686 = vsel %vm1136, %v1684, %v1685
      %v1687 = vrot.slane %v1590, 2
      %v1688 = vsel %vm1136, %v1685, %v1687
      %v1689 = vrot.slane %v1591, 2
      %v1690 = vrot.slane %v1592, 2
      %v1691 = vsel %vm1136, %v1689, %v1690
      %v1692 = vrot.slane %v1593, 2
      %v1693 = vsel %vm1136, %v1690, %v1692
      %v1694 = vrot.slane %v1594, 2
      %v1695 = vrot.slane %v1595, 2
      %v1696 = vsel %vm1136, %v1694, %v1695
      %v1697 = vrot.slane %v1596, 2
      %v1698 = vsel %vm1136, %v1695, %v1697
      %v1699 = vrot.slane %v1597, 2
      %v1700 = vrot.slane %v1598, 2
      %v1701 = vsel %vm1136, %v1699, %v1700
      %v1702 = vrot.slane %v1599, 2
      %v1703 = vsel %vm1136, %v1700, %v1702
      %v1704 = vrot.slane %v1600, 2
      %v1705 = vrot.slane %v1601, 2
      %v1706 = vsel %vm1136, %v1704, %v1705
      %v1707 = vrot.slane %v1602, 2
      %v1708 = vsel %vm1136, %v1705, %v1707
      %v1709 = vrot.slane %v1603, 2
      %v1710 = vrot.slane %v1604, 2
      %v1711 = vsel %vm1136, %v1709, %v1710
      %v1712 = vrot.slane %v1605, 2
      %v1713 = vsel %vm1136, %v1710, %v1712
      %v1714 = vrot.slane %v1606, 2
      %v1715 = vrot.slane %v1607, 2
      %v1716 = vsel %vm1136, %v1714, %v1715
      %v1717 = vrot.slane %v1608, 2
      %v1718 = vsel %vm1136, %v1715, %v1717
      %v1719 = vrot.slane %v1609, 2
      %v1720 = vrot.slane %v1610, 2
      %v1721 = vsel %vm1136, %v1719, %v1720
      %v1722 = vrot.slane %v1611, 2
      %v1723 = vsel %vm1136, %v1720, %v1722
      %v1724 = vrot.slane %v1612, 2
      %v1725 = vrot.slane %v1613, 2
      %v1726 = vsel %vm1136, %v1724, %v1725
      %v1727 = vrot.slane %v1614, 2
      %v1728 = vsel %vm1136, %v1725, %v1727
      %v1729 = vrot.slane %v1615, 2
      %v1730 = vrot.slane %v1616, 2
      %v1731 = vsel %vm1136, %v1729, %v1730
      %v1732 = vrot.slane %v1617, 2
      %v1733 = vsel %vm1136, %v1730, %v1732
      %v1734 = vrot.slane %v1618, 2
      %v1735 = vrot.slane %v1619, 2
      %v1736 = vsel %vm1136, %v1734, %v1735
      %v1737 = vrot.slane %v1620, 2
      %v1738 = vsel %vm1136, %v1735, %v1737
      %v1739 = vrot.slane %v1621, 2
      %v1740 = vrot.slane %v1622, 2
      %v1741 = vsel %vm1136, %v1739, %v1740
      %v1742 = vrot.slane %v1623, 2
      %v1743 = vsel %vm1136, %v1740, %v1742
      %v1744 = vrot.slane %v1624, 2
      %v1745 = vrot.slane %v1625, 2
      %v1746 = vsel %vm1136, %v1744, %v1745
      %v1747 = vrot.slane %v1626, 2
      %v1748 = vsel %vm1136, %v1745, %v1747
      %v1749 = vrot.slane %v1627, 2
      %v1750 = vrot.slane %v1628, 2
      %v1751 = vsel %vm1136, %v1749, %v1750
      %v1752 = vrot.slane %v1629, 2
      %v1753 = vsel %vm1136, %v1750, %v1752
      %v1754 = vrot.slane %v1630, 2
      %v1755 = vrot.slane %v1631, 2
      %v1756 = vsel %vm1136, %v1754, %v1755
      %v1757 = vrot.slane %v1632, 2
      %v1758 = vsel %vm1136, %v1755, %v1757
      %v1759 = vrot.slane %v1633, 2
      %v1760 = vrot.slane %v1634, 2
      %v1761 = vsel %vm1136, %v1759, %v1760
      %v1762 = vrot.slane %v1635, 2
      %v1763 = vsel %vm1136, %v1760, %v1762
      %v1796 = vadd.f32 %v1555, %v1686
      %v1797 = vadd.f32 %v1556, %v1688
      %v1798 = vadd.f32 %v1557, %v1691
      %v1799 = vadd.f32 %v1558, %v1693
      %v1800 = vadd.f32 %v1559, %v1696
      %v1801 = vadd.f32 %v1560, %v1698
      %v1802 = vadd.f32 %v1561, %v1701
      %v1803 = vadd.f32 %v1562, %v1703
      %v1804 = vadd.f32 %v1563, %v1706
      %v1805 = vadd.f32 %v1564, %v1708
      %v1806 = vadd.f32 %v1565, %v1711
      %v1807 = vadd.f32 %v1566, %v1713
      %v1808 = vadd.f32 %v1567, %v1716
      %v1809 = vadd.f32 %v1568, %v1718
      %v1810 = vadd.f32 %v1569, %v1721
      %v1811 = vadd.f32 %v1570, %v1723
      %v1812 = vadd.f32 %v1571, %v1726
      %v1813 = vadd.f32 %v1572, %v1728
      %v1814 = vadd.f32 %v1573, %v1731
      %v1815 = vadd.f32 %v1574, %v1733
      %v1816 = vadd.f32 %v1575, %v1736
      %v1817 = vadd.f32 %v1576, %v1738
      %v1818 = vadd.f32 %v1577, %v1741
      %v1819 = vadd.f32 %v1578, %v1743
      %v1820 = vadd.f32 %v1579, %v1746
      %v1821 = vadd.f32 %v1580, %v1748
      %v1822 = vadd.f32 %v1581, %v1751
      %v1823 = vadd.f32 %v1582, %v1753
      %v1824 = vadd.f32 %v1583, %v1756
      %v1825 = vadd.f32 %v1584, %v1758
      %v1826 = vadd.f32 %v1585, %v1761
      %v1827 = vadd.f32 %v1586, %v1763
      %v1828 = vperm.slane %v731, 0
      %v1829 = vmul.f32 %v695, %v1828
      %v1830 = vmul.f32 %v593, %v1828
      %v1831 = vmul.f32 %v696, %v1828
      %v1832 = vmul.f32 %v596, %v1828
      %v1833 = vmul.f32 %v697, %v1828
      %v1834 = vmul.f32 %v599, %v1828
      %v1835 = vmul.f32 %v698, %v1828
      %v1836 = vmul.f32 %v602, %v1828
      %v1837 = vmul.f32 %v699, %v1828
      %v1838 = vmul.f32 %v605, %v1828
      %v1839 = vmul.f32 %v700, %v1828
      %v1840 = vmul.f32 %v608, %v1828
      %v1841 = vmul.f32 %v701, %v1828
      %v1842 = vmul.f32 %v611, %v1828
      %v1843 = vmul.f32 %v702, %v1828
      %v1844 = vmul.f32 %v614, %v1828
      %v1845 = vmul.f32 %v703, %v1828
      %v1846 = vmul.f32 %v617, %v1828
      %v1847 = vmul.f32 %v704, %v1828
      %v1848 = vmul.f32 %v620, %v1828
      %v1849 = vmul.f32 %v705, %v1828
      %v1850 = vmul.f32 %v623, %v1828
      %v1851 = vmul.f32 %v706, %v1828
      %v1852 = vmul.f32 %v626, %v1828
      %v1853 = vmul.f32 %v707, %v1828
      %v1854 = vmul.f32 %v629, %v1828
      %v1855 = vmul.f32 %v708, %v1828
      %v1856 = vmul.f32 %v632, %v1828
      %v1857 = vmul.f32 %v709, %v1828
      %v1858 = vmul.f32 %v635, %v1828
      %v1859 = vmul.f32 %v710, %v1828
      %v1860 = vmul.f32 %v638, %v1828
      %v1861 = vadd.f32 %v1796, %v1829
      %v1862 = vadd.f32 %v1797, %v1830
      %v1863 = vadd.f32 %v1798, %v1831
      %v1864 = vadd.f32 %v1799, %v1832
      %v1865 = vadd.f32 %v1800, %v1833
      %v1866 = vadd.f32 %v1801, %v1834
      %v1867 = vadd.f32 %v1802, %v1835
      %v1868 = vadd.f32 %v1803, %v1836
      %v1869 = vadd.f32 %v1804, %v1837
      %v1870 = vadd.f32 %v1805, %v1838
      %v1871 = vadd.f32 %v1806, %v1839
      %v1872 = vadd.f32 %v1807, %v1840
      %v1873 = vadd.f32 %v1808, %v1841
      %v1874 = vadd.f32 %v1809, %v1842
      %v1875 = vadd.f32 %v1810, %v1843
      %v1876 = vadd.f32 %v1811, %v1844
      %v1877 = vadd.f32 %v1812, %v1845
      %v1878 = vadd.f32 %v1813, %v1846
      %v1879 = vadd.f32 %v1814, %v1847
      %v1880 = vadd.f32 %v1815, %v1848
      %v1881 = vadd.f32 %v1816, %v1849
      %v1882 = vadd.f32 %v1817, %v1850
      %v1883 = vadd.f32 %v1818, %v1851
      %v1884 = vadd.f32 %v1819, %v1852
      %v1885 = vadd.f32 %v1820, %v1853
      %v1886 = vadd.f32 %v1821, %v1854
      %v1887 = vadd.f32 %v1822, %v1855
      %v1888 = vadd.f32 %v1823, %v1856
      %v1889 = vadd.f32 %v1824, %v1857
      %v1890 = vadd.f32 %v1825, %v1858
      %v1891 = vadd.f32 %v1826, %v1859
      %v1892 = vadd.f32 %v1827, %v1860
      %v1893 = vperm.slane %v731, 1
      %v1894 = vmul.f32 %v695, %v1893
      %v1895 = vmul.f32 %v593, %v1893
      %v1896 = vmul.f32 %v713, %v1893
      %v1897 = vmul.f32 %v696, %v1893
      %v1898 = vmul.f32 %v596, %v1893
      %v1899 = vmul.f32 %v714, %v1893
      %v1900 = vmul.f32 %v697, %v1893
      %v1901 = vmul.f32 %v599, %v1893
      %v1902 = vmul.f32 %v715, %v1893
      %v1903 = vmul.f32 %v698, %v1893
      %v1904 = vmul.f32 %v602, %v1893
      %v1905 = vmul.f32 %v716, %v1893
      %v1906 = vmul.f32 %v699, %v1893
      %v1907 = vmul.f32 %v605, %v1893
      %v1908 = vmul.f32 %v717, %v1893
      %v1909 = vmul.f32 %v700, %v1893
      %v1910 = vmul.f32 %v608, %v1893
      %v1911 = vmul.f32 %v718, %v1893
      %v1912 = vmul.f32 %v701, %v1893
      %v1913 = vmul.f32 %v611, %v1893
      %v1914 = vmul.f32 %v719, %v1893
      %v1915 = vmul.f32 %v702, %v1893
      %v1916 = vmul.f32 %v614, %v1893
      %v1917 = vmul.f32 %v720, %v1893
      %v1918 = vmul.f32 %v703, %v1893
      %v1919 = vmul.f32 %v617, %v1893
      %v1920 = vmul.f32 %v721, %v1893
      %v1921 = vmul.f32 %v704, %v1893
      %v1922 = vmul.f32 %v620, %v1893
      %v1923 = vmul.f32 %v722, %v1893
      %v1924 = vmul.f32 %v705, %v1893
      %v1925 = vmul.f32 %v623, %v1893
      %v1926 = vmul.f32 %v723, %v1893
      %v1927 = vmul.f32 %v706, %v1893
      %v1928 = vmul.f32 %v626, %v1893
      %v1929 = vmul.f32 %v724, %v1893
      %v1930 = vmul.f32 %v707, %v1893
      %v1931 = vmul.f32 %v629, %v1893
      %v1932 = vmul.f32 %v725, %v1893
      %v1933 = vmul.f32 %v708, %v1893
      %v1934 = vmul.f32 %v632, %v1893
      %v1935 = vmul.f32 %v726, %v1893
      %v1936 = vmul.f32 %v709, %v1893
      %v1937 = vmul.f32 %v635, %v1893
      %v1938 = vmul.f32 %v727, %v1893
      %v1939 = vmul.f32 %v710, %v1893
      %v1940 = vmul.f32 %v638, %v1893
      %v1941 = vmul.f32 %v728, %v1893
      %v1990 = vrot.slane %v1894, 1
      %v1991 = vrot.slane %v1895, 1
      %v1992 = vsel %vm894, %v1990, %v1991
      %v1993 = vrot.slane %v1896, 1
      %v1994 = vsel %vm894, %v1991, %v1993
      %v1995 = vrot.slane %v1897, 1
      %v1996 = vrot.slane %v1898, 1
      %v1997 = vsel %vm894, %v1995, %v1996
      %v1998 = vrot.slane %v1899, 1
      %v1999 = vsel %vm894, %v1996, %v1998
      %v2000 = vrot.slane %v1900, 1
      %v2001 = vrot.slane %v1901, 1
      %v2002 = vsel %vm894, %v2000, %v2001
      %v2003 = vrot.slane %v1902, 1
      %v2004 = vsel %vm894, %v2001, %v2003
      %v2005 = vrot.slane %v1903, 1
      %v2006 = vrot.slane %v1904, 1
      %v2007 = vsel %vm894, %v2005, %v2006
      %v2008 = vrot.slane %v1905, 1
      %v2009 = vsel %vm894, %v2006, %v2008
      %v2010 = vrot.slane %v1906, 1
      %v2011 = vrot.slane %v1907, 1
      %v2012 = vsel %vm894, %v2010, %v2011
      %v2013 = vrot.slane %v1908, 1
      %v2014 = vsel %vm894, %v2011, %v2013
      %v2015 = vrot.slane %v1909, 1
      %v2016 = vrot.slane %v1910, 1
      %v2017 = vsel %vm894, %v2015, %v2016
      %v2018 = vrot.slane %v1911, 1
      %v2019 = vsel %vm894, %v2016, %v2018
      %v2020 = vrot.slane %v1912, 1
      %v2021 = vrot.slane %v1913, 1
      %v2022 = vsel %vm894, %v2020, %v2021
      %v2023 = vrot.slane %v1914, 1
      %v2024 = vsel %vm894, %v2021, %v2023
      %v2025 = vrot.slane %v1915, 1
      %v2026 = vrot.slane %v1916, 1
      %v2027 = vsel %vm894, %v2025, %v2026
      %v2028 = vrot.slane %v1917, 1
      %v2029 = vsel %vm894, %v2026, %v2028
      %v2030 = vrot.slane %v1918, 1
      %v2031 = vrot.slane %v1919, 1
      %v2032 = vsel %vm894, %v2030, %v2031
      %v2033 = vrot.slane %v1920, 1
      %v2034 = vsel %vm894, %v2031, %v2033
      %v2035 = vrot.slane %v1921, 1
      %v2036 = vrot.slane %v1922, 1
      %v2037 = vsel %vm894, %v2035, %v2036
      %v2038 = vrot.slane %v1923, 1
      %v2039 = vsel %vm894, %v2036, %v2038
      %v2040 = vrot.slane %v1924, 1
      %v2041 = vrot.slane %v1925, 1
      %v2042 = vsel %vm894, %v2040, %v2041
      %v2043 = vrot.slane %v1926, 1
      %v2044 = vsel %vm894, %v2041, %v2043
      %v2045 = vrot.slane %v1927, 1
      %v2046 = vrot.slane %v1928, 1
      %v2047 = vsel %vm894, %v2045, %v2046
      %v2048 = vrot.slane %v1929, 1
      %v2049 = vsel %vm894, %v2046, %v2048
      %v2050 = vrot.slane %v1930, 1
      %v2051 = vrot.slane %v1931, 1
      %v2052 = vsel %vm894, %v2050, %v2051
      %v2053 = vrot.slane %v1932, 1
      %v2054 = vsel %vm894, %v2051, %v2053
      %v2055 = vrot.slane %v1933, 1
      %v2056 = vrot.slane %v1934, 1
      %v2057 = vsel %vm894, %v2055, %v2056
      %v2058 = vrot.slane %v1935, 1
      %v2059 = vsel %vm894, %v2056, %v2058
      %v2060 = vrot.slane %v1936, 1
      %v2061 = vrot.slane %v1937, 1
      %v2062 = vsel %vm894, %v2060, %v2061
      %v2063 = vrot.slane %v1938, 1
      %v2064 = vsel %vm894, %v2061, %v2063
      %v2065 = vrot.slane %v1939, 1
      %v2066 = vrot.slane %v1940, 1
      %v2067 = vsel %vm894, %v2065, %v2066
      %v2068 = vrot.slane %v1941, 1
      %v2069 = vsel %vm894, %v2066, %v2068
      %v2102 = vadd.f32 %v1861, %v1992
      %v2103 = vadd.f32 %v1862, %v1994
      %v2104 = vadd.f32 %v1863, %v1997
      %v2105 = vadd.f32 %v1864, %v1999
      %v2106 = vadd.f32 %v1865, %v2002
      %v2107 = vadd.f32 %v1866, %v2004
      %v2108 = vadd.f32 %v1867, %v2007
      %v2109 = vadd.f32 %v1868, %v2009
      %v2110 = vadd.f32 %v1869, %v2012
      %v2111 = vadd.f32 %v1870, %v2014
      %v2112 = vadd.f32 %v1871, %v2017
      %v2113 = vadd.f32 %v1872, %v2019
      %v2114 = vadd.f32 %v1873, %v2022
      %v2115 = vadd.f32 %v1874, %v2024
      %v2116 = vadd.f32 %v1875, %v2027
      %v2117 = vadd.f32 %v1876, %v2029
      %v2118 = vadd.f32 %v1877, %v2032
      %v2119 = vadd.f32 %v1878, %v2034
      %v2120 = vadd.f32 %v1879, %v2037
      %v2121 = vadd.f32 %v1880, %v2039
      %v2122 = vadd.f32 %v1881, %v2042
      %v2123 = vadd.f32 %v1882, %v2044
      %v2124 = vadd.f32 %v1883, %v2047
      %v2125 = vadd.f32 %v1884, %v2049
      %v2126 = vadd.f32 %v1885, %v2052
      %v2127 = vadd.f32 %v1886, %v2054
      %v2128 = vadd.f32 %v1887, %v2057
      %v2129 = vadd.f32 %v1888, %v2059
      %v2130 = vadd.f32 %v1889, %v2062
      %v2131 = vadd.f32 %v1890, %v2064
      %v2132 = vadd.f32 %v1891, %v2067
      %v2133 = vadd.f32 %v1892, %v2069
      %v2134 = vperm.slane %v731, 2
      %v2135 = vmul.f32 %v695, %v2134
      %v2136 = vmul.f32 %v593, %v2134
      %v2137 = vmul.f32 %v713, %v2134
      %v2138 = vmul.f32 %v696, %v2134
      %v2139 = vmul.f32 %v596, %v2134
      %v2140 = vmul.f32 %v714, %v2134
      %v2141 = vmul.f32 %v697, %v2134
      %v2142 = vmul.f32 %v599, %v2134
      %v2143 = vmul.f32 %v715, %v2134
      %v2144 = vmul.f32 %v698, %v2134
      %v2145 = vmul.f32 %v602, %v2134
      %v2146 = vmul.f32 %v716, %v2134
      %v2147 = vmul.f32 %v699, %v2134
      %v2148 = vmul.f32 %v605, %v2134
      %v2149 = vmul.f32 %v717, %v2134
      %v2150 = vmul.f32 %v700, %v2134
      %v2151 = vmul.f32 %v608, %v2134
      %v2152 = vmul.f32 %v718, %v2134
      %v2153 = vmul.f32 %v701, %v2134
      %v2154 = vmul.f32 %v611, %v2134
      %v2155 = vmul.f32 %v719, %v2134
      %v2156 = vmul.f32 %v702, %v2134
      %v2157 = vmul.f32 %v614, %v2134
      %v2158 = vmul.f32 %v720, %v2134
      %v2159 = vmul.f32 %v703, %v2134
      %v2160 = vmul.f32 %v617, %v2134
      %v2161 = vmul.f32 %v721, %v2134
      %v2162 = vmul.f32 %v704, %v2134
      %v2163 = vmul.f32 %v620, %v2134
      %v2164 = vmul.f32 %v722, %v2134
      %v2165 = vmul.f32 %v705, %v2134
      %v2166 = vmul.f32 %v623, %v2134
      %v2167 = vmul.f32 %v723, %v2134
      %v2168 = vmul.f32 %v706, %v2134
      %v2169 = vmul.f32 %v626, %v2134
      %v2170 = vmul.f32 %v724, %v2134
      %v2171 = vmul.f32 %v707, %v2134
      %v2172 = vmul.f32 %v629, %v2134
      %v2173 = vmul.f32 %v725, %v2134
      %v2174 = vmul.f32 %v708, %v2134
      %v2175 = vmul.f32 %v632, %v2134
      %v2176 = vmul.f32 %v726, %v2134
      %v2177 = vmul.f32 %v709, %v2134
      %v2178 = vmul.f32 %v635, %v2134
      %v2179 = vmul.f32 %v727, %v2134
      %v2180 = vmul.f32 %v710, %v2134
      %v2181 = vmul.f32 %v638, %v2134
      %v2182 = vmul.f32 %v728, %v2134
      %v2231 = vrot.slane %v2135, 2
      %v2232 = vrot.slane %v2136, 2
      %v2233 = vsel %vm1136, %v2231, %v2232
      %v2234 = vrot.slane %v2137, 2
      %v2235 = vsel %vm1136, %v2232, %v2234
      %v2236 = vrot.slane %v2138, 2
      %v2237 = vrot.slane %v2139, 2
      %v2238 = vsel %vm1136, %v2236, %v2237
      %v2239 = vrot.slane %v2140, 2
      %v2240 = vsel %vm1136, %v2237, %v2239
      %v2241 = vrot.slane %v2141, 2
      %v2242 = vrot.slane %v2142, 2
      %v2243 = vsel %vm1136, %v2241, %v2242
      %v2244 = vrot.slane %v2143, 2
      %v2245 = vsel %vm1136, %v2242, %v2244
      %v2246 = vrot.slane %v2144, 2
      %v2247 = vrot.slane %v2145, 2
      %v2248 = vsel %vm1136, %v2246, %v2247
      %v2249 = vrot.slane %v2146, 2
      %v2250 = vsel %vm1136, %v2247, %v2249
      %v2251 = vrot.slane %v2147, 2
      %v2252 = vrot.slane %v2148, 2
      %v2253 = vsel %vm1136, %v2251, %v2252
      %v2254 = vrot.slane %v2149, 2
      %v2255 = vsel %vm1136, %v2252, %v2254
      %v2256 = vrot.slane %v2150, 2
      %v2257 = vrot.slane %v2151, 2
      %v2258 = vsel %vm1136, %v2256, %v2257
      %v2259 = vrot.slane %v2152, 2
      %v2260 = vsel %vm1136, %v2257, %v2259
      %v2261 = vrot.slane %v2153, 2
      %v2262 = vrot.slane %v2154, 2
      %v2263 = vsel %vm1136, %v2261, %v2262
      %v2264 = vrot.slane %v2155, 2
      %v2265 = vsel %vm1136, %v2262, %v2264
      %v2266 = vrot.slane %v2156, 2
      %v2267 = vrot.slane %v2157, 2
      %v2268 = vsel %vm1136, %v2266, %v2267
      %v2269 = vrot.slane %v2158, 2
      %v2270 = vsel %vm1136, %v2267, %v2269
      %v2271 = vrot.slane %v2159, 2
      %v2272 = vrot.slane %v2160, 2
      %v2273 = vsel %vm1136, %v2271, %v2272
      %v2274 = vrot.slane %v2161, 2
      %v2275 = vsel %vm1136, %v2272, %v2274
      %v2276 = vrot.slane %v2162, 2
      %v2277 = vrot.slane %v2163, 2
      %v2278 = vsel %vm1136, %v2276, %v2277
      %v2279 = vrot.slane %v2164, 2
      %v2280 = vsel %vm1136, %v2277, %v2279
      %v2281 = vrot.slane %v2165, 2
      %v2282 = vrot.slane %v2166, 2
      %v2283 = vsel %vm1136, %v2281, %v2282
      %v2284 = vrot.slane %v2167, 2
      %v2285 = vsel %vm1136, %v2282, %v2284
      %v2286 = vrot.slane %v2168, 2
      %v2287 = vrot.slane %v2169, 2
      %v2288 = vsel %vm1136, %v2286, %v2287
      %v2289 = vrot.slane %v2170, 2
      %v2290 = vsel %vm1136, %v2287, %v2289
      %v2291 = vrot.slane %v2171, 2
      %v2292 = vrot.slane %v2172, 2
      %v2293 = vsel %vm1136, %v2291, %v2292
      %v2294 = vrot.slane %v2173, 2
      %v2295 = vsel %vm1136, %v2292, %v2294
      %v2296 = vrot.slane %v2174, 2
      %v2297 = vrot.slane %v2175, 2
      %v2298 = vsel %vm1136, %v2296, %v2297
      %v2299 = vrot.slane %v2176, 2
      %v2300 = vsel %vm1136, %v2297, %v2299
      %v2301 = vrot.slane %v2177, 2
      %v2302 = vrot.slane %v2178, 2
      %v2303 = vsel %vm1136, %v2301, %v2302
      %v2304 = vrot.slane %v2179, 2
      %v2305 = vsel %vm1136, %v2302, %v2304
      %v2306 = vrot.slane %v2180, 2
      %v2307 = vrot.slane %v2181, 2
      %v2308 = vsel %vm1136, %v2306, %v2307
      %v2309 = vrot.slane %v2182, 2
      %v2310 = vsel %vm1136, %v2307, %v2309
      %v2343 = vadd.f32 %v2102, %v2233
      %v2344 = vadd.f32 %v2103, %v2235
      %v2345 = vadd.f32 %v2104, %v2238
      %v2346 = vadd.f32 %v2105, %v2240
      %v2347 = vadd.f32 %v2106, %v2243
      %v2348 = vadd.f32 %v2107, %v2245
      %v2349 = vadd.f32 %v2108, %v2248
      %v2350 = vadd.f32 %v2109, %v2250
      %v2351 = vadd.f32 %v2110, %v2253
      %v2352 = vadd.f32 %v2111, %v2255
      %v2353 = vadd.f32 %v2112, %v2258
      %v2354 = vadd.f32 %v2113, %v2260
      %v2355 = vadd.f32 %v2114, %v2263
      %v2356 = vadd.f32 %v2115, %v2265
      %v2357 = vadd.f32 %v2116, %v2268
      %v2358 = vadd.f32 %v2117, %v2270
      %v2359 = vadd.f32 %v2118, %v2273
      %v2360 = vadd.f32 %v2119, %v2275
      %v2361 = vadd.f32 %v2120, %v2278
      %v2362 = vadd.f32 %v2121, %v2280
      %v2363 = vadd.f32 %v2122, %v2283
      %v2364 = vadd.f32 %v2123, %v2285
      %v2365 = vadd.f32 %v2124, %v2288
      %v2366 = vadd.f32 %v2125, %v2290
      %v2367 = vadd.f32 %v2126, %v2293
      %v2368 = vadd.f32 %v2127, %v2295
      %v2369 = vadd.f32 %v2128, %v2298
      %v2370 = vadd.f32 %v2129, %v2300
      %v2371 = vadd.f32 %v2130, %v2303
      %v2372 = vadd.f32 %v2131, %v2305
      %v2373 = vadd.f32 %v2132, %v2308
      %v2374 = vadd.f32 %v2133, %v2310
      %v2375 = vld [vmem:[%s4] sm:$0x1]
      %v2377 = vperm.slane %v2375, 0
      %v2379 = vmul.f32 %v2343, %v2377
      %v2380 = vmul.f32 %v2344, %v2377
      %v2381 = vmul.f32 %v2345, %v2377
      %v2382 = vmul.f32 %v2346, %v2377
      %v2383 = vmul.f32 %v2347, %v2377
      %v2384 = vmul.f32 %v2348, %v2377
      %v2385 = vmul.f32 %v2349, %v2377
      %v2386 = vmul.f32 %v2350, %v2377
      %v2387 = vmul.f32 %v2351, %v2377
      %v2388 = vmul.f32 %v2352, %v2377
      %v2389 = vmul.f32 %v2353, %v2377
      %v2390 = vmul.f32 %v2354, %v2377
      %v2391 = vmul.f32 %v2355, %v2377
      %v2392 = vmul.f32 %v2356, %v2377
      %v2393 = vmul.f32 %v2357, %v2377
      %v2394 = vmul.f32 %v2358, %v2377
      %v2395 = vmul.f32 %v2359, %v2377
      %v2396 = vmul.f32 %v2360, %v2377
      %v2397 = vmul.f32 %v2361, %v2377
      %v2398 = vmul.f32 %v2362, %v2377
      %v2399 = vmul.f32 %v2363, %v2377
      %v2400 = vmul.f32 %v2364, %v2377
      %v2401 = vmul.f32 %v2365, %v2377
      %v2402 = vmul.f32 %v2366, %v2377
      %v2403 = vmul.f32 %v2367, %v2377
      %v2404 = vmul.f32 %v2368, %v2377
      %v2405 = vmul.f32 %v2369, %v2377
      %v2406 = vmul.f32 %v2370, %v2377
      %v2407 = vmul.f32 %v2371, %v2377
      %v2408 = vmul.f32 %v2372, %v2377
      %v2409 = vmul.f32 %v2373, %v2377
      %v2410 = vmul.f32 %v2374, %v2377
      %v2411 = vld [vmem:[%s5] sm:$0x1]
      %v2413 = vperm.slane %v2411, 0
      %v2415 = vadd.f32 %v2379, %v2413
      %v2416 = vadd.f32 %v2380, %v2413
      %v2417 = vadd.f32 %v2381, %v2413
      %v2418 = vadd.f32 %v2382, %v2413
      %v2419 = vadd.f32 %v2383, %v2413
      %v2420 = vadd.f32 %v2384, %v2413
      %v2421 = vadd.f32 %v2385, %v2413
      %v2422 = vadd.f32 %v2386, %v2413
      %v2423 = vadd.f32 %v2387, %v2413
      %v2424 = vadd.f32 %v2388, %v2413
      %v2425 = vadd.f32 %v2389, %v2413
      %v2426 = vadd.f32 %v2390, %v2413
      %v2427 = vadd.f32 %v2391, %v2413
      %v2428 = vadd.f32 %v2392, %v2413
      %v2429 = vadd.f32 %v2393, %v2413
      %v2430 = vadd.f32 %v2394, %v2413
      %v2431 = vadd.f32 %v2395, %v2413
      %v2432 = vadd.f32 %v2396, %v2413
      %v2433 = vadd.f32 %v2397, %v2413
      %v2434 = vadd.f32 %v2398, %v2413
      %v2435 = vadd.f32 %v2399, %v2413
      %v2436 = vadd.f32 %v2400, %v2413
      %v2437 = vadd.f32 %v2401, %v2413
      %v2438 = vadd.f32 %v2402, %v2413
      %v2439 = vadd.f32 %v2403, %v2413
      %v2440 = vadd.f32 %v2404, %v2413
      %v2441 = vadd.f32 %v2405, %v2413
      %v2442 = vadd.f32 %v2406, %v2413
      %v2443 = vadd.f32 %v2407, %v2413
      %v2444 = vadd.f32 %v2408, %v2413
      %v2445 = vadd.f32 %v2409, %v2413
      %v2446 = vadd.f32 %v2410, %v2413
      %v2447 = vxor.u32 %v2415, 2147483648
      %v2448 = vxor.u32 %v2416, 2147483648
      %v2449 = vxor.u32 %v2417, 2147483648
      %v2450 = vxor.u32 %v2418, 2147483648
      %v2451 = vxor.u32 %v2419, 2147483648
      %v2452 = vxor.u32 %v2420, 2147483648
      %v2453 = vxor.u32 %v2421, 2147483648
      %v2454 = vxor.u32 %v2422, 2147483648
      %v2455 = vxor.u32 %v2423, 2147483648
      %v2456 = vxor.u32 %v2424, 2147483648
      %v2457 = vxor.u32 %v2425, 2147483648
      %v2458 = vxor.u32 %v2426, 2147483648
      %v2459 = vxor.u32 %v2427, 2147483648
      %v2460 = vxor.u32 %v2428, 2147483648
      %v2461 = vxor.u32 %v2429, 2147483648
      %v2462 = vxor.u32 %v2430, 2147483648
      %v2463 = vxor.u32 %v2431, 2147483648
      %v2464 = vxor.u32 %v2432, 2147483648
      %v2465 = vxor.u32 %v2433, 2147483648
      %v2466 = vxor.u32 %v2434, 2147483648
      %v2467 = vxor.u32 %v2435, 2147483648
      %v2468 = vxor.u32 %v2436, 2147483648
      %v2469 = vxor.u32 %v2437, 2147483648
      %v2470 = vxor.u32 %v2438, 2147483648
      %v2471 = vxor.u32 %v2439, 2147483648
      %v2472 = vxor.u32 %v2440, 2147483648
      %v2473 = vxor.u32 %v2441, 2147483648
      %v2474 = vxor.u32 %v2442, 2147483648
      %v2475 = vxor.u32 %v2443, 2147483648
      %v2476 = vxor.u32 %v2444, 2147483648
      %v2477 = vxor.u32 %v2445, 2147483648
      %v2478 = vxor.u32 %v2446, 2147483648
      %v2479 = vmul.f32 %v2447, 1.442695
      %v2480 = vpow.pop %v2479
      %v2481 = vmul.f32 %v2448, 1.442695
      %v2482 = vpow.pop %v2481
      %v2483 = vmul.f32 %v2449, 1.442695
      %v2484 = vpow.pop %v2483
      %v2485 = vmul.f32 %v2450, 1.442695
      %v2486 = vpow.pop %v2485
      %v2487 = vmul.f32 %v2451, 1.442695
      %v2488 = vpow.pop %v2487
      %v2489 = vmul.f32 %v2452, 1.442695
      %v2490 = vpow.pop %v2489
      %v2491 = vmul.f32 %v2453, 1.442695
      %v2492 = vpow.pop %v2491
      %v2493 = vmul.f32 %v2454, 1.442695
      %v2494 = vpow.pop %v2493
      %v2495 = vmul.f32 %v2455, 1.442695
      %v2496 = vpow.pop %v2495
      %v2497 = vmul.f32 %v2456, 1.442695
      %v2498 = vpow.pop %v2497
      %v2499 = vmul.f32 %v2457, 1.442695
      %v2500 = vpow.pop %v2499
      %v2501 = vmul.f32 %v2458, 1.442695
      %v2502 = vpow.pop %v2501
      %v2503 = vmul.f32 %v2459, 1.442695
      %v2504 = vpow.pop %v2503
      %v2505 = vmul.f32 %v2460, 1.442695
      %v2506 = vpow.pop %v2505
      %v2507 = vmul.f32 %v2461, 1.442695
      %v2508 = vpow.pop %v2507
      %v2509 = vmul.f32 %v2462, 1.442695
      %v2510 = vpow.pop %v2509
      %v2511 = vmul.f32 %v2463, 1.442695
      %v2512 = vpow.pop %v2511
      %v2513 = vmul.f32 %v2464, 1.442695
      %v2514 = vpow.pop %v2513
      %v2515 = vmul.f32 %v2465, 1.442695
      %v2516 = vpow.pop %v2515
      %v2517 = vmul.f32 %v2466, 1.442695
      %v2518 = vpow.pop %v2517
      %v2519 = vmul.f32 %v2467, 1.442695
      %v2520 = vpow.pop %v2519
      %v2521 = vmul.f32 %v2468, 1.442695
      %v2522 = vpow.pop %v2521
      %v2523 = vmul.f32 %v2469, 1.442695
      %v2524 = vpow.pop %v2523
      %v2525 = vmul.f32 %v2470, 1.442695
      %v2526 = vpow.pop %v2525
      %v2527 = vmul.f32 %v2471, 1.442695
      %v2528 = vpow.pop %v2527
      %v2529 = vmul.f32 %v2472, 1.442695
      %v2530 = vpow.pop %v2529
      %v2531 = vmul.f32 %v2473, 1.442695
      %v2532 = vpow.pop %v2531
      %v2533 = vmul.f32 %v2474, 1.442695
      %v2534 = vpow.pop %v2533
      %v2535 = vmul.f32 %v2475, 1.442695
      %v2536 = vpow.pop %v2535
      %v2537 = vmul.f32 %v2476, 1.442695
      %v2538 = vpow.pop %v2537
      %v2539 = vmul.f32 %v2477, 1.442695
      %v2540 = vpow.pop %v2539
      %v2541 = vmul.f32 %v2478, 1.442695
      %v2542 = vpow.pop %v2541
      %v2543 = vadd.f32 %v2480, 1.0
      %v2544 = vadd.f32 %v2482, 1.0
      %v2545 = vadd.f32 %v2484, 1.0
      %v2546 = vadd.f32 %v2486, 1.0
      %v2547 = vadd.f32 %v2488, 1.0
      %v2548 = vadd.f32 %v2490, 1.0
      %v2549 = vadd.f32 %v2492, 1.0
      %v2550 = vadd.f32 %v2494, 1.0
      %v2551 = vadd.f32 %v2496, 1.0
      %v2552 = vadd.f32 %v2498, 1.0
      %v2553 = vadd.f32 %v2500, 1.0
      %v2554 = vadd.f32 %v2502, 1.0
      %v2555 = vadd.f32 %v2504, 1.0
      %v2556 = vadd.f32 %v2506, 1.0
      %v2557 = vadd.f32 %v2508, 1.0
      %v2558 = vadd.f32 %v2510, 1.0
      %v2559 = vadd.f32 %v2512, 1.0
      %v2560 = vadd.f32 %v2514, 1.0
      %v2561 = vadd.f32 %v2516, 1.0
      %v2562 = vadd.f32 %v2518, 1.0
      %v2563 = vadd.f32 %v2520, 1.0
      %v2564 = vadd.f32 %v2522, 1.0
      %v2565 = vadd.f32 %v2524, 1.0
      %v2566 = vadd.f32 %v2526, 1.0
      %v2567 = vadd.f32 %v2528, 1.0
      %v2568 = vadd.f32 %v2530, 1.0
      %v2569 = vadd.f32 %v2532, 1.0
      %v2570 = vadd.f32 %v2534, 1.0
      %v2571 = vadd.f32 %v2536, 1.0
      %v2572 = vadd.f32 %v2538, 1.0
      %v2573 = vadd.f32 %v2540, 1.0
      %v2574 = vadd.f32 %v2542, 1.0
      %v2575 = vrcp.pop %v2543
      %v2576 = vmul.f32 %v2543, %v2575
      %v2577 = vsub.f32 1.0, %v2576
      %v2578 = vmul.f32 %v2575, %v2577
      %v2579 = vadd.f32 %v2575, %v2578
      %vm2580 = vweird.f32 %v2543
      %vm2581 = vweird.f32 %v2575
      %vm2582 = vmor %vm2580, %vm2581
      %v2583 = vsel %vm2582, %v2575, %v2579
      %v2584 = vand.u32 2147483647, %v2543
      %vm2585 = vcmp.eq.f32.partialorder %v2584, 8.507059e+37
      %v2586 = vand.u32 %v2543, 2147483648
      %v2587 = vor.u32 1.1754944e-38, %v2586
      %v2588 = vsel %vm2585, %v2587, %v2583
      %v2589 = vmul.f32 1.0, %v2588
      %v2590 = vrcp.pop %v2544
      %v2591 = vmul.f32 %v2544, %v2590
      %v2592 = vsub.f32 1.0, %v2591
      %v2593 = vmul.f32 %v2590, %v2592
      %v2594 = vadd.f32 %v2590, %v2593
      %vm2595 = vweird.f32 %v2544
      %vm2596 = vweird.f32 %v2590
      %vm2597 = vmor %vm2595, %vm2596
      %v2598 = vsel %vm2597, %v2590, %v2594
      %v2599 = vand.u32 2147483647, %v2544
      %vm2600 = vcmp.eq.f32.partialorder %v2599, 8.507059e+37
      %v2601 = vand.u32 %v2544, 2147483648
      %v2602 = vor.u32 1.1754944e-38, %v2601
      %v2603 = vsel %vm2600, %v2602, %v2598
      %v2604 = vmul.f32 1.0, %v2603
      %v2605 = vrcp.pop %v2545
      %v2606 = vmul.f32 %v2545, %v2605
      %v2607 = vsub.f32 1.0, %v2606
      %v2608 = vmul.f32 %v2605, %v2607
      %v2609 = vadd.f32 %v2605, %v2608
      %vm2610 = vweird.f32 %v2545
      %vm2611 = vweird.f32 %v2605
      %vm2612 = vmor %vm2610, %vm2611
      %v2613 = vsel %vm2612, %v2605, %v2609
      %v2614 = vand.u32 2147483647, %v2545
      %vm2615 = vcmp.eq.f32.partialorder %v2614, 8.507059e+37
      %v2616 = vand.u32 %v2545, 2147483648
      %v2617 = vor.u32 1.1754944e-38, %v2616
      %v2618 = vsel %vm2615, %v2617, %v2613
      %v2619 = vmul.f32 1.0, %v2618
      %v2620 = vrcp.pop %v2546
      %v2621 = vmul.f32 %v2546, %v2620
      %v2622 = vsub.f32 1.0, %v2621
      %v2623 = vmul.f32 %v2620, %v2622
      %v2624 = vadd.f32 %v2620, %v2623
      %vm2625 = vweird.f32 %v2546
      %vm2626 = vweird.f32 %v2620
      %vm2627 = vmor %vm2625, %vm2626
      %v2628 = vsel %vm2627, %v2620, %v2624
      %v2629 = vand.u32 2147483647, %v2546
      %vm2630 = vcmp.eq.f32.partialorder %v2629, 8.507059e+37
      %v2631 = vand.u32 %v2546, 2147483648
      %v2632 = vor.u32 1.1754944e-38, %v2631
      %v2633 = vsel %vm2630, %v2632, %v2628
      %v2634 = vmul.f32 1.0, %v2633
      %v2635 = vrcp.pop %v2547
      %v2636 = vmul.f32 %v2547, %v2635
      %v2637 = vsub.f32 1.0, %v2636
      %v2638 = vmul.f32 %v2635, %v2637
      %v2639 = vadd.f32 %v2635, %v2638
      %vm2640 = vweird.f32 %v2547
      %vm2641 = vweird.f32 %v2635
      %vm2642 = vmor %vm2640, %vm2641
      %v2643 = vsel %vm2642, %v2635, %v2639
      %v2644 = vand.u32 2147483647, %v2547
      %vm2645 = vcmp.eq.f32.partialorder %v2644, 8.507059e+37
      %v2646 = vand.u32 %v2547, 2147483648
      %v2647 = vor.u32 1.1754944e-38, %v2646
      %v2648 = vsel %vm2645, %v2647, %v2643
      %v2649 = vmul.f32 1.0, %v2648
      %v2650 = vrcp.pop %v2548
      %v2651 = vmul.f32 %v2548, %v2650
      %v2652 = vsub.f32 1.0, %v2651
      %v2653 = vmul.f32 %v2650, %v2652
      %v2654 = vadd.f32 %v2650, %v2653
      %vm2655 = vweird.f32 %v2548
      %vm2656 = vweird.f32 %v2650
      %vm2657 = vmor %vm2655, %vm2656
      %v2658 = vsel %vm2657, %v2650, %v2654
      %v2659 = vand.u32 2147483647, %v2548
      %vm2660 = vcmp.eq.f32.partialorder %v2659, 8.507059e+37
      %v2661 = vand.u32 %v2548, 2147483648
      %v2662 = vor.u32 1.1754944e-38, %v2661
      %v2663 = vsel %vm2660, %v2662, %v2658
      %v2664 = vmul.f32 1.0, %v2663
      %v2665 = vrcp.pop %v2549
      %v2666 = vmul.f32 %v2549, %v2665
      %v2667 = vsub.f32 1.0, %v2666
      %v2668 = vmul.f32 %v2665, %v2667
      %v2669 = vadd.f32 %v2665, %v2668
      %vm2670 = vweird.f32 %v2549
      %vm2671 = vweird.f32 %v2665
      %vm2672 = vmor %vm2670, %vm2671
      %v2673 = vsel %vm2672, %v2665, %v2669
      %v2674 = vand.u32 2147483647, %v2549
      %vm2675 = vcmp.eq.f32.partialorder %v2674, 8.507059e+37
      %v2676 = vand.u32 %v2549, 2147483648
      %v2677 = vor.u32 1.1754944e-38, %v2676
      %v2678 = vsel %vm2675, %v2677, %v2673
      %v2679 = vmul.f32 1.0, %v2678
      %v2680 = vrcp.pop %v2550
      %v2681 = vmul.f32 %v2550, %v2680
      %v2682 = vsub.f32 1.0, %v2681
      %v2683 = vmul.f32 %v2680, %v2682
      %v2684 = vadd.f32 %v2680, %v2683
      %vm2685 = vweird.f32 %v2550
      %vm2686 = vweird.f32 %v2680
      %vm2687 = vmor %vm2685, %vm2686
      %v2688 = vsel %vm2687, %v2680, %v2684
      %v2689 = vand.u32 2147483647, %v2550
      %vm2690 = vcmp.eq.f32.partialorder %v2689, 8.507059e+37
      %v2691 = vand.u32 %v2550, 2147483648
      %v2692 = vor.u32 1.1754944e-38, %v2691
      %v2693 = vsel %vm2690, %v2692, %v2688
      %v2694 = vmul.f32 1.0, %v2693
      %v2695 = vrcp.pop %v2551
      %v2696 = vmul.f32 %v2551, %v2695
      %v2697 = vsub.f32 1.0, %v2696
      %v2698 = vmul.f32 %v2695, %v2697
      %v2699 = vadd.f32 %v2695, %v2698
      %vm2700 = vweird.f32 %v2551
      %vm2701 = vweird.f32 %v2695
      %vm2702 = vmor %vm2700, %vm2701
      %v2703 = vsel %vm2702, %v2695, %v2699
      %v2704 = vand.u32 2147483647, %v2551
      %vm2705 = vcmp.eq.f32.partialorder %v2704, 8.507059e+37
      %v2706 = vand.u32 %v2551, 2147483648
      %v2707 = vor.u32 1.1754944e-38, %v2706
      %v2708 = vsel %vm2705, %v2707, %v2703
      %v2709 = vmul.f32 1.0, %v2708
      %v2710 = vrcp.pop %v2552
      %v2711 = vmul.f32 %v2552, %v2710
      %v2712 = vsub.f32 1.0, %v2711
      %v2713 = vmul.f32 %v2710, %v2712
      %v2714 = vadd.f32 %v2710, %v2713
      %vm2715 = vweird.f32 %v2552
      %vm2716 = vweird.f32 %v2710
      %vm2717 = vmor %vm2715, %vm2716
      %v2718 = vsel %vm2717, %v2710, %v2714
      %v2719 = vand.u32 2147483647, %v2552
      %vm2720 = vcmp.eq.f32.partialorder %v2719, 8.507059e+37
      %v2721 = vand.u32 %v2552, 2147483648
      %v2722 = vor.u32 1.1754944e-38, %v2721
      %v2723 = vsel %vm2720, %v2722, %v2718
      %v2724 = vmul.f32 1.0, %v2723
      %v2725 = vrcp.pop %v2553
      %v2726 = vmul.f32 %v2553, %v2725
      %v2727 = vsub.f32 1.0, %v2726
      %v2728 = vmul.f32 %v2725, %v2727
      %v2729 = vadd.f32 %v2725, %v2728
      %vm2730 = vweird.f32 %v2553
      %vm2731 = vweird.f32 %v2725
      %vm2732 = vmor %vm2730, %vm2731
      %v2733 = vsel %vm2732, %v2725, %v2729
      %v2734 = vand.u32 2147483647, %v2553
      %vm2735 = vcmp.eq.f32.partialorder %v2734, 8.507059e+37
      %v2736 = vand.u32 %v2553, 2147483648
      %v2737 = vor.u32 1.1754944e-38, %v2736
      %v2738 = vsel %vm2735, %v2737, %v2733
      %v2739 = vmul.f32 1.0, %v2738
      %v2740 = vrcp.pop %v2554
      %v2741 = vmul.f32 %v2554, %v2740
      %v2742 = vsub.f32 1.0, %v2741
      %v2743 = vmul.f32 %v2740, %v2742
      %v2744 = vadd.f32 %v2740, %v2743
      %vm2745 = vweird.f32 %v2554
      %vm2746 = vweird.f32 %v2740
      %vm2747 = vmor %vm2745, %vm2746
      %v2748 = vsel %vm2747, %v2740, %v2744
      %v2749 = vand.u32 2147483647, %v2554
      %vm2750 = vcmp.eq.f32.partialorder %v2749, 8.507059e+37
      %v2751 = vand.u32 %v2554, 2147483648
      %v2752 = vor.u32 1.1754944e-38, %v2751
      %v2753 = vsel %vm2750, %v2752, %v2748
      %v2754 = vmul.f32 1.0, %v2753
      %v2755 = vrcp.pop %v2555
      %v2756 = vmul.f32 %v2555, %v2755
      %v2757 = vsub.f32 1.0, %v2756
      %v2758 = vmul.f32 %v2755, %v2757
      %v2759 = vadd.f32 %v2755, %v2758
      %vm2760 = vweird.f32 %v2555
      %vm2761 = vweird.f32 %v2755
      %vm2762 = vmor %vm2760, %vm2761
      %v2763 = vsel %vm2762, %v2755, %v2759
      %v2764 = vand.u32 2147483647, %v2555
      %vm2765 = vcmp.eq.f32.partialorder %v2764, 8.507059e+37
      %v2766 = vand.u32 %v2555, 2147483648
      %v2767 = vor.u32 1.1754944e-38, %v2766
      %v2768 = vsel %vm2765, %v2767, %v2763
      %v2769 = vmul.f32 1.0, %v2768
      %v2770 = vrcp.pop %v2556
      %v2771 = vmul.f32 %v2556, %v2770
      %v2772 = vsub.f32 1.0, %v2771
      %v2773 = vmul.f32 %v2770, %v2772
      %v2774 = vadd.f32 %v2770, %v2773
      %vm2775 = vweird.f32 %v2556
      %vm2776 = vweird.f32 %v2770
      %vm2777 = vmor %vm2775, %vm2776
      %v2778 = vsel %vm2777, %v2770, %v2774
      %v2779 = vand.u32 2147483647, %v2556
      %vm2780 = vcmp.eq.f32.partialorder %v2779, 8.507059e+37
      %v2781 = vand.u32 %v2556, 2147483648
      %v2782 = vor.u32 1.1754944e-38, %v2781
      %v2783 = vsel %vm2780, %v2782, %v2778
      %v2784 = vmul.f32 1.0, %v2783
      %v2785 = vrcp.pop %v2557
      %v2786 = vmul.f32 %v2557, %v2785
      %v2787 = vsub.f32 1.0, %v2786
      %v2788 = vmul.f32 %v2785, %v2787
      %v2789 = vadd.f32 %v2785, %v2788
      %vm2790 = vweird.f32 %v2557
      %vm2791 = vweird.f32 %v2785
      %vm2792 = vmor %vm2790, %vm2791
      %v2793 = vsel %vm2792, %v2785, %v2789
      %v2794 = vand.u32 2147483647, %v2557
      %vm2795 = vcmp.eq.f32.partialorder %v2794, 8.507059e+37
      %v2796 = vand.u32 %v2557, 2147483648
      %v2797 = vor.u32 1.1754944e-38, %v2796
      %v2798 = vsel %vm2795, %v2797, %v2793
      %v2799 = vmul.f32 1.0, %v2798
      %v2800 = vrcp.pop %v2558
      %v2801 = vmul.f32 %v2558, %v2800
      %v2802 = vsub.f32 1.0, %v2801
      %v2803 = vmul.f32 %v2800, %v2802
      %v2804 = vadd.f32 %v2800, %v2803
      %vm2805 = vweird.f32 %v2558
      %vm2806 = vweird.f32 %v2800
      %vm2807 = vmor %vm2805, %vm2806
      %v2808 = vsel %vm2807, %v2800, %v2804
      %v2809 = vand.u32 2147483647, %v2558
      %vm2810 = vcmp.eq.f32.partialorder %v2809, 8.507059e+37
      %v2811 = vand.u32 %v2558, 2147483648
      %v2812 = vor.u32 1.1754944e-38, %v2811
      %v2813 = vsel %vm2810, %v2812, %v2808
      %v2814 = vmul.f32 1.0, %v2813
      %v2815 = vrcp.pop %v2559
      %v2816 = vmul.f32 %v2559, %v2815
      %v2817 = vsub.f32 1.0, %v2816
      %v2818 = vmul.f32 %v2815, %v2817
      %v2819 = vadd.f32 %v2815, %v2818
      %vm2820 = vweird.f32 %v2559
      %vm2821 = vweird.f32 %v2815
      %vm2822 = vmor %vm2820, %vm2821
      %v2823 = vsel %vm2822, %v2815, %v2819
      %v2824 = vand.u32 2147483647, %v2559
      %vm2825 = vcmp.eq.f32.partialorder %v2824, 8.507059e+37
      %v2826 = vand.u32 %v2559, 2147483648
      %v2827 = vor.u32 1.1754944e-38, %v2826
      %v2828 = vsel %vm2825, %v2827, %v2823
      %v2829 = vmul.f32 1.0, %v2828
      %v2830 = vrcp.pop %v2560
      %v2831 = vmul.f32 %v2560, %v2830
      %v2832 = vsub.f32 1.0, %v2831
      %v2833 = vmul.f32 %v2830, %v2832
      %v2834 = vadd.f32 %v2830, %v2833
      %vm2835 = vweird.f32 %v2560
      %vm2836 = vweird.f32 %v2830
      %vm2837 = vmor %vm2835, %vm2836
      %v2838 = vsel %vm2837, %v2830, %v2834
      %v2839 = vand.u32 2147483647, %v2560
      %vm2840 = vcmp.eq.f32.partialorder %v2839, 8.507059e+37
      %v2841 = vand.u32 %v2560, 2147483648
      %v2842 = vor.u32 1.1754944e-38, %v2841
      %v2843 = vsel %vm2840, %v2842, %v2838
      %v2844 = vmul.f32 1.0, %v2843
      %v2845 = vrcp.pop %v2561
      %v2846 = vmul.f32 %v2561, %v2845
      %v2847 = vsub.f32 1.0, %v2846
      %v2848 = vmul.f32 %v2845, %v2847
      %v2849 = vadd.f32 %v2845, %v2848
      %vm2850 = vweird.f32 %v2561
      %vm2851 = vweird.f32 %v2845
      %vm2852 = vmor %vm2850, %vm2851
      %v2853 = vsel %vm2852, %v2845, %v2849
      %v2854 = vand.u32 2147483647, %v2561
      %vm2855 = vcmp.eq.f32.partialorder %v2854, 8.507059e+37
      %v2856 = vand.u32 %v2561, 2147483648
      %v2857 = vor.u32 1.1754944e-38, %v2856
      %v2858 = vsel %vm2855, %v2857, %v2853
      %v2859 = vmul.f32 1.0, %v2858
      %v2860 = vrcp.pop %v2562
      %v2861 = vmul.f32 %v2562, %v2860
      %v2862 = vsub.f32 1.0, %v2861
      %v2863 = vmul.f32 %v2860, %v2862
      %v2864 = vadd.f32 %v2860, %v2863
      %vm2865 = vweird.f32 %v2562
      %vm2866 = vweird.f32 %v2860
      %vm2867 = vmor %vm2865, %vm2866
      %v2868 = vsel %vm2867, %v2860, %v2864
      %v2869 = vand.u32 2147483647, %v2562
      %vm2870 = vcmp.eq.f32.partialorder %v2869, 8.507059e+37
      %v2871 = vand.u32 %v2562, 2147483648
      %v2872 = vor.u32 1.1754944e-38, %v2871
      %v2873 = vsel %vm2870, %v2872, %v2868
      %v2874 = vmul.f32 1.0, %v2873
      %v2875 = vrcp.pop %v2563
      %v2876 = vmul.f32 %v2563, %v2875
      %v2877 = vsub.f32 1.0, %v2876
      %v2878 = vmul.f32 %v2875, %v2877
      %v2879 = vadd.f32 %v2875, %v2878
      %vm2880 = vweird.f32 %v2563
      %vm2881 = vweird.f32 %v2875
      %vm2882 = vmor %vm2880, %vm2881
      %v2883 = vsel %vm2882, %v2875, %v2879
      %v2884 = vand.u32 2147483647, %v2563
      %vm2885 = vcmp.eq.f32.partialorder %v2884, 8.507059e+37
      %v2886 = vand.u32 %v2563, 2147483648
      %v2887 = vor.u32 1.1754944e-38, %v2886
      %v2888 = vsel %vm2885, %v2887, %v2883
      %v2889 = vmul.f32 1.0, %v2888
      %v2890 = vrcp.pop %v2564
      %v2891 = vmul.f32 %v2564, %v2890
      %v2892 = vsub.f32 1.0, %v2891
      %v2893 = vmul.f32 %v2890, %v2892
      %v2894 = vadd.f32 %v2890, %v2893
      %vm2895 = vweird.f32 %v2564
      %vm2896 = vweird.f32 %v2890
      %vm2897 = vmor %vm2895, %vm2896
      %v2898 = vsel %vm2897, %v2890, %v2894
      %v2899 = vand.u32 2147483647, %v2564
      %vm2900 = vcmp.eq.f32.partialorder %v2899, 8.507059e+37
      %v2901 = vand.u32 %v2564, 2147483648
      %v2902 = vor.u32 1.1754944e-38, %v2901
      %v2903 = vsel %vm2900, %v2902, %v2898
      %v2904 = vmul.f32 1.0, %v2903
      %v2905 = vrcp.pop %v2565
      %v2906 = vmul.f32 %v2565, %v2905
      %v2907 = vsub.f32 1.0, %v2906
      %v2908 = vmul.f32 %v2905, %v2907
      %v2909 = vadd.f32 %v2905, %v2908
      %vm2910 = vweird.f32 %v2565
      %vm2911 = vweird.f32 %v2905
      %vm2912 = vmor %vm2910, %vm2911
      %v2913 = vsel %vm2912, %v2905, %v2909
      %v2914 = vand.u32 2147483647, %v2565
      %vm2915 = vcmp.eq.f32.partialorder %v2914, 8.507059e+37
      %v2916 = vand.u32 %v2565, 2147483648
      %v2917 = vor.u32 1.1754944e-38, %v2916
      %v2918 = vsel %vm2915, %v2917, %v2913
      %v2919 = vmul.f32 1.0, %v2918
      %v2920 = vrcp.pop %v2566
      %v2921 = vmul.f32 %v2566, %v2920
      %v2922 = vsub.f32 1.0, %v2921
      %v2923 = vmul.f32 %v2920, %v2922
      %v2924 = vadd.f32 %v2920, %v2923
      %vm2925 = vweird.f32 %v2566
      %vm2926 = vweird.f32 %v2920
      %vm2927 = vmor %vm2925, %vm2926
      %v2928 = vsel %vm2927, %v2920, %v2924
      %v2929 = vand.u32 2147483647, %v2566
      %vm2930 = vcmp.eq.f32.partialorder %v2929, 8.507059e+37
      %v2931 = vand.u32 %v2566, 2147483648
      %v2932 = vor.u32 1.1754944e-38, %v2931
      %v2933 = vsel %vm2930, %v2932, %v2928
      %v2934 = vmul.f32 1.0, %v2933
      %v2935 = vrcp.pop %v2567
      %v2936 = vmul.f32 %v2567, %v2935
      %v2937 = vsub.f32 1.0, %v2936
      %v2938 = vmul.f32 %v2935, %v2937
      %v2939 = vadd.f32 %v2935, %v2938
      %vm2940 = vweird.f32 %v2567
      %vm2941 = vweird.f32 %v2935
      %vm2942 = vmor %vm2940, %vm2941
      %v2943 = vsel %vm2942, %v2935, %v2939
      %v2944 = vand.u32 2147483647, %v2567
      %vm2945 = vcmp.eq.f32.partialorder %v2944, 8.507059e+37
      %v2946 = vand.u32 %v2567, 2147483648
      %v2947 = vor.u32 1.1754944e-38, %v2946
      %v2948 = vsel %vm2945, %v2947, %v2943
      %v2949 = vmul.f32 1.0, %v2948
      %v2950 = vrcp.pop %v2568
      %v2951 = vmul.f32 %v2568, %v2950
      %v2952 = vsub.f32 1.0, %v2951
      %v2953 = vmul.f32 %v2950, %v2952
      %v2954 = vadd.f32 %v2950, %v2953
      %vm2955 = vweird.f32 %v2568
      %vm2956 = vweird.f32 %v2950
      %vm2957 = vmor %vm2955, %vm2956
      %v2958 = vsel %vm2957, %v2950, %v2954
      %v2959 = vand.u32 2147483647, %v2568
      %vm2960 = vcmp.eq.f32.partialorder %v2959, 8.507059e+37
      %v2961 = vand.u32 %v2568, 2147483648
      %v2962 = vor.u32 1.1754944e-38, %v2961
      %v2963 = vsel %vm2960, %v2962, %v2958
      %v2964 = vmul.f32 1.0, %v2963
      %v2965 = vrcp.pop %v2569
      %v2966 = vmul.f32 %v2569, %v2965
      %v2967 = vsub.f32 1.0, %v2966
      %v2968 = vmul.f32 %v2965, %v2967
      %v2969 = vadd.f32 %v2965, %v2968
      %vm2970 = vweird.f32 %v2569
      %vm2971 = vweird.f32 %v2965
      %vm2972 = vmor %vm2970, %vm2971
      %v2973 = vsel %vm2972, %v2965, %v2969
      %v2974 = vand.u32 2147483647, %v2569
      %vm2975 = vcmp.eq.f32.partialorder %v2974, 8.507059e+37
      %v2976 = vand.u32 %v2569, 2147483648
      %v2977 = vor.u32 1.1754944e-38, %v2976
      %v2978 = vsel %vm2975, %v2977, %v2973
      %v2979 = vmul.f32 1.0, %v2978
      %v2980 = vrcp.pop %v2570
      %v2981 = vmul.f32 %v2570, %v2980
      %v2982 = vsub.f32 1.0, %v2981
      %v2983 = vmul.f32 %v2980, %v2982
      %v2984 = vadd.f32 %v2980, %v2983
      %vm2985 = vweird.f32 %v2570
      %vm2986 = vweird.f32 %v2980
      %vm2987 = vmor %vm2985, %vm2986
      %v2988 = vsel %vm2987, %v2980, %v2984
      %v2989 = vand.u32 2147483647, %v2570
      %vm2990 = vcmp.eq.f32.partialorder %v2989, 8.507059e+37
      %v2991 = vand.u32 %v2570, 2147483648
      %v2992 = vor.u32 1.1754944e-38, %v2991
      %v2993 = vsel %vm2990, %v2992, %v2988
      %v2994 = vmul.f32 1.0, %v2993
      %v2995 = vrcp.pop %v2571
      %v2996 = vmul.f32 %v2571, %v2995
      %v2997 = vsub.f32 1.0, %v2996
      %v2998 = vmul.f32 %v2995, %v2997
      %v2999 = vadd.f32 %v2995, %v2998
      %vm3000 = vweird.f32 %v2571
      %vm3001 = vweird.f32 %v2995
      %vm3002 = vmor %vm3000, %vm3001
      %v3003 = vsel %vm3002, %v2995, %v2999
      %v3004 = vand.u32 2147483647, %v2571
      %vm3005 = vcmp.eq.f32.partialorder %v3004, 8.507059e+37
      %v3006 = vand.u32 %v2571, 2147483648
      %v3007 = vor.u32 1.1754944e-38, %v3006
      %v3008 = vsel %vm3005, %v3007, %v3003
      %v3009 = vmul.f32 1.0, %v3008
      %v3010 = vrcp.pop %v2572
      %v3011 = vmul.f32 %v2572, %v3010
      %v3012 = vsub.f32 1.0, %v3011
      %v3013 = vmul.f32 %v3010, %v3012
      %v3014 = vadd.f32 %v3010, %v3013
      %vm3015 = vweird.f32 %v2572
      %vm3016 = vweird.f32 %v3010
      %vm3017 = vmor %vm3015, %vm3016
      %v3018 = vsel %vm3017, %v3010, %v3014
      %v3019 = vand.u32 2147483647, %v2572
      %vm3020 = vcmp.eq.f32.partialorder %v3019, 8.507059e+37
      %v3021 = vand.u32 %v2572, 2147483648
      %v3022 = vor.u32 1.1754944e-38, %v3021
      %v3023 = vsel %vm3020, %v3022, %v3018
      %v3024 = vmul.f32 1.0, %v3023
      %v3025 = vrcp.pop %v2573
      %v3026 = vmul.f32 %v2573, %v3025
      %v3027 = vsub.f32 1.0, %v3026
      %v3028 = vmul.f32 %v3025, %v3027
      %v3029 = vadd.f32 %v3025, %v3028
      %vm3030 = vweird.f32 %v2573
      %vm3031 = vweird.f32 %v3025
      %vm3032 = vmor %vm3030, %vm3031
      %v3033 = vsel %vm3032, %v3025, %v3029
      %v3034 = vand.u32 2147483647, %v2573
      %vm3035 = vcmp.eq.f32.partialorder %v3034, 8.507059e+37
      %v3036 = vand.u32 %v2573, 2147483648
      %v3037 = vor.u32 1.1754944e-38, %v3036
      %v3038 = vsel %vm3035, %v3037, %v3033
      %v3039 = vmul.f32 1.0, %v3038
      %v3040 = vrcp.pop %v2574
      %v3041 = vmul.f32 %v2574, %v3040
      %v3042 = vsub.f32 1.0, %v3041
      %v3043 = vmul.f32 %v3040, %v3042
      %v3044 = vadd.f32 %v3040, %v3043
      %vm3045 = vweird.f32 %v2574
      %vm3046 = vweird.f32 %v3040
      %vm3047 = vmor %vm3045, %vm3046
      %v3048 = vsel %vm3047, %v3040, %v3044
      %v3049 = vand.u32 2147483647, %v2574
      %vm3050 = vcmp.eq.f32.partialorder %v3049, 8.507059e+37
      %v3051 = vand.u32 %v2574, 2147483648
      %v3052 = vor.u32 1.1754944e-38, %v3051
      %v3053 = vsel %vm3050, %v3052, %v3048
      %v3054 = vmul.f32 1.0, %v3053
      %v3055 = vmul.f32 %v2415, %v2589
      %v3056 = vmul.f32 %v2416, %v2604
      %v3057 = vmul.f32 %v2417, %v2619
      %v3058 = vmul.f32 %v2418, %v2634
      %v3059 = vmul.f32 %v2419, %v2649
      %v3060 = vmul.f32 %v2420, %v2664
      %v3061 = vmul.f32 %v2421, %v2679
      %v3062 = vmul.f32 %v2422, %v2694
      %v3063 = vmul.f32 %v2423, %v2709
      %v3064 = vmul.f32 %v2424, %v2724
      %v3065 = vmul.f32 %v2425, %v2739
      %v3066 = vmul.f32 %v2426, %v2754
      %v3067 = vmul.f32 %v2427, %v2769
      %v3068 = vmul.f32 %v2428, %v2784
      %v3069 = vmul.f32 %v2429, %v2799
      %v3070 = vmul.f32 %v2430, %v2814
      %v3071 = vmul.f32 %v2431, %v2829
      %v3072 = vmul.f32 %v2432, %v2844
      %v3073 = vmul.f32 %v2433, %v2859
      %v3074 = vmul.f32 %v2434, %v2874
      %v3075 = vmul.f32 %v2435, %v2889
      %v3076 = vmul.f32 %v2436, %v2904
      %v3077 = vmul.f32 %v2437, %v2919
      %v3078 = vmul.f32 %v2438, %v2934
      %v3079 = vmul.f32 %v2439, %v2949
      %v3080 = vmul.f32 %v2440, %v2964
      %v3081 = vmul.f32 %v2441, %v2979
      %v3082 = vmul.f32 %v2442, %v2994
      %v3083 = vmul.f32 %v2443, %v3009
      %v3084 = vmul.f32 %v2444, %v3024
      %v3085 = vmul.f32 %v2445, %v3039
      %v3086 = vmul.f32 %v2446, %v3054
      %v3087 = vpack.c.bf16 %v3055, %v3055
      %v3088 = vpack.c.bf16 %v3056, %v3056
      %v3089 = vpack.c.bf16 %v3057, %v3057
      %v3090 = vpack.c.bf16 %v3058, %v3058
      %v3091 = vpack.c.bf16 %v3059, %v3059
      %v3092 = vpack.c.bf16 %v3060, %v3060
      %v3093 = vpack.c.bf16 %v3061, %v3061
      %v3094 = vpack.c.bf16 %v3062, %v3062
      %v3095 = vpack.c.bf16 %v3063, %v3063
      %v3096 = vpack.c.bf16 %v3064, %v3064
      %v3097 = vpack.c.bf16 %v3065, %v3065
      %v3098 = vpack.c.bf16 %v3066, %v3066
      %v3099 = vpack.c.bf16 %v3067, %v3067
      %v3100 = vpack.c.bf16 %v3068, %v3068
      %v3101 = vpack.c.bf16 %v3069, %v3069
      %v3102 = vpack.c.bf16 %v3070, %v3070
      %v3103 = vpack.c.bf16 %v3071, %v3071
      %v3104 = vpack.c.bf16 %v3072, %v3072
      %v3105 = vpack.c.bf16 %v3073, %v3073
      %v3106 = vpack.c.bf16 %v3074, %v3074
      %v3107 = vpack.c.bf16 %v3075, %v3075
      %v3108 = vpack.c.bf16 %v3076, %v3076
      %v3109 = vpack.c.bf16 %v3077, %v3077
      %v3110 = vpack.c.bf16 %v3078, %v3078
      %v3111 = vpack.c.bf16 %v3079, %v3079
      %v3112 = vpack.c.bf16 %v3080, %v3080
      %v3113 = vpack.c.bf16 %v3081, %v3081
      %v3114 = vpack.c.bf16 %v3082, %v3082
      %v3115 = vpack.c.bf16 %v3083, %v3083
      %v3116 = vpack.c.bf16 %v3084, %v3084
      %v3117 = vpack.c.bf16 %v3085, %v3085
      %v3118 = vpack.c.bf16 %v3086, %v3086
      %3119 = vst [vmem:[%s456] sm:$0xf] %v3087
      %3120 = vst [vmem:[%s456 + $0x4] sm:$0xf] %v3088
      %3121 = vst [vmem:[%s456 + $0x8] sm:$0xf] %v3089
      %3122 = vst [vmem:[%s456 + $0xc] sm:$0xf] %v3090
      %3123 = vst [vmem:[%s456 + $0x10] sm:$0xf] %v3091
      %3124 = vst [vmem:[%s456 + $0x14] sm:$0xf] %v3092
      %3125 = vst [vmem:[%s456 + $0x18] sm:$0xf] %v3093
      %3126 = vst [vmem:[%s456 + $0x1c] sm:$0xf] %v3094
      %3127 = vst [vmem:[%s456 + $0x20] sm:$0xf] %v3095
      %3128 = vst [vmem:[%s456 + $0x24] sm:$0xf] %v3096
      %3129 = vst [vmem:[%s456 + $0x28] sm:$0xf] %v3097
      %3130 = vst [vmem:[%s456 + $0x2c] sm:$0xf] %v3098
      %3131 = vst [vmem:[%s456 + $0x30] sm:$0xf] %v3099
      %3132 = vst [vmem:[%s456 + $0x34] sm:$0xf] %v3100
      %3133 = vst [vmem:[%s456 + $0x38] sm:$0xf] %v3101
      %3134 = vst [vmem:[%s456 + $0x3c] sm:$0xf] %v3102
      %3135 = vst [vmem:[%s456 + $0x40] sm:$0xf] %v3103
      %3136 = vst [vmem:[%s456 + $0x44] sm:$0xf] %v3104
      %3137 = vst [vmem:[%s456 + $0x48] sm:$0xf] %v3105
      %3138 = vst [vmem:[%s456 + $0x4c] sm:$0xf] %v3106
      %3139 = vst [vmem:[%s456 + $0x50] sm:$0xf] %v3107
      %3140 = vst [vmem:[%s456 + $0x54] sm:$0xf] %v3108
      %3141 = vst [vmem:[%s456 + $0x58] sm:$0xf] %v3109
      %3142 = vst [vmem:[%s456 + $0x5c] sm:$0xf] %v3110
      %3143 = vst [vmem:[%s456 + $0x60] sm:$0xf] %v3111
      %3144 = vst [vmem:[%s456 + $0x64] sm:$0xf] %v3112
      %3145 = vst [vmem:[%s456 + $0x68] sm:$0xf] %v3113
      %3146 = vst [vmem:[%s456 + $0x6c] sm:$0xf] %v3114
      %3147 = vst [vmem:[%s456 + $0x70] sm:$0xf] %v3115
      %3148 = vst [vmem:[%s456 + $0x74] sm:$0xf] %v3116
      %3149 = vst [vmem:[%s456 + $0x78] sm:$0xf] %v3117
      %3150 = vst [vmem:[%s456 + $0x7c] sm:$0xf] %v3118
      %v3151 = vadd.f32 %v3055, %v3056
      %v3152 = vadd.f32 %v3151, %v3057
      %v3153 = vadd.f32 %v3152, %v3058
      %v3154 = vadd.f32 %v3153, %v3059
      %v3155 = vadd.f32 %v3154, %v3060
      %v3156 = vadd.f32 %v3155, %v3061
      %v3157 = vadd.f32 %v3156, %v3062
      %v3158 = vadd.f32 %v3157, %v3063
      %v3159 = vadd.f32 %v3158, %v3064
      %v3160 = vadd.f32 %v3159, %v3065
      %v3161 = vadd.f32 %v3160, %v3066
      %v3162 = vadd.f32 %v3161, %v3067
      %v3163 = vadd.f32 %v3162, %v3068
      %v3164 = vadd.f32 %v3163, %v3069
      %v3165 = vadd.f32 %v3164, %v3070
      %v3166 = vadd.f32 %v3165, %v3071
      %v3167 = vadd.f32 %v3166, %v3072
      %v3168 = vadd.f32 %v3167, %v3073
      %v3169 = vadd.f32 %v3168, %v3074
      %v3170 = vadd.f32 %v3169, %v3075
      %v3171 = vadd.f32 %v3170, %v3076
      %v3172 = vadd.f32 %v3171, %v3077
      %v3173 = vadd.f32 %v3172, %v3078
      %v3174 = vadd.f32 %v3173, %v3079
      %v3175 = vadd.f32 %v3174, %v3080
      %v3176 = vadd.f32 %v3175, %v3081
      %v3177 = vadd.f32 %v3176, %v3082
      %v3178 = vadd.f32 %v3177, %v3083
      %v3179 = vadd.f32 %v3178, %v3084
      %v3180 = vadd.f32 %v3179, %v3085
      %v3181 = vadd.f32 %v3180, %v3086
      %v3182 = vrot.slane %v3181, 4
      %v3183 = vadd.f32 %v3181, %v3182
      %v3184 = vrot.slane %v3183, 2
      %v3185 = vadd.f32 %v3183, %v3184
      %v3186 = vrot.slane %v3185, 1
      %v3187 = vadd.f32 %v3185, %v3186
      %3188 = vst [vmem:[%s463] sm:$0x1] %v3187
      %s3189 = smul.u32 16, %s24
      %p3190 = scmp.lt.s32.totalorder %s23, 1
      %s3191 = scalar_select %p3190, %s23, 1
      %p3192 = scmp.lt.s32.totalorder %s3189, 15
      %s3193 = scalar_select %p3192, %s3189, 15
      %s3194 = smul.addr %s3193, 2
      %s3195 = smul.addr %s3191, 32
      %s3196 = sadd.s32 %s3194, %s3195
      %s3197 = smul.addr %s3196, 4
      %s3198 = scalar_lea.vmem %s6, %s3197
      %p3199 = scmp.lt.s32.totalorder %s23, 1
      %s3200 = scalar_select %p3199, %s23, 1
      %p3201 = scmp.lt.s32.totalorder %s24, 0
      %s3202 = scalar_select %p3201, %s24, 0
      %s3203 = sadd.s32 %s3202, %s3200
      %s3204 = scalar_lea.vmem %s7, %s3203
      // Predicated region
      $region45: #{inverted_residual_block.4} parent=43 // pred_check
        %p3205 = pneg %p214
      $region46: #{inverted_residual_block.4} parent=43 // pred_check_branch
        %3207 = sbr.rel (%p3205) target = $region48
      $region47: #{inverted_residual_block.4} parent=43 // pred_region
        %s3208 = smul.u32 16, %s24
      $region48: #{inverted_residual_block.4} parent=43 // pred_fallthru
        _
      // Predicated region
      $region49: #{inverted_residual_block.4} parent=43 // pred_check
        %p3209 = pneg %p242
      $region50: #{inverted_residual_block.4} parent=43 // pred_check_branch
        %3211 = sbr.rel (%p3209) target = $region52
      $region51: #{inverted_residual_block.4} parent=43 // pred_region
        _
      $region52: #{inverted_residual_block.4} parent=43 // pred_fallthru
        _
    $region44: #{inverted_residual_block.4} parent=5 // pred_fallthru
      _
    %p3212 = scmp.le.s32.totalorder 2, %s14
    // Predicated region
    $region53: #{inverted_residual_block.4} parent=5 // pred_check
      %p3213 = pneg %p3212
    $region54: #{inverted_residual_block.4} parent=5 // pred_check_branch
      %3215 = sbr.rel (%p3213) target = $region56
    $region55: #{inverted_residual_block.4} parent=5 // pred_region
      %s3216 = ssub.s32 %s14, 2
      // Predicated region
      $region57: #{inverted_residual_block.4} parent=55 // pred_check
        %p3217 = pneg %p220
      $region58: #{inverted_residual_block.4} parent=55 // pred_check_branch
        %3219 = sbr.rel (%p3217) target = $region60
      $region59: #{inverted_residual_block.4} parent=55 // pred_region
        %s3220 = smul.u32 16, %s26
        %p3221 = scmp.lt.s32.totalorder %s25, 1
        %s3222 = scalar_select %p3221, %s25, 1
        %p3223 = scmp.lt.s32.totalorder %s3220, 15
        %s3224 = scalar_select %p3223, %s3220, 15
        %s3225 = smul.addr %s3224, 2
        %s3226 = smul.addr %s3222, 32
        %s3227 = sadd.s32 %s3225, %s3226
        %s3228 = smul.addr %s3227, 4
        %s3229 = scalar_lea.vmem %s6, %s3228
      $region60: #{inverted_residual_block.4} parent=55 // pred_fallthru
        _
      // Predicated region
      $region61: #{inverted_residual_block.4} parent=55 // pred_check
        %p3230 = pneg %p248
      $region62: #{inverted_residual_block.4} parent=55 // pred_check_branch
        %3232 = sbr.rel (%p3230) target = $region64
      $region63: #{inverted_residual_block.4} parent=55 // pred_region
        %p3233 = scmp.lt.s32.totalorder %s25, 1
        %s3234 = scalar_select %p3233, %s25, 1
        %p3235 = scmp.lt.s32.totalorder %s26, 0
        %s3236 = scalar_select %p3235, %s26, 0
        %s3237 = sadd.s32 %s3236, %s3234
        %s3238 = scalar_lea.vmem %s7, %s3237
      $region64: #{inverted_residual_block.4} parent=55 // pred_fallthru
        _
    $region56: #{inverted_residual_block.4} parent=5 // pred_fallthru
      _
  $region6: #{inverted_residual_block.4} parent=0 // loop_footer
    %s18 = sadd.s32 1, %s14
  $region7: #{inverted_residual_block.4} parent=0 // loop_footer_branch
    %13 = sbr.rel target = $region3
  $region8: #{inverted_residual_block.4} parent=0 // loop_exit
    _

</llo_original>
